<compile_context>
chip_gen: v7x
topology: tpu7x:2x2x1
jax: 0.10.0
libtpu: 0.0.40
codegen_flags: <defaults>
</compile_context>

<pallas_src>
import jax
import jax.numpy as jnp
from jax.experimental import pallas as pl
from jax.experimental.pallas import tpu as pltpu

C_IN = 76       # squeeze-excite bottleneck channels
C_OUT = 1824    # main feature channels
H = W = 7       # spatial size of the main feature map
HW = H * W


def se_gate_mul_kernel(xse_ref, w_ref, b_ref, xmain_ref, o_ref):
    # 1x1 conv on a 1x1 spatial input == matrix-vector product:
    # (blk, Cin) @ (Cin, 1) -> (blk, 1), accumulated in f32 on the MXU.
    s = jnp.dot(
        w_ref[...],
        xse_ref[...].astype(w_ref.dtype),     # no-op for f32 weights; bf16 cast otherwise
        preferred_element_type=jnp.float32,
    )
    gate = jax.nn.sigmoid(s + b_ref[...].astype(jnp.float32))   # (blk, 1), f32 (EUP)
    # (blk, HW) * (blk, 1): lane broadcast of the gate column; multiply runs in the
    # I/O dtype (f32 here; bf16 if the feature map is bf16).
    o_ref[...] = xmain_ref[...] * gate.astype(o_ref.dtype)


def _pick_block_c(c_out):
    # Single grid step on single-TC chips (v5e / v6e); even 2-way Cout split on dual-TC
    # v7x so each TensorCore gets one balanced block (912/912 for Cout=1824).
    kind = ""
    try:
        kind = jax.devices()[0].device_kind.lower()
    except Exception:
        pass
    if "v7" in kind:
        half = pl.cdiv(c_out, 2)
        return ((half + 7) // 8) * 8
    return c_out


def se_gate_mul_cout_major(xse_col, w2d, bias_col, xmain, *, block_c=None):
    """Core kernel call, Cout-major (NCHW-native) layout.

    xse_col:  (Cin, 1)     squeeze vector
    w2d:      (Cout, Cin)  1x1-conv weight, native layout (bf16 or f32)
    bias_col: (Cout, 1)
    xmain:    (Cout, HW)   main feature map
    returns:  (Cout, HW)   gated feature map, same dtype as xmain
    """
    c_out, hw = xmain.shape
    c_in = w2d.shape[1]
    if block_c is None:
        block_c = _pick_block_c(c_out)
    grid = (pl.cdiv(c_out, block_c),)

    nbytes = lambda a: a.size * a.dtype.itemsize
    cost = pl.CostEstimate(
        flops=2 * c_out * c_in + 2 * c_out * hw,
        transcendentals=c_out,
        bytes_accessed=nbytes(xse_col) + nbytes(w2d) + nbytes(bias_col) + 2 * nbytes(xmain),
    )

    return pl.pallas_call(
        se_gate_mul_kernel,
        out_shape=jax.ShapeDtypeStruct((c_out, hw), xmain.dtype),
        grid=grid,
        in_specs=[
            pl.BlockSpec((c_in, 1), lambda j: (0, 0)),        # xse column (resident)
            pl.BlockSpec((block_c, c_in), lambda j: (j, 0)),  # weight row block
            pl.BlockSpec((block_c, 1), lambda j: (j, 0)),     # bias block
            pl.BlockSpec((block_c, hw), lambda j: (j, 0)),    # main tensor block
        ],
        out_specs=pl.BlockSpec((block_c, hw), lambda j: (j, 0)),
        compiler_params=pltpu.CompilerParams(
            dimension_semantics=("parallel",),
        ),
        cost_estimate=cost,
    )(xse_col, w2d, bias_col, xmain)


def se_gate_mul(x519, x516, w2d, bias):
    """Module-equivalent forward (NCHW interface), zero layout transposes.

    x519: (1, Cin, 1, 1), x516: (1, Cout, H, W), w2d: (Cout, Cin), bias: (Cout,)
    -> (1, Cout, H, W)
    """
    n, c_out, h, w = x516.shape
    assert n == 1 and x519.shape[0] == 1

    xse_col = x519.reshape(-1, 1)        # (Cin, 1)   -- free reshape
    bias_col = bias.reshape(-1, 1)       # (Cout, 1)  -- free reshape
    xmain = x516.reshape(c_out, h * w)   # (Cout, HW) -- free reshape, NO transpose

    out = se_gate_mul_cout_major(xse_col, w2d, bias_col, xmain)
    return out.reshape(n, c_out, h, w)   # free reshape back to NCHW


if __name__ == "__main__":
    key = jax.random.PRNGKey(0)
    k1, k2, k3, k4 = jax.random.split(key, 4)

    # Conv2d(76, 1824, kernel_size=(1,1)) parameters: weight (1824, 76, 1, 1), bias (1824,)
    weight = jax.random.normal(k1, (C_OUT, C_IN, 1, 1), dtype=jnp.float32) * 0.05
    bias = jax.random.normal(k2, (C_OUT,), dtype=jnp.float32) * 0.05

    # One-time, caller-side weight prep: native (Cout, Cin) layout, stored bf16 in HBM
    # (halves the kernel's largest DMA stream; the MXU still accumulates in f32).
    w2d = weight.reshape(C_OUT, C_IN).astype(jnp.bfloat16)

    # Inputs matching the module's forward signature.
    x519 = jax.random.normal(k3, (1, C_IN, 1, 1), dtype=jnp.float32)   # SE squeeze vector
    x516 = jax.random.normal(k4, (1, C_OUT, H, W), dtype=jnp.float32)  # main feature map

    out = se_gate_mul(x519, x516, w2d, bias)
    out = jax.block_until_ready(out)

    # Plain-JAX reference (conv1x1 -> sigmoid -> mul) using the same bf16-stored weight the
    # kernel sees (bf16 weight storage is the documented precision model of this kernel).
    w_eff = w2d.astype(jnp.float32)                                    # (Cout, Cin)
    xse_eff = x519.reshape(C_IN).astype(jnp.bfloat16).astype(jnp.float32)
    gate = jax.nn.sigmoid(
        jnp.einsum("oi,i->o", w_eff, xse_eff, precision=jax.lax.Precision.HIGHEST) + bias
    )                                                                  # (Cout,)
    ref = gate[None, :, None, None] * x516

    assert out.shape == (1, C_OUT, H, W)
    assert jnp.allclose(out, ref, atol=1e-4, rtol=1e-4), float(jnp.max(jnp.abs(out - ref)))

    print("KERNEL_OK")
</pallas_src>

<mosaic_0001>
module attributes {stable_mosaic.version = 11 : i64} {
  func.func @se_gate_mul_kernel(%arg0: i32, %arg1: memref<76x1xf32, #tpu.memory_space<vmem>>, %arg2: memref<1824x76xbf16, #tpu.memory_space<vmem>>, %arg3: memref<1824x1xf32, #tpu.memory_space<vmem>>, %arg4: memref<1824x49xf32, #tpu.memory_space<vmem>>, %arg5: memref<1824x49xf32, #tpu.memory_space<vmem>>) attributes {dimension_semantics = [#tpu.dimension_semantics<parallel>], iteration_bounds = array<i64: 1>, scalar_prefetch = 0 : i64, scratch_operands = 0 : i64, tpu.core_type = #tpu.core_type<tc>, window_params = [{pipeline_mode = #tpu.pipeline_mode<synchronous>, transform_indices = @transform_0, window_bounds = array<i64: 76, 1>}, {transform_indices = @transform_1, window_bounds = array<i64: 1824, 76>}, {transform_indices = @transform_2, window_bounds = array<i64: 1824, 1>}, {transform_indices = @transform_3, window_bounds = array<i64: 1824, 49>}, {transform_indices = @transform_4, window_bounds = array<i64: 1824, 49>}]} {
    %c0 = arith.constant 0 : index
    %c0_0 = arith.constant 0 : index
    %0 = vector.load %arg2[%c0, %c0_0] : memref<1824x76xbf16, #tpu.memory_space<vmem>>, vector<1824x76xbf16>
    %c0_1 = arith.constant 0 : index
    %c0_2 = arith.constant 0 : index
    %1 = vector.load %arg1[%c0_1, %c0_2] : memref<76x1xf32, #tpu.memory_space<vmem>>, vector<76x1xf32>
    %2 = arith.truncf %1 : vector<76x1xf32> to vector<76x1xbf16>
    %cst = arith.constant dense<0.000000e+00> : vector<1824x1xf32>
    %3 = tpu.matmul %0, %2, %cst {dimension_numbers = #tpu.dot_dimension_numbers<[1], [0], [0], [1], [0, 0, 1, 1], [], []>} : vector<1824x76xbf16>, vector<76x1xbf16>, vector<1824x1xf32> -> vector<1824x1xf32>
    %c0_3 = arith.constant 0 : index
    %c0_4 = arith.constant 0 : index
    %4 = vector.load %arg3[%c0_3, %c0_4] : memref<1824x1xf32, #tpu.memory_space<vmem>>, vector<1824x1xf32>
    %5 = arith.addf %3, %4 : vector<1824x1xf32>
    %6 = arith.negf %5 : vector<1824x1xf32>
    %7 = math.exp %6 : vector<1824x1xf32>
    %cst_5 = arith.constant 1.000000e+00 : f32
    %8 = vector.broadcast %cst_5 : f32 to vector<1824x1xf32>
    %9 = arith.addf %8, %7 : vector<1824x1xf32>
    %10 = arith.divf %8, %9 : vector<1824x1xf32>
    %c0_6 = arith.constant 0 : index
    %c0_7 = arith.constant 0 : index
    %11 = vector.load %arg4[%c0_6, %c0_7] : memref<1824x49xf32, #tpu.memory_space<vmem>>, vector<1824x49xf32>
    %12 = vector.broadcast %10 : vector<1824x1xf32> to vector<1824x49xf32>
    %13 = arith.mulf %11, %12 : vector<1824x49xf32>
    %c0_8 = arith.constant 0 : index
    %c0_9 = arith.constant 0 : index
    %14 = vector.load %arg5[%c0_8, %c0_9] : memref<1824x49xf32, #tpu.memory_space<vmem>>, vector<1824x49xf32>
    tpu.vector_store %arg5[%c0_8, %c0_9], %13 {strides = array<i32>} : memref<1824x49xf32, #tpu.memory_space<vmem>>, vector<1824x49xf32>,
    return
  }
  func.func @transform_0(%arg0: i32) -> (i32, i32) {
    %c0_i32 = arith.constant 0 : i32
    %c0_i32_0 = arith.constant 0 : i32
    %c0_i32_1 = arith.constant 0 : i32
    return %c0_i32, %c0_i32_0 : i32, i32
  }
  func.func @transform_1(%arg0: i32) -> (i32, i32) {
    %c0_i32 = arith.constant 0 : i32
    %c0_i32_0 = arith.constant 0 : i32
    return %arg0, %c0_i32 : i32, i32
  }
  func.func @transform_2(%arg0: i32) -> (i32, i32) {
    %c0_i32 = arith.constant 0 : i32
    %c0_i32_0 = arith.constant 0 : i32
    return %arg0, %c0_i32 : i32, i32
  }
  func.func @transform_3(%arg0: i32) -> (i32, i32) {
    %c0_i32 = arith.constant 0 : i32
    %c0_i32_0 = arith.constant 0 : i32
    return %arg0, %c0_i32 : i32, i32
  }
  func.func @transform_4(%arg0: i32) -> (i32, i32) {
    %c0_i32 = arith.constant 0 : i32
    %c0_i32_0 = arith.constant 0 : i32
    return %arg0, %c0_i32 : i32, i32
  }
}

</mosaic_0001>

<llo_original>
// kernel: tpu_custom_call.1
$region0: #{tpu_custom_call.1}
  #allocation0 [shape = 'u32[]', space=smem, size = 0x4, offset = 0x4, fixed_abs, tag = 'smem constant byte address 0x4 - core index']
  #allocation1 [shape = 'u32[144,128]{1,0:T(1,128)}', space=vmem, size = 0x12000, scoped, tag = 'internal scratch']
  %s0 = inlined_call_operand.vmem [shape: f32[76,1], index: 0, kind: input, shape index: {}]
  %s1 = inlined_call_operand.vmem [shape: bf16[1824,76], index: 1, kind: input, shape index: {}]
  %s2 = inlined_call_operand.vmem [shape: f32[1824,1], index: 2, kind: input, shape index: {}]
  %s3 = inlined_call_operand.vmem [shape: f32[1824,49], index: 3, kind: input, shape index: {}]
  %s4 = inlined_call_operand.vmem [shape: f32[1824,49], index: 4, kind: output, shape index: {}]
  %s5 = sld [smem:[#allocation0]]
  $region26: #{tpu_custom_call.1} parent=0
    _
  %s7 = ssub.s32 1, %s5
  %s8 = scalar_select 0, %s7, %s5
  // Predicated region
  $region2: #{tpu_custom_call.1} parent=0 // pred_check
    _
  $region3: #{tpu_custom_call.1} parent=0 // pred_check_branch
    %10 = sbr.rel (0) target = $region5
  $region4: #{tpu_custom_call.1} parent=0 // pred_region
    _
  $region5: #{tpu_custom_call.1} parent=0 // pred_fallthru
    _
  // Predicated region
  $region6: #{tpu_custom_call.1} parent=0 // pred_check
    _
  $region7: #{tpu_custom_call.1} parent=0 // pred_check_branch
    %12 = sbr.rel (0) target = $region9
  $region8: #{tpu_custom_call.1} parent=0 // pred_region
    _
  $region9: #{tpu_custom_call.1} parent=0 // pred_fallthru
    _
  // Predicated region
  $region10: #{tpu_custom_call.1} parent=0 // pred_check
    _
  $region11: #{tpu_custom_call.1} parent=0 // pred_check_branch
    %14 = sbr.rel (0) target = $region13
  $region12: #{tpu_custom_call.1} parent=0 // pred_region
    _
  $region13: #{tpu_custom_call.1} parent=0 // pred_fallthru
    _
  // Predicated region
  $region14: #{tpu_custom_call.1} parent=0 // pred_check
    _
  $region15: #{tpu_custom_call.1} parent=0 // pred_check_branch
    %16 = sbr.rel (0) target = $region17
  $region16: #{tpu_custom_call.1} parent=0 // pred_region
    _
  $region17: #{tpu_custom_call.1} parent=0 // pred_fallthru
    _
  %v18 = vld [vmem:[%s1] sm:$0xf]
  %v19 = vld [vmem:[%s1 + $0x4] sm:$0xf]
  %v20 = vld [vmem:[%s1 + $0x8] sm:$0xf]
  %v21 = vld [vmem:[%s1 + $0xc] sm:$0xf]
  %v22 = vld [vmem:[%s1 + $0x10] sm:$0xf]
  %v23 = vld [vmem:[%s1 + $0x14] sm:$0xf]
  %v24 = vld [vmem:[%s1 + $0x18] sm:$0xf]
  %v25 = vld [vmem:[%s1 + $0x1c] sm:$0xf]
  %v26 = vld [vmem:[%s1 + $0x20] sm:$0xf]
  %v27 = vld [vmem:[%s1 + $0x24] sm:$0xf]
  %v28 = vld [vmem:[%s1 + $0x28] sm:$0xf]
  %v29 = vld [vmem:[%s1 + $0x2c] sm:$0xf]
  %v30 = vld [vmem:[%s1 + $0x30] sm:$0xf]
  %v31 = vld [vmem:[%s1 + $0x34] sm:$0xf]
  %v32 = vld [vmem:[%s1 + $0x38] sm:$0xf]
  %v33 = vld [vmem:[%s1 + $0x3c] sm:$0xf]
  %v34 = vld [vmem:[%s1 + $0x40] sm:$0xf]
  %v35 = vld [vmem:[%s1 + $0x44] sm:$0xf]
  %v36 = vld [vmem:[%s1 + $0x48] sm:$0xf]
  %v37 = vld [vmem:[%s1 + $0x4c] sm:$0xf]
  %v38 = vld [vmem:[%s1 + $0x50] sm:$0xf]
  %v39 = vld [vmem:[%s1 + $0x54] sm:$0xf]
  %v40 = vld [vmem:[%s1 + $0x58] sm:$0xf]
  %v41 = vld [vmem:[%s1 + $0x5c] sm:$0xf]
  %v42 = vld [vmem:[%s1 + $0x60] sm:$0xf]
  %v43 = vld [vmem:[%s1 + $0x64] sm:$0xf]
  %v44 = vld [vmem:[%s1 + $0x68] sm:$0xf]
  %v45 = vld [vmem:[%s1 + $0x6c] sm:$0xf]
  %v46 = vld [vmem:[%s1 + $0x70] sm:$0xf]
  %v47 = vld [vmem:[%s1 + $0x74] sm:$0xf]
  %v48 = vld [vmem:[%s1 + $0x78] sm:$0xf]
  %v49 = vld [vmem:[%s1 + $0x7c] sm:$0xf]
  %v50 = vld [vmem:[%s1 + $0x80] sm:$0xf]
  %v51 = vld [vmem:[%s1 + $0x84] sm:$0xf]
  %v52 = vld [vmem:[%s1 + $0x88] sm:$0xf]
  %v53 = vld [vmem:[%s1 + $0x8c] sm:$0xf]
  %v54 = vld [vmem:[%s1 + $0x90] sm:$0xf]
  %v55 = vld [vmem:[%s1 + $0x94] sm:$0xf]
  %v56 = vld [vmem:[%s1 + $0x98] sm:$0xf]
  %v57 = vld [vmem:[%s1 + $0x9c] sm:$0xf]
  %v58 = vld [vmem:[%s1 + $0xa0] sm:$0xf]
  %v59 = vld [vmem:[%s1 + $0xa4] sm:$0xf]
  %v60 = vld [vmem:[%s1 + $0xa8] sm:$0xf]
  %v61 = vld [vmem:[%s1 + $0xac] sm:$0xf]
  %v62 = vld [vmem:[%s1 + $0xb0] sm:$0xf]
  %v63 = vld [vmem:[%s1 + $0xb4] sm:$0xf]
  %v64 = vld [vmem:[%s1 + $0xb8] sm:$0xf]
  %v65 = vld [vmem:[%s1 + $0xbc] sm:$0xf]
  %v66 = vld [vmem:[%s1 + $0xc0] sm:$0xf]
  %v67 = vld [vmem:[%s1 + $0xc4] sm:$0xf]
  %v68 = vld [vmem:[%s1 + $0xc8] sm:$0xf]
  %v69 = vld [vmem:[%s1 + $0xcc] sm:$0xf]
  %v70 = vld [vmem:[%s1 + $0xd0] sm:$0xf]
  %v71 = vld [vmem:[%s1 + $0xd4] sm:$0xf]
  %v72 = vld [vmem:[%s1 + $0xd8] sm:$0xf]
  %v73 = vld [vmem:[%s1 + $0xdc] sm:$0xf]
  %v74 = vld [vmem:[%s1 + $0xe0] sm:$0xf]
  %v75 = vld [vmem:[%s1 + $0xe4] sm:$0xf]
  %v76 = vld [vmem:[%s1 + $0xe8] sm:$0xf]
  %v77 = vld [vmem:[%s1 + $0xec] sm:$0xf]
  %v78 = vld [vmem:[%s1 + $0xf0] sm:$0xf]
  %v79 = vld [vmem:[%s1 + $0xf4] sm:$0xf]
  %v80 = vld [vmem:[%s1 + $0xf8] sm:$0xf]
  %v81 = vld [vmem:[%s1 + $0xfc] sm:$0xf]
  %v82 = vld [vmem:[%s1 + $0x100] sm:$0xf]
  %v83 = vld [vmem:[%s1 + $0x104] sm:$0xf]
  %v84 = vld [vmem:[%s1 + $0x108] sm:$0xf]
  %v85 = vld [vmem:[%s1 + $0x10c] sm:$0xf]
  %v86 = vld [vmem:[%s1 + $0x110] sm:$0xf]
  %v87 = vld [vmem:[%s1 + $0x114] sm:$0xf]
  %v88 = vld [vmem:[%s1 + $0x118] sm:$0xf]
  %v89 = vld [vmem:[%s1 + $0x11c] sm:$0xf]
  %v90 = vld [vmem:[%s1 + $0x120] sm:$0xf]
  %v91 = vld [vmem:[%s1 + $0x124] sm:$0xf]
  %v92 = vld [vmem:[%s1 + $0x128] sm:$0xf]
  %v93 = vld [vmem:[%s1 + $0x12c] sm:$0xf]
  %v94 = vld [vmem:[%s1 + $0x130] sm:$0xf]
  %v95 = vld [vmem:[%s1 + $0x134] sm:$0xf]
  %v96 = vld [vmem:[%s1 + $0x138] sm:$0xf]
  %v97 = vld [vmem:[%s1 + $0x13c] sm:$0xf]
  %v98 = vld [vmem:[%s1 + $0x140] sm:$0xf]
  %v99 = vld [vmem:[%s1 + $0x144] sm:$0xf]
  %v100 = vld [vmem:[%s1 + $0x148] sm:$0xf]
  %v101 = vld [vmem:[%s1 + $0x14c] sm:$0xf]
  %v102 = vld [vmem:[%s1 + $0x150] sm:$0xf]
  %v103 = vld [vmem:[%s1 + $0x154] sm:$0xf]
  %v104 = vld [vmem:[%s1 + $0x158] sm:$0xf]
  %v105 = vld [vmem:[%s1 + $0x15c] sm:$0xf]
  %v106 = vld [vmem:[%s1 + $0x160] sm:$0xf]
  %v107 = vld [vmem:[%s1 + $0x164] sm:$0xf]
  %v108 = vld [vmem:[%s1 + $0x168] sm:$0xf]
  %v109 = vld [vmem:[%s1 + $0x16c] sm:$0xf]
  %v110 = vld [vmem:[%s1 + $0x170] sm:$0xf]
  %v111 = vld [vmem:[%s1 + $0x174] sm:$0xf]
  %v112 = vld [vmem:[%s1 + $0x178] sm:$0xf]
  %v113 = vld [vmem:[%s1 + $0x17c] sm:$0xf]
  %v114 = vld [vmem:[%s1 + $0x180] sm:$0xf]
  %v115 = vld [vmem:[%s1 + $0x184] sm:$0xf]
  %v116 = vld [vmem:[%s1 + $0x188] sm:$0xf]
  %v117 = vld [vmem:[%s1 + $0x18c] sm:$0xf]
  %v118 = vld [vmem:[%s1 + $0x190] sm:$0xf]
  %v119 = vld [vmem:[%s1 + $0x194] sm:$0xf]
  %v120 = vld [vmem:[%s1 + $0x198] sm:$0xf]
  %v121 = vld [vmem:[%s1 + $0x19c] sm:$0xf]
  %v122 = vld [vmem:[%s1 + $0x1a0] sm:$0xf]
  %v123 = vld [vmem:[%s1 + $0x1a4] sm:$0xf]
  %v124 = vld [vmem:[%s1 + $0x1a8] sm:$0xf]
  %v125 = vld [vmem:[%s1 + $0x1ac] sm:$0xf]
  %v126 = vld [vmem:[%s1 + $0x1b0] sm:$0xf]
  %v127 = vld [vmem:[%s1 + $0x1b4] sm:$0xf]
  %v128 = vld [vmem:[%s1 + $0x1b8] sm:$0xf]
  %v129 = vld [vmem:[%s1 + $0x1bc] sm:$0xf]
  %v130 = vld [vmem:[%s1 + $0x1c0] sm:$0xf]
  %v131 = vld [vmem:[%s1 + $0x1c4] sm:$0xf]
  %v132 = vld [vmem:[%s1 + $0x1c8] sm:$0xf]
  %v133 = vld [vmem:[%s1 + $0x1cc] sm:$0xf]
  %v134 = vld [vmem:[%s1 + $0x1d0] sm:$0xf]
  %v135 = vld [vmem:[%s1 + $0x1d4] sm:$0xf]
  %v136 = vld [vmem:[%s1 + $0x1d8] sm:$0xf]
  %v137 = vld [vmem:[%s1 + $0x1dc] sm:$0xf]
  %v138 = vld [vmem:[%s1 + $0x1e0] sm:$0xf]
  %v139 = vld [vmem:[%s1 + $0x1e4] sm:$0xf]
  %v140 = vld [vmem:[%s1 + $0x1e8] sm:$0xf]
  %v141 = vld [vmem:[%s1 + $0x1ec] sm:$0xf]
  %v142 = vld [vmem:[%s1 + $0x1f0] sm:$0xf]
  %v143 = vld [vmem:[%s1 + $0x1f4] sm:$0xf]
  %v144 = vld [vmem:[%s1 + $0x1f8] sm:$0xf]
  %v145 = vld [vmem:[%s1 + $0x1fc] sm:$0xf]
  %v146 = vld [vmem:[%s1 + $0x200] sm:$0xf]
  %v147 = vld [vmem:[%s1 + $0x204] sm:$0xf]
  %v148 = vld [vmem:[%s1 + $0x208] sm:$0xf]
  %v149 = vld [vmem:[%s1 + $0x20c] sm:$0xf]
  %v150 = vld [vmem:[%s1 + $0x210] sm:$0xf]
  %v151 = vld [vmem:[%s1 + $0x214] sm:$0xf]
  %v152 = vld [vmem:[%s1 + $0x218] sm:$0xf]
  %v153 = vld [vmem:[%s1 + $0x21c] sm:$0xf]
  %v154 = vld [vmem:[%s1 + $0x220] sm:$0xf]
  %v155 = vld [vmem:[%s1 + $0x224] sm:$0xf]
  %v156 = vld [vmem:[%s1 + $0x228] sm:$0xf]
  %v157 = vld [vmem:[%s1 + $0x22c] sm:$0xf]
  %v158 = vld [vmem:[%s1 + $0x230] sm:$0xf]
  %v159 = vld [vmem:[%s1 + $0x234] sm:$0xf]
  %v160 = vld [vmem:[%s1 + $0x238] sm:$0xf]
  %v161 = vld [vmem:[%s1 + $0x23c] sm:$0xf]
  %v162 = vld [vmem:[%s1 + $0x240] sm:$0xf]
  %v163 = vld [vmem:[%s1 + $0x244] sm:$0xf]
  %v164 = vld [vmem:[%s1 + $0x248] sm:$0xf]
  %v165 = vld [vmem:[%s1 + $0x24c] sm:$0xf]
  %v166 = vld [vmem:[%s1 + $0x250] sm:$0xf]
  %v167 = vld [vmem:[%s1 + $0x254] sm:$0xf]
  %v168 = vld [vmem:[%s1 + $0x258] sm:$0xf]
  %v169 = vld [vmem:[%s1 + $0x25c] sm:$0xf]
  %v170 = vld [vmem:[%s1 + $0x260] sm:$0xf]
  %v171 = vld [vmem:[%s1 + $0x264] sm:$0xf]
  %v172 = vld [vmem:[%s1 + $0x268] sm:$0xf]
  %v173 = vld [vmem:[%s1 + $0x26c] sm:$0xf]
  %v174 = vld [vmem:[%s1 + $0x270] sm:$0xf]
  %v175 = vld [vmem:[%s1 + $0x274] sm:$0xf]
  %v176 = vld [vmem:[%s1 + $0x278] sm:$0xf]
  %v177 = vld [vmem:[%s1 + $0x27c] sm:$0xf]
  %v178 = vld [vmem:[%s1 + $0x280] sm:$0xf]
  %v179 = vld [vmem:[%s1 + $0x284] sm:$0xf]
  %v180 = vld [vmem:[%s1 + $0x288] sm:$0xf]
  %v181 = vld [vmem:[%s1 + $0x28c] sm:$0xf]
  %v182 = vld [vmem:[%s1 + $0x290] sm:$0xf]
  %v183 = vld [vmem:[%s1 + $0x294] sm:$0xf]
  %v184 = vld [vmem:[%s1 + $0x298] sm:$0xf]
  %v185 = vld [vmem:[%s1 + $0x29c] sm:$0xf]
  %v186 = vld [vmem:[%s1 + $0x2a0] sm:$0xf]
  %v187 = vld [vmem:[%s1 + $0x2a4] sm:$0xf]
  %v188 = vld [vmem:[%s1 + $0x2a8] sm:$0xf]
  %v189 = vld [vmem:[%s1 + $0x2ac] sm:$0xf]
  %v190 = vld [vmem:[%s1 + $0x2b0] sm:$0xf]
  %v191 = vld [vmem:[%s1 + $0x2b4] sm:$0xf]
  %v192 = vld [vmem:[%s1 + $0x2b8] sm:$0xf]
  %v193 = vld [vmem:[%s1 + $0x2bc] sm:$0xf]
  %v194 = vld [vmem:[%s1 + $0x2c0] sm:$0xf]
  %v195 = vld [vmem:[%s1 + $0x2c4] sm:$0xf]
  %v196 = vld [vmem:[%s1 + $0x2c8] sm:$0xf]
  %v197 = vld [vmem:[%s1 + $0x2cc] sm:$0xf]
  %v198 = vld [vmem:[%s1 + $0x2d0] sm:$0xf]
  %v199 = vld [vmem:[%s1 + $0x2d4] sm:$0xf]
  %v200 = vld [vmem:[%s1 + $0x2d8] sm:$0xf]
  %v201 = vld [vmem:[%s1 + $0x2dc] sm:$0xf]
  %v202 = vld [vmem:[%s1 + $0x2e0] sm:$0xf]
  %v203 = vld [vmem:[%s1 + $0x2e4] sm:$0xf]
  %v204 = vld [vmem:[%s1 + $0x2e8] sm:$0xf]
  %v205 = vld [vmem:[%s1 + $0x2ec] sm:$0xf]
  %v206 = vld [vmem:[%s1 + $0x2f0] sm:$0xf]
  %v207 = vld [vmem:[%s1 + $0x2f4] sm:$0xf]
  %v208 = vld [vmem:[%s1 + $0x2f8] sm:$0xf]
  %v209 = vld [vmem:[%s1 + $0x2fc] sm:$0xf]
  %v210 = vld [vmem:[%s1 + $0x300] sm:$0xf]
  %v211 = vld [vmem:[%s1 + $0x304] sm:$0xf]
  %v212 = vld [vmem:[%s1 + $0x308] sm:$0xf]
  %v213 = vld [vmem:[%s1 + $0x30c] sm:$0xf]
  %v214 = vld [vmem:[%s1 + $0x310] sm:$0xf]
  %v215 = vld [vmem:[%s1 + $0x314] sm:$0xf]
  %v216 = vld [vmem:[%s1 + $0x318] sm:$0xf]
  %v217 = vld [vmem:[%s1 + $0x31c] sm:$0xf]
  %v218 = vld [vmem:[%s1 + $0x320] sm:$0xf]
  %v219 = vld [vmem:[%s1 + $0x324] sm:$0xf]
  %v220 = vld [vmem:[%s1 + $0x328] sm:$0xf]
  %v221 = vld [vmem:[%s1 + $0x32c] sm:$0xf]
  %v222 = vld [vmem:[%s1 + $0x330] sm:$0xf]
  %v223 = vld [vmem:[%s1 + $0x334] sm:$0xf]
  %v224 = vld [vmem:[%s1 + $0x338] sm:$0xf]
  %v225 = vld [vmem:[%s1 + $0x33c] sm:$0xf]
  %v226 = vld [vmem:[%s1 + $0x340] sm:$0xf]
  %v227 = vld [vmem:[%s1 + $0x344] sm:$0xf]
  %v228 = vld [vmem:[%s1 + $0x348] sm:$0xf]
  %v229 = vld [vmem:[%s1 + $0x34c] sm:$0xf]
  %v230 = vld [vmem:[%s1 + $0x350] sm:$0xf]
  %v231 = vld [vmem:[%s1 + $0x354] sm:$0xf]
  %v232 = vld [vmem:[%s1 + $0x358] sm:$0xf]
  %v233 = vld [vmem:[%s1 + $0x35c] sm:$0xf]
  %v234 = vld [vmem:[%s1 + $0x360] sm:$0xf]
  %v235 = vld [vmem:[%s1 + $0x364] sm:$0xf]
  %v236 = vld [vmem:[%s1 + $0x368] sm:$0xf]
  %v237 = vld [vmem:[%s1 + $0x36c] sm:$0xf]
  %v238 = vld [vmem:[%s1 + $0x370] sm:$0xf]
  %v239 = vld [vmem:[%s1 + $0x374] sm:$0xf]
  %v240 = vld [vmem:[%s1 + $0x378] sm:$0xf]
  %v241 = vld [vmem:[%s1 + $0x37c] sm:$0xf]
  %v242 = vld [vmem:[%s1 + $0x380] sm:$0xf]
  %v243 = vld [vmem:[%s1 + $0x384] sm:$0xf]
  %v244 = vld [vmem:[%s1 + $0x388] sm:$0xf]
  %v245 = vld [vmem:[%s1 + $0x38c] sm:$0xf]
  %v246 = vld [vmem:[%s0] sm:$0xff]
  %v247 = vld [vmem:[%s0 + $0x8] sm:$0xff]
  %v248 = vld [vmem:[%s0 + $0x10] sm:$0xff]
  %v249 = vld [vmem:[%s0 + $0x18] sm:$0xff]
  %v250 = vld [vmem:[%s0 + $0x20] sm:$0xff]
  %v251 = vld [vmem:[%s0 + $0x28] sm:$0xff]
  %v252 = vld [vmem:[%s0 + $0x30] sm:$0xff]
  %v253 = vld [vmem:[%s0 + $0x38] sm:$0xff]
  %v254 = vld [vmem:[%s0 + $0x40] sm:$0xff]
  %v255 = vld [vmem:[%s0 + $0x48] sm:$0xf]
  %v256 = vpack.c.bf16 %v247, %v246
  %v257 = vpack.c.bf16 %v249, %v248
  %v258 = vpack.c.bf16 %v251, %v250
  %v259 = vpack.c.bf16 %v253, %v252
  %v260 = vpack.c.bf16 %v255, %v254
  %v261 = vld [vmem:[%s2] sm:$0xff]
  %v262 = vld [vmem:[%s2 + $0x8] sm:$0xff]
  %v263 = vld [vmem:[%s2 + $0x10] sm:$0xff]
  %v264 = vld [vmem:[%s2 + $0x18] sm:$0xff]
  %v265 = vld [vmem:[%s2 + $0x20] sm:$0xff]
  %v266 = vld [vmem:[%s2 + $0x28] sm:$0xff]
  %v267 = vld [vmem:[%s2 + $0x30] sm:$0xff]
  %v268 = vld [vmem:[%s2 + $0x38] sm:$0xff]
  %v269 = vld [vmem:[%s2 + $0x40] sm:$0xff]
  %v270 = vld [vmem:[%s2 + $0x48] sm:$0xff]
  %v271 = vld [vmem:[%s2 + $0x50] sm:$0xff]
  %v272 = vld [vmem:[%s2 + $0x58] sm:$0xff]
  %v273 = vld [vmem:[%s2 + $0x60] sm:$0xff]
  %v274 = vld [vmem:[%s2 + $0x68] sm:$0xff]
  %v275 = vld [vmem:[%s2 + $0x70] sm:$0xff]
  %v276 = vld [vmem:[%s2 + $0x78] sm:$0xff]
  %v277 = vld [vmem:[%s2 + $0x80] sm:$0xff]
  %v278 = vld [vmem:[%s2 + $0x88] sm:$0xff]
  %v279 = vld [vmem:[%s2 + $0x90] sm:$0xff]
  %v280 = vld [vmem:[%s2 + $0x98] sm:$0xff]
  %v281 = vld [vmem:[%s2 + $0xa0] sm:$0xff]
  %v282 = vld [vmem:[%s2 + $0xa8] sm:$0xff]
  %v283 = vld [vmem:[%s2 + $0xb0] sm:$0xff]
  %v284 = vld [vmem:[%s2 + $0xb8] sm:$0xff]
  %v285 = vld [vmem:[%s2 + $0xc0] sm:$0xff]
  %v286 = vld [vmem:[%s2 + $0xc8] sm:$0xff]
  %v287 = vld [vmem:[%s2 + $0xd0] sm:$0xff]
  %v288 = vld [vmem:[%s2 + $0xd8] sm:$0xff]
  %v289 = vld [vmem:[%s2 + $0xe0] sm:$0xff]
  %v290 = vld [vmem:[%s2 + $0xe8] sm:$0xff]
  %v291 = vld [vmem:[%s2 + $0xf0] sm:$0xff]
  %v292 = vld [vmem:[%s2 + $0xf8] sm:$0xff]
  %v293 = vld [vmem:[%s2 + $0x100] sm:$0xff]
  %v294 = vld [vmem:[%s2 + $0x108] sm:$0xff]
  %v295 = vld [vmem:[%s2 + $0x110] sm:$0xff]
  %v296 = vld [vmem:[%s2 + $0x118] sm:$0xff]
  %v297 = vld [vmem:[%s2 + $0x120] sm:$0xff]
  %v298 = vld [vmem:[%s2 + $0x128] sm:$0xff]
  %v299 = vld [vmem:[%s2 + $0x130] sm:$0xff]
  %v300 = vld [vmem:[%s2 + $0x138] sm:$0xff]
  %v301 = vld [vmem:[%s2 + $0x140] sm:$0xff]
  %v302 = vld [vmem:[%s2 + $0x148] sm:$0xff]
  %v303 = vld [vmem:[%s2 + $0x150] sm:$0xff]
  %v304 = vld [vmem:[%s2 + $0x158] sm:$0xff]
  %v305 = vld [vmem:[%s2 + $0x160] sm:$0xff]
  %v306 = vld [vmem:[%s2 + $0x168] sm:$0xff]
  %v307 = vld [vmem:[%s2 + $0x170] sm:$0xff]
  %v308 = vld [vmem:[%s2 + $0x178] sm:$0xff]
  %v309 = vld [vmem:[%s2 + $0x180] sm:$0xff]
  %v310 = vld [vmem:[%s2 + $0x188] sm:$0xff]
  %v311 = vld [vmem:[%s2 + $0x190] sm:$0xff]
  %v312 = vld [vmem:[%s2 + $0x198] sm:$0xff]
  %v313 = vld [vmem:[%s2 + $0x1a0] sm:$0xff]
  %v314 = vld [vmem:[%s2 + $0x1a8] sm:$0xff]
  %v315 = vld [vmem:[%s2 + $0x1b0] sm:$0xff]
  %v316 = vld [vmem:[%s2 + $0x1b8] sm:$0xff]
  %v317 = vld [vmem:[%s2 + $0x1c0] sm:$0xff]
  %v318 = vld [vmem:[%s2 + $0x1c8] sm:$0xff]
  %v319 = vld [vmem:[%s2 + $0x1d0] sm:$0xff]
  %v320 = vld [vmem:[%s2 + $0x1d8] sm:$0xff]
  %v321 = vld [vmem:[%s2 + $0x1e0] sm:$0xff]
  %v322 = vld [vmem:[%s2 + $0x1e8] sm:$0xff]
  %v323 = vld [vmem:[%s2 + $0x1f0] sm:$0xff]
  %v324 = vld [vmem:[%s2 + $0x1f8] sm:$0xff]
  %v325 = vld [vmem:[%s2 + $0x200] sm:$0xff]
  %v326 = vld [vmem:[%s2 + $0x208] sm:$0xff]
  %v327 = vld [vmem:[%s2 + $0x210] sm:$0xff]
  %v328 = vld [vmem:[%s2 + $0x218] sm:$0xff]
  %v329 = vld [vmem:[%s2 + $0x220] sm:$0xff]
  %v330 = vld [vmem:[%s2 + $0x228] sm:$0xff]
  %v331 = vld [vmem:[%s2 + $0x230] sm:$0xff]
  %v332 = vld [vmem:[%s2 + $0x238] sm:$0xff]
  %v333 = vld [vmem:[%s2 + $0x240] sm:$0xff]
  %v334 = vld [vmem:[%s2 + $0x248] sm:$0xff]
  %v335 = vld [vmem:[%s2 + $0x250] sm:$0xff]
  %v336 = vld [vmem:[%s2 + $0x258] sm:$0xff]
  %v337 = vld [vmem:[%s2 + $0x260] sm:$0xff]
  %v338 = vld [vmem:[%s2 + $0x268] sm:$0xff]
  %v339 = vld [vmem:[%s2 + $0x270] sm:$0xff]
  %v340 = vld [vmem:[%s2 + $0x278] sm:$0xff]
  %v341 = vld [vmem:[%s2 + $0x280] sm:$0xff]
  %v342 = vld [vmem:[%s2 + $0x288] sm:$0xff]
  %v343 = vld [vmem:[%s2 + $0x290] sm:$0xff]
  %v344 = vld [vmem:[%s2 + $0x298] sm:$0xff]
  %v345 = vld [vmem:[%s2 + $0x2a0] sm:$0xff]
  %v346 = vld [vmem:[%s2 + $0x2a8] sm:$0xff]
  %v347 = vld [vmem:[%s2 + $0x2b0] sm:$0xff]
  %v348 = vld [vmem:[%s2 + $0x2b8] sm:$0xff]
  %v349 = vld [vmem:[%s2 + $0x2c0] sm:$0xff]
  %v350 = vld [vmem:[%s2 + $0x2c8] sm:$0xff]
  %v351 = vld [vmem:[%s2 + $0x2d0] sm:$0xff]
  %v352 = vld [vmem:[%s2 + $0x2d8] sm:$0xff]
  %v353 = vld [vmem:[%s2 + $0x2e0] sm:$0xff]
  %v354 = vld [vmem:[%s2 + $0x2e8] sm:$0xff]
  %v355 = vld [vmem:[%s2 + $0x2f0] sm:$0xff]
  %v356 = vld [vmem:[%s2 + $0x2f8] sm:$0xff]
  %v357 = vld [vmem:[%s2 + $0x300] sm:$0xff]
  %v358 = vld [vmem:[%s2 + $0x308] sm:$0xff]
  %v359 = vld [vmem:[%s2 + $0x310] sm:$0xff]
  %v360 = vld [vmem:[%s2 + $0x318] sm:$0xff]
  %v361 = vld [vmem:[%s2 + $0x320] sm:$0xff]
  %v362 = vld [vmem:[%s2 + $0x328] sm:$0xff]
  %v363 = vld [vmem:[%s2 + $0x330] sm:$0xff]
  %v364 = vld [vmem:[%s2 + $0x338] sm:$0xff]
  %v365 = vld [vmem:[%s2 + $0x340] sm:$0xff]
  %v366 = vld [vmem:[%s2 + $0x348] sm:$0xff]
  %v367 = vld [vmem:[%s2 + $0x350] sm:$0xff]
  %v368 = vld [vmem:[%s2 + $0x358] sm:$0xff]
  %v369 = vld [vmem:[%s2 + $0x360] sm:$0xff]
  %v370 = vld [vmem:[%s2 + $0x368] sm:$0xff]
  %v371 = vld [vmem:[%s2 + $0x370] sm:$0xff]
  %v372 = vld [vmem:[%s2 + $0x378] sm:$0xff]
  %v373 = vld [vmem:[%s2 + $0x380] sm:$0xff]
  %v374 = vld [vmem:[%s2 + $0x388] sm:$0xff]
  %v375 = vld [vmem:[%s2 + $0x390] sm:$0xff]
  %v376 = vld [vmem:[%s2 + $0x398] sm:$0xff]
  %v377 = vld [vmem:[%s2 + $0x3a0] sm:$0xff]
  %v378 = vld [vmem:[%s2 + $0x3a8] sm:$0xff]
  %v379 = vld [vmem:[%s2 + $0x3b0] sm:$0xff]
  %v380 = vld [vmem:[%s2 + $0x3b8] sm:$0xff]
  %v381 = vld [vmem:[%s2 + $0x3c0] sm:$0xff]
  %v382 = vld [vmem:[%s2 + $0x3c8] sm:$0xff]
  %v383 = vld [vmem:[%s2 + $0x3d0] sm:$0xff]
  %v384 = vld [vmem:[%s2 + $0x3d8] sm:$0xff]
  %v385 = vld [vmem:[%s2 + $0x3e0] sm:$0xff]
  %v386 = vld [vmem:[%s2 + $0x3e8] sm:$0xff]
  %v387 = vld [vmem:[%s2 + $0x3f0] sm:$0xff]
  %v388 = vld [vmem:[%s2 + $0x3f8] sm:$0xff]
  %v389 = vld [vmem:[%s2 + $0x400] sm:$0xff]
  %v390 = vld [vmem:[%s2 + $0x408] sm:$0xff]
  %v391 = vld [vmem:[%s2 + $0x410] sm:$0xff]
  %v392 = vld [vmem:[%s2 + $0x418] sm:$0xff]
  %v393 = vld [vmem:[%s2 + $0x420] sm:$0xff]
  %v394 = vld [vmem:[%s2 + $0x428] sm:$0xff]
  %v395 = vld [vmem:[%s2 + $0x430] sm:$0xff]
  %v396 = vld [vmem:[%s2 + $0x438] sm:$0xff]
  %v397 = vld [vmem:[%s2 + $0x440] sm:$0xff]
  %v398 = vld [vmem:[%s2 + $0x448] sm:$0xff]
  %v399 = vld [vmem:[%s2 + $0x450] sm:$0xff]
  %v400 = vld [vmem:[%s2 + $0x458] sm:$0xff]
  %v401 = vld [vmem:[%s2 + $0x460] sm:$0xff]
  %v402 = vld [vmem:[%s2 + $0x468] sm:$0xff]
  %v403 = vld [vmem:[%s2 + $0x470] sm:$0xff]
  %v404 = vld [vmem:[%s2 + $0x478] sm:$0xff]
  %v405 = vld [vmem:[%s2 + $0x480] sm:$0xff]
  %v406 = vld [vmem:[%s2 + $0x488] sm:$0xff]
  %v407 = vld [vmem:[%s2 + $0x490] sm:$0xff]
  %v408 = vld [vmem:[%s2 + $0x498] sm:$0xff]
  %v409 = vld [vmem:[%s2 + $0x4a0] sm:$0xff]
  %v410 = vld [vmem:[%s2 + $0x4a8] sm:$0xff]
  %v411 = vld [vmem:[%s2 + $0x4b0] sm:$0xff]
  %v412 = vld [vmem:[%s2 + $0x4b8] sm:$0xff]
  %v413 = vld [vmem:[%s2 + $0x4c0] sm:$0xff]
  %v414 = vld [vmem:[%s2 + $0x4c8] sm:$0xff]
  %v415 = vld [vmem:[%s2 + $0x4d0] sm:$0xff]
  %v416 = vld [vmem:[%s2 + $0x4d8] sm:$0xff]
  %v417 = vld [vmem:[%s2 + $0x4e0] sm:$0xff]
  %v418 = vld [vmem:[%s2 + $0x4e8] sm:$0xff]
  %v419 = vld [vmem:[%s2 + $0x4f0] sm:$0xff]
  %v420 = vld [vmem:[%s2 + $0x4f8] sm:$0xff]
  %v421 = vld [vmem:[%s2 + $0x500] sm:$0xff]
  %v422 = vld [vmem:[%s2 + $0x508] sm:$0xff]
  %v423 = vld [vmem:[%s2 + $0x510] sm:$0xff]
  %v424 = vld [vmem:[%s2 + $0x518] sm:$0xff]
  %v425 = vld [vmem:[%s2 + $0x520] sm:$0xff]
  %v426 = vld [vmem:[%s2 + $0x528] sm:$0xff]
  %v427 = vld [vmem:[%s2 + $0x530] sm:$0xff]
  %v428 = vld [vmem:[%s2 + $0x538] sm:$0xff]
  %v429 = vld [vmem:[%s2 + $0x540] sm:$0xff]
  %v430 = vld [vmem:[%s2 + $0x548] sm:$0xff]
  %v431 = vld [vmem:[%s2 + $0x550] sm:$0xff]
  %v432 = vld [vmem:[%s2 + $0x558] sm:$0xff]
  %v433 = vld [vmem:[%s2 + $0x560] sm:$0xff]
  %v434 = vld [vmem:[%s2 + $0x568] sm:$0xff]
  %v435 = vld [vmem:[%s2 + $0x570] sm:$0xff]
  %v436 = vld [vmem:[%s2 + $0x578] sm:$0xff]
  %v437 = vld [vmem:[%s2 + $0x580] sm:$0xff]
  %v438 = vld [vmem:[%s2 + $0x588] sm:$0xff]
  %v439 = vld [vmem:[%s2 + $0x590] sm:$0xff]
  %v440 = vld [vmem:[%s2 + $0x598] sm:$0xff]
  %v441 = vld [vmem:[%s2 + $0x5a0] sm:$0xff]
  %v442 = vld [vmem:[%s2 + $0x5a8] sm:$0xff]
  %v443 = vld [vmem:[%s2 + $0x5b0] sm:$0xff]
  %v444 = vld [vmem:[%s2 + $0x5b8] sm:$0xff]
  %v445 = vld [vmem:[%s2 + $0x5c0] sm:$0xff]
  %v446 = vld [vmem:[%s2 + $0x5c8] sm:$0xff]
  %v447 = vld [vmem:[%s2 + $0x5d0] sm:$0xff]
  %v448 = vld [vmem:[%s2 + $0x5d8] sm:$0xff]
  %v449 = vld [vmem:[%s2 + $0x5e0] sm:$0xff]
  %v450 = vld [vmem:[%s2 + $0x5e8] sm:$0xff]
  %v451 = vld [vmem:[%s2 + $0x5f0] sm:$0xff]
  %v452 = vld [vmem:[%s2 + $0x5f8] sm:$0xff]
  %v453 = vld [vmem:[%s2 + $0x600] sm:$0xff]
  %v454 = vld [vmem:[%s2 + $0x608] sm:$0xff]
  %v455 = vld [vmem:[%s2 + $0x610] sm:$0xff]
  %v456 = vld [vmem:[%s2 + $0x618] sm:$0xff]
  %v457 = vld [vmem:[%s2 + $0x620] sm:$0xff]
  %v458 = vld [vmem:[%s2 + $0x628] sm:$0xff]
  %v459 = vld [vmem:[%s2 + $0x630] sm:$0xff]
  %v460 = vld [vmem:[%s2 + $0x638] sm:$0xff]
  %v461 = vld [vmem:[%s2 + $0x640] sm:$0xff]
  %v462 = vld [vmem:[%s2 + $0x648] sm:$0xff]
  %v463 = vld [vmem:[%s2 + $0x650] sm:$0xff]
  %v464 = vld [vmem:[%s2 + $0x658] sm:$0xff]
  %v465 = vld [vmem:[%s2 + $0x660] sm:$0xff]
  %v466 = vld [vmem:[%s2 + $0x668] sm:$0xff]
  %v467 = vld [vmem:[%s2 + $0x670] sm:$0xff]
  %v468 = vld [vmem:[%s2 + $0x678] sm:$0xff]
  %v469 = vld [vmem:[%s2 + $0x680] sm:$0xff]
  %v470 = vld [vmem:[%s2 + $0x688] sm:$0xff]
  %v471 = vld [vmem:[%s2 + $0x690] sm:$0xff]
  %v472 = vld [vmem:[%s2 + $0x698] sm:$0xff]
  %v473 = vld [vmem:[%s2 + $0x6a0] sm:$0xff]
  %v474 = vld [vmem:[%s2 + $0x6a8] sm:$0xff]
  %v475 = vld [vmem:[%s2 + $0x6b0] sm:$0xff]
  %v476 = vld [vmem:[%s2 + $0x6b8] sm:$0xff]
  %v477 = vld [vmem:[%s2 + $0x6c0] sm:$0xff]
  %v478 = vld [vmem:[%s2 + $0x6c8] sm:$0xff]
  %v479 = vld [vmem:[%s2 + $0x6d0] sm:$0xff]
  %v480 = vld [vmem:[%s2 + $0x6d8] sm:$0xff]
  %v481 = vld [vmem:[%s2 + $0x6e0] sm:$0xff]
  %v482 = vld [vmem:[%s2 + $0x6e8] sm:$0xff]
  %v483 = vld [vmem:[%s2 + $0x6f0] sm:$0xff]
  %v484 = vld [vmem:[%s2 + $0x6f8] sm:$0xff]
  %v485 = vld [vmem:[%s2 + $0x700] sm:$0xff]
  %v486 = vld [vmem:[%s2 + $0x708] sm:$0xff]
  %v487 = vld [vmem:[%s2 + $0x710] sm:$0xff]
  %v488 = vld [vmem:[%s2 + $0x718] sm:$0xff]
  %v717 = vunpack.c.l.b16 %v18
  %v718 = vunpack.c.l.b16 %v19
  %v719 = vunpack.c.l.b16 %v20
  %v720 = vunpack.c.l.b16 %v21
  %v721 = vunpack.c.l.b16 %v22
  %v722 = vunpack.c.l.b16 %v23
  %v723 = vunpack.c.l.b16 %v24
  %v724 = vunpack.c.l.b16 %v25
  %v725 = vunpack.c.l.b16 %v26
  %v726 = vunpack.c.l.b16 %v27
  %v727 = vunpack.c.l.b16 %v28
  %v728 = vunpack.c.l.b16 %v29
  %v729 = vunpack.c.l.b16 %v30
  %v730 = vunpack.c.l.b16 %v31
  %v731 = vunpack.c.l.b16 %v32
  %v732 = vunpack.c.l.b16 %v33
  %v733 = vunpack.c.l.b16 %v34
  %v734 = vunpack.c.l.b16 %v35
  %v735 = vunpack.c.l.b16 %v36
  %v736 = vunpack.c.l.b16 %v37
  %v737 = vunpack.c.l.b16 %v38
  %v738 = vunpack.c.l.b16 %v39
  %v739 = vunpack.c.l.b16 %v40
  %v740 = vunpack.c.l.b16 %v41
  %v741 = vunpack.c.l.b16 %v42
  %v742 = vunpack.c.l.b16 %v43
  %v743 = vunpack.c.l.b16 %v44
  %v744 = vunpack.c.l.b16 %v45
  %v745 = vunpack.c.l.b16 %v46
  %v746 = vunpack.c.l.b16 %v47
  %v747 = vunpack.c.l.b16 %v48
  %v748 = vunpack.c.l.b16 %v49
  %v749 = vunpack.c.l.b16 %v50
  %v750 = vunpack.c.l.b16 %v51
  %v751 = vunpack.c.l.b16 %v52
  %v752 = vunpack.c.l.b16 %v53
  %v753 = vunpack.c.l.b16 %v54
  %v754 = vunpack.c.l.b16 %v55
  %v755 = vunpack.c.l.b16 %v56
  %v756 = vunpack.c.l.b16 %v57
  %v757 = vunpack.c.l.b16 %v58
  %v758 = vunpack.c.l.b16 %v59
  %v759 = vunpack.c.l.b16 %v60
  %v760 = vunpack.c.l.b16 %v61
  %v761 = vunpack.c.l.b16 %v62
  %v762 = vunpack.c.l.b16 %v63
  %v763 = vunpack.c.l.b16 %v64
  %v764 = vunpack.c.l.b16 %v65
  %v765 = vunpack.c.l.b16 %v66
  %v766 = vunpack.c.l.b16 %v67
  %v767 = vunpack.c.l.b16 %v68
  %v768 = vunpack.c.l.b16 %v69
  %v769 = vunpack.c.l.b16 %v70
  %v770 = vunpack.c.l.b16 %v71
  %v771 = vunpack.c.l.b16 %v72
  %v772 = vunpack.c.l.b16 %v73
  %v773 = vunpack.c.l.b16 %v74
  %v774 = vunpack.c.l.b16 %v75
  %v775 = vunpack.c.l.b16 %v76
  %v776 = vunpack.c.l.b16 %v77
  %v777 = vunpack.c.l.b16 %v78
  %v778 = vunpack.c.l.b16 %v79
  %v779 = vunpack.c.l.b16 %v80
  %v780 = vunpack.c.l.b16 %v81
  %v781 = vunpack.c.l.b16 %v82
  %v782 = vunpack.c.l.b16 %v83
  %v783 = vunpack.c.l.b16 %v84
  %v784 = vunpack.c.l.b16 %v85
  %v785 = vunpack.c.l.b16 %v86
  %v786 = vunpack.c.l.b16 %v87
  %v787 = vunpack.c.l.b16 %v88
  %v788 = vunpack.c.l.b16 %v89
  %v789 = vunpack.c.l.b16 %v90
  %v790 = vunpack.c.l.b16 %v91
  %v791 = vunpack.c.l.b16 %v92
  %v792 = vunpack.c.l.b16 %v93
  %v793 = vunpack.c.l.b16 %v94
  %v794 = vunpack.c.l.b16 %v95
  %v795 = vunpack.c.l.b16 %v96
  %v796 = vunpack.c.l.b16 %v97
  %v797 = vunpack.c.l.b16 %v98
  %v798 = vunpack.c.l.b16 %v99
  %v799 = vunpack.c.l.b16 %v100
  %v800 = vunpack.c.l.b16 %v101
  %v801 = vunpack.c.l.b16 %v102
  %v802 = vunpack.c.l.b16 %v103
  %v803 = vunpack.c.l.b16 %v104
  %v804 = vunpack.c.l.b16 %v105
  %v805 = vunpack.c.l.b16 %v106
  %v806 = vunpack.c.l.b16 %v107
  %v807 = vunpack.c.l.b16 %v108
  %v808 = vunpack.c.l.b16 %v109
  %v809 = vunpack.c.l.b16 %v110
  %v810 = vunpack.c.l.b16 %v111
  %v811 = vunpack.c.l.b16 %v112
  %v812 = vunpack.c.l.b16 %v113
  %v813 = vunpack.c.l.b16 %v114
  %v814 = vunpack.c.l.b16 %v115
  %v815 = vunpack.c.l.b16 %v116
  %v816 = vunpack.c.l.b16 %v117
  %v817 = vunpack.c.l.b16 %v118
  %v818 = vunpack.c.l.b16 %v119
  %v819 = vunpack.c.l.b16 %v120
  %v820 = vunpack.c.l.b16 %v121
  %v821 = vunpack.c.l.b16 %v122
  %v822 = vunpack.c.l.b16 %v123
  %v823 = vunpack.c.l.b16 %v124
  %v824 = vunpack.c.l.b16 %v125
  %v825 = vunpack.c.l.b16 %v126
  %v826 = vunpack.c.l.b16 %v127
  %v827 = vunpack.c.l.b16 %v128
  %v828 = vunpack.c.l.b16 %v129
  %v829 = vunpack.c.l.b16 %v130
  %v830 = vunpack.c.l.b16 %v131
  %v831 = vunpack.c.l.b16 %v132
  %v832 = vunpack.c.l.b16 %v133
  %v833 = vunpack.c.l.b16 %v134
  %v834 = vunpack.c.l.b16 %v135
  %v835 = vunpack.c.l.b16 %v136
  %v836 = vunpack.c.l.b16 %v137
  %v837 = vunpack.c.l.b16 %v138
  %v838 = vunpack.c.l.b16 %v139
  %v839 = vunpack.c.l.b16 %v140
  %v840 = vunpack.c.l.b16 %v141
  %v841 = vunpack.c.l.b16 %v142
  %v842 = vunpack.c.l.b16 %v143
  %v843 = vunpack.c.l.b16 %v144
  %v844 = vunpack.c.l.b16 %v145
  %v845 = vunpack.c.l.b16 %v146
  %v846 = vunpack.c.l.b16 %v147
  %v847 = vunpack.c.l.b16 %v148
  %v848 = vunpack.c.l.b16 %v149
  %v849 = vunpack.c.l.b16 %v150
  %v850 = vunpack.c.l.b16 %v151
  %v851 = vunpack.c.l.b16 %v152
  %v852 = vunpack.c.l.b16 %v153
  %v853 = vunpack.c.l.b16 %v154
  %v854 = vunpack.c.l.b16 %v155
  %v855 = vunpack.c.l.b16 %v156
  %v856 = vunpack.c.l.b16 %v157
  %v857 = vunpack.c.l.b16 %v158
  %v858 = vunpack.c.l.b16 %v159
  %v859 = vunpack.c.l.b16 %v160
  %v860 = vunpack.c.l.b16 %v161
  %v861 = vunpack.c.l.b16 %v162
  %v862 = vunpack.c.l.b16 %v163
  %v863 = vunpack.c.l.b16 %v164
  %v864 = vunpack.c.l.b16 %v165
  %v865 = vunpack.c.l.b16 %v166
  %v866 = vunpack.c.l.b16 %v167
  %v867 = vunpack.c.l.b16 %v168
  %v868 = vunpack.c.l.b16 %v169
  %v869 = vunpack.c.l.b16 %v170
  %v870 = vunpack.c.l.b16 %v171
  %v871 = vunpack.c.l.b16 %v172
  %v872 = vunpack.c.l.b16 %v173
  %v873 = vunpack.c.l.b16 %v174
  %v874 = vunpack.c.l.b16 %v175
  %v875 = vunpack.c.l.b16 %v176
  %v876 = vunpack.c.l.b16 %v177
  %v877 = vunpack.c.l.b16 %v178
  %v878 = vunpack.c.l.b16 %v179
  %v879 = vunpack.c.l.b16 %v180
  %v880 = vunpack.c.l.b16 %v181
  %v881 = vunpack.c.l.b16 %v182
  %v882 = vunpack.c.l.b16 %v183
  %v883 = vunpack.c.l.b16 %v184
  %v884 = vunpack.c.l.b16 %v185
  %v885 = vunpack.c.l.b16 %v186
  %v886 = vunpack.c.l.b16 %v187
  %v887 = vunpack.c.l.b16 %v188
  %v888 = vunpack.c.l.b16 %v189
  %v889 = vunpack.c.l.b16 %v190
  %v890 = vunpack.c.l.b16 %v191
  %v891 = vunpack.c.l.b16 %v192
  %v892 = vunpack.c.l.b16 %v193
  %v893 = vunpack.c.l.b16 %v194
  %v894 = vunpack.c.l.b16 %v195
  %v895 = vunpack.c.l.b16 %v196
  %v896 = vunpack.c.l.b16 %v197
  %v897 = vunpack.c.l.b16 %v198
  %v898 = vunpack.c.l.b16 %v199
  %v899 = vunpack.c.l.b16 %v200
  %v900 = vunpack.c.l.b16 %v201
  %v901 = vunpack.c.l.b16 %v202
  %v902 = vunpack.c.l.b16 %v203
  %v903 = vunpack.c.l.b16 %v204
  %v904 = vunpack.c.l.b16 %v205
  %v905 = vunpack.c.l.b16 %v206
  %v906 = vunpack.c.l.b16 %v207
  %v907 = vunpack.c.l.b16 %v208
  %v908 = vunpack.c.l.b16 %v209
  %v909 = vunpack.c.l.b16 %v210
  %v910 = vunpack.c.l.b16 %v211
  %v911 = vunpack.c.l.b16 %v212
  %v912 = vunpack.c.l.b16 %v213
  %v913 = vunpack.c.l.b16 %v214
  %v914 = vunpack.c.l.b16 %v215
  %v915 = vunpack.c.l.b16 %v216
  %v916 = vunpack.c.l.b16 %v217
  %v917 = vunpack.c.l.b16 %v218
  %v918 = vunpack.c.l.b16 %v219
  %v919 = vunpack.c.l.b16 %v220
  %v920 = vunpack.c.l.b16 %v221
  %v921 = vunpack.c.l.b16 %v222
  %v922 = vunpack.c.l.b16 %v223
  %v923 = vunpack.c.l.b16 %v224
  %v924 = vunpack.c.l.b16 %v225
  %v925 = vunpack.c.l.b16 %v226
  %v926 = vunpack.c.l.b16 %v227
  %v927 = vunpack.c.l.b16 %v228
  %v928 = vunpack.c.l.b16 %v229
  %v929 = vunpack.c.l.b16 %v230
  %v930 = vunpack.c.l.b16 %v231
  %v931 = vunpack.c.l.b16 %v232
  %v932 = vunpack.c.l.b16 %v233
  %v933 = vunpack.c.l.b16 %v234
  %v934 = vunpack.c.l.b16 %v235
  %v935 = vunpack.c.l.b16 %v236
  %v936 = vunpack.c.l.b16 %v237
  %v937 = vunpack.c.l.b16 %v238
  %v938 = vunpack.c.l.b16 %v239
  %v939 = vunpack.c.l.b16 %v240
  %v940 = vunpack.c.l.b16 %v241
  %v941 = vunpack.c.l.b16 %v242
  %v942 = vunpack.c.l.b16 %v243
  %v943 = vunpack.c.l.b16 %v244
  %v944 = vunpack.c.l.b16 %v245
  %v945 = vpack.c.b16 %v718, %v717
  %v946 = vpack.c.b16 %v720, %v719
  %v947 = vpack.c.b16 %v722, %v721
  %v948 = vpack.c.b16 %v724, %v723
  %v949 = vpack.c.b16 %v726, %v725
  %v950 = vpack.c.b16 %v728, %v727
  %v951 = vpack.c.b16 %v730, %v729
  %v952 = vpack.c.b16 %v732, %v731
  %v953 = vpack.c.b16 %v734, %v733
  %v954 = vpack.c.b16 %v736, %v735
  %v955 = vpack.c.b16 %v738, %v737
  %v956 = vpack.c.b16 %v740, %v739
  %v957 = vpack.c.b16 %v742, %v741
  %v958 = vpack.c.b16 %v744, %v743
  %v959 = vpack.c.b16 %v746, %v745
  %v960 = vpack.c.b16 %v748, %v747
  %v961 = vpack.c.b16 %v750, %v749
  %v962 = vpack.c.b16 %v752, %v751
  %v963 = vpack.c.b16 %v754, %v753
  %v964 = vpack.c.b16 %v756, %v755
  %v965 = vpack.c.b16 %v758, %v757
  %v966 = vpack.c.b16 %v760, %v759
  %v967 = vpack.c.b16 %v762, %v761
  %v968 = vpack.c.b16 %v764, %v763
  %v969 = vpack.c.b16 %v766, %v765
  %v970 = vpack.c.b16 %v768, %v767
  %v971 = vpack.c.b16 %v770, %v769
  %v972 = vpack.c.b16 %v772, %v771
  %v973 = vpack.c.b16 %v774, %v773
  %v974 = vpack.c.b16 %v776, %v775
  %v975 = vpack.c.b16 %v778, %v777
  %v976 = vpack.c.b16 %v780, %v779
  %v977 = vpack.c.b16 %v782, %v781
  %v978 = vpack.c.b16 %v784, %v783
  %v979 = vpack.c.b16 %v786, %v785
  %v980 = vpack.c.b16 %v788, %v787
  %v981 = vpack.c.b16 %v790, %v789
  %v982 = vpack.c.b16 %v792, %v791
  %v983 = vpack.c.b16 %v794, %v793
  %v984 = vpack.c.b16 %v796, %v795
  %v985 = vpack.c.b16 %v798, %v797
  %v986 = vpack.c.b16 %v800, %v799
  %v987 = vpack.c.b16 %v802, %v801
  %v988 = vpack.c.b16 %v804, %v803
  %v989 = vpack.c.b16 %v806, %v805
  %v990 = vpack.c.b16 %v808, %v807
  %v991 = vpack.c.b16 %v810, %v809
  %v992 = vpack.c.b16 %v812, %v811
  %v993 = vpack.c.b16 %v814, %v813
  %v994 = vpack.c.b16 %v816, %v815
  %v995 = vpack.c.b16 %v818, %v817
  %v996 = vpack.c.b16 %v820, %v819
  %v997 = vpack.c.b16 %v822, %v821
  %v998 = vpack.c.b16 %v824, %v823
  %v999 = vpack.c.b16 %v826, %v825
  %v1000 = vpack.c.b16 %v828, %v827
  %v1001 = vpack.c.b16 %v830, %v829
  %v1002 = vpack.c.b16 %v832, %v831
  %v1003 = vpack.c.b16 %v834, %v833
  %v1004 = vpack.c.b16 %v836, %v835
  %v1005 = vpack.c.b16 %v838, %v837
  %v1006 = vpack.c.b16 %v840, %v839
  %v1007 = vpack.c.b16 %v842, %v841
  %v1008 = vpack.c.b16 %v844, %v843
  %v1009 = vpack.c.b16 %v846, %v845
  %v1010 = vpack.c.b16 %v848, %v847
  %v1011 = vpack.c.b16 %v850, %v849
  %v1012 = vpack.c.b16 %v852, %v851
  %v1013 = vpack.c.b16 %v854, %v853
  %v1014 = vpack.c.b16 %v856, %v855
  %v1015 = vpack.c.b16 %v858, %v857
  %v1016 = vpack.c.b16 %v860, %v859
  %v1017 = vpack.c.b16 %v862, %v861
  %v1018 = vpack.c.b16 %v864, %v863
  %v1019 = vpack.c.b16 %v866, %v865
  %v1020 = vpack.c.b16 %v868, %v867
  %v1021 = vpack.c.b16 %v870, %v869
  %v1022 = vpack.c.b16 %v872, %v871
  %v1023 = vpack.c.b16 %v874, %v873
  %v1024 = vpack.c.b16 %v876, %v875
  %v1025 = vpack.c.b16 %v878, %v877
  %v1026 = vpack.c.b16 %v880, %v879
  %v1027 = vpack.c.b16 %v882, %v881
  %v1028 = vpack.c.b16 %v884, %v883
  %v1029 = vpack.c.b16 %v886, %v885
  %v1030 = vpack.c.b16 %v888, %v887
  %v1031 = vpack.c.b16 %v890, %v889
  %v1032 = vpack.c.b16 %v892, %v891
  %v1033 = vpack.c.b16 %v894, %v893
  %v1034 = vpack.c.b16 %v896, %v895
  %v1035 = vpack.c.b16 %v898, %v897
  %v1036 = vpack.c.b16 %v900, %v899
  %v1037 = vpack.c.b16 %v902, %v901
  %v1038 = vpack.c.b16 %v904, %v903
  %v1039 = vpack.c.b16 %v906, %v905
  %v1040 = vpack.c.b16 %v908, %v907
  %v1041 = vpack.c.b16 %v910, %v909
  %v1042 = vpack.c.b16 %v912, %v911
  %v1043 = vpack.c.b16 %v914, %v913
  %v1044 = vpack.c.b16 %v916, %v915
  %v1045 = vpack.c.b16 %v918, %v917
  %v1046 = vpack.c.b16 %v920, %v919
  %v1047 = vpack.c.b16 %v922, %v921
  %v1048 = vpack.c.b16 %v924, %v923
  %v1049 = vpack.c.b16 %v926, %v925
  %v1050 = vpack.c.b16 %v928, %v927
  %v1051 = vpack.c.b16 %v930, %v929
  %v1052 = vpack.c.b16 %v932, %v931
  %v1053 = vpack.c.b16 %v934, %v933
  %v1054 = vpack.c.b16 %v936, %v935
  %v1055 = vpack.c.b16 %v938, %v937
  %v1056 = vpack.c.b16 %v940, %v939
  %v1057 = vpack.c.b16 %v942, %v941
  %v1058 = vpack.c.b16 %v944, %v943
  %vm1059 = vcmask 621568
  %v1061 = vsel %vm1059, %v945, 0
  %v1064 = vsel %vm1059, %v946, 0
  %v1067 = vsel %vm1059, %v947, 0
  %v1070 = vsel %vm1059, %v948, 0
  %v1073 = vsel %vm1059, %v949, 0
  %v1076 = vsel %vm1059, %v950, 0
  %v1079 = vsel %vm1059, %v951, 0
  %v1082 = vsel %vm1059, %v952, 0
  %v1085 = vsel %vm1059, %v953, 0
  %v1088 = vsel %vm1059, %v954, 0
  %v1091 = vsel %vm1059, %v955, 0
  %v1094 = vsel %vm1059, %v956, 0
  %v1097 = vsel %vm1059, %v957, 0
  %v1100 = vsel %vm1059, %v958, 0
  %v1103 = vsel %vm1059, %v959, 0
  %v1106 = vsel %vm1059, %v960, 0
  %v1109 = vsel %vm1059, %v961, 0
  %v1112 = vsel %vm1059, %v962, 0
  %v1115 = vsel %vm1059, %v963, 0
  %v1118 = vsel %vm1059, %v964, 0
  %v1121 = vsel %vm1059, %v965, 0
  %v1124 = vsel %vm1059, %v966, 0
  %v1127 = vsel %vm1059, %v967, 0
  %v1130 = vsel %vm1059, %v968, 0
  %v1133 = vsel %vm1059, %v969, 0
  %v1136 = vsel %vm1059, %v970, 0
  %v1139 = vsel %vm1059, %v971, 0
  %v1142 = vsel %vm1059, %v972, 0
  %v1145 = vsel %vm1059, %v973, 0
  %v1148 = vsel %vm1059, %v974, 0
  %v1151 = vsel %vm1059, %v975, 0
  %v1154 = vsel %vm1059, %v976, 0
  %v1157 = vsel %vm1059, %v977, 0
  %v1160 = vsel %vm1059, %v978, 0
  %v1163 = vsel %vm1059, %v979, 0
  %v1166 = vsel %vm1059, %v980, 0
  %v1169 = vsel %vm1059, %v981, 0
  %v1172 = vsel %vm1059, %v982, 0
  %v1175 = vsel %vm1059, %v983, 0
  %v1178 = vsel %vm1059, %v984, 0
  %v1181 = vsel %vm1059, %v985, 0
  %v1184 = vsel %vm1059, %v986, 0
  %v1187 = vsel %vm1059, %v987, 0
  %v1190 = vsel %vm1059, %v988, 0
  %v1193 = vsel %vm1059, %v989, 0
  %v1196 = vsel %vm1059, %v990, 0
  %v1199 = vsel %vm1059, %v991, 0
  %v1202 = vsel %vm1059, %v992, 0
  %v1205 = vsel %vm1059, %v993, 0
  %v1208 = vsel %vm1059, %v994, 0
  %v1211 = vsel %vm1059, %v995, 0
  %v1214 = vsel %vm1059, %v996, 0
  %v1217 = vsel %vm1059, %v997, 0
  %v1220 = vsel %vm1059, %v998, 0
  %v1223 = vsel %vm1059, %v999, 0
  %v1226 = vsel %vm1059, %v1000, 0
  %v1229 = vsel %vm1059, %v1001, 0
  %v1232 = vsel %vm1059, %v1002, 0
  %v1235 = vsel %vm1059, %v1003, 0
  %v1238 = vsel %vm1059, %v1004, 0
  %v1241 = vsel %vm1059, %v1005, 0
  %v1244 = vsel %vm1059, %v1006, 0
  %v1247 = vsel %vm1059, %v1007, 0
  %v1250 = vsel %vm1059, %v1008, 0
  %v1253 = vsel %vm1059, %v1009, 0
  %v1256 = vsel %vm1059, %v1010, 0
  %v1259 = vsel %vm1059, %v1011, 0
  %v1262 = vsel %vm1059, %v1012, 0
  %v1265 = vsel %vm1059, %v1013, 0
  %v1268 = vsel %vm1059, %v1014, 0
  %v1271 = vsel %vm1059, %v1015, 0
  %v1274 = vsel %vm1059, %v1016, 0
  %v1277 = vsel %vm1059, %v1017, 0
  %v1280 = vsel %vm1059, %v1018, 0
  %v1283 = vsel %vm1059, %v1019, 0
  %v1286 = vsel %vm1059, %v1020, 0
  %v1289 = vsel %vm1059, %v1021, 0
  %v1292 = vsel %vm1059, %v1022, 0
  %v1295 = vsel %vm1059, %v1023, 0
  %v1298 = vsel %vm1059, %v1024, 0
  %v1301 = vsel %vm1059, %v1025, 0
  %v1304 = vsel %vm1059, %v1026, 0
  %v1307 = vsel %vm1059, %v1027, 0
  %v1310 = vsel %vm1059, %v1028, 0
  %v1313 = vsel %vm1059, %v1029, 0
  %v1316 = vsel %vm1059, %v1030, 0
  %v1319 = vsel %vm1059, %v1031, 0
  %v1322 = vsel %vm1059, %v1032, 0
  %v1325 = vsel %vm1059, %v1033, 0
  %v1328 = vsel %vm1059, %v1034, 0
  %v1331 = vsel %vm1059, %v1035, 0
  %v1334 = vsel %vm1059, %v1036, 0
  %v1337 = vsel %vm1059, %v1037, 0
  %v1340 = vsel %vm1059, %v1038, 0
  %v1343 = vsel %vm1059, %v1039, 0
  %v1346 = vsel %vm1059, %v1040, 0
  %v1349 = vsel %vm1059, %v1041, 0
  %v1352 = vsel %vm1059, %v1042, 0
  %v1355 = vsel %vm1059, %v1043, 0
  %v1358 = vsel %vm1059, %v1044, 0
  %v1361 = vsel %vm1059, %v1045, 0
  %v1364 = vsel %vm1059, %v1046, 0
  %v1367 = vsel %vm1059, %v1047, 0
  %v1370 = vsel %vm1059, %v1048, 0
  %v1373 = vsel %vm1059, %v1049, 0
  %v1376 = vsel %vm1059, %v1050, 0
  %v1379 = vsel %vm1059, %v1051, 0
  %v1382 = vsel %vm1059, %v1052, 0
  %v1385 = vsel %vm1059, %v1053, 0
  %v1388 = vsel %vm1059, %v1054, 0
  %v1391 = vsel %vm1059, %v1055, 0
  %v1394 = vsel %vm1059, %v1056, 0
  %v1397 = vsel %vm1059, %v1057, 0
  %v1400 = vsel %vm1059, %v1058, 0
  %vm1402 = vcmask 1045504
  %v1404 = vsel %vm1402, %v260, 0
  %1406 = vmatprep.subr.bf16.mxu0 0
  %1407 = vmatpush1.bf16.msra.mxu0 %v256
  %1408 = vmatprep.subr.bf16.mxu0 0
  %1409 = vmatpush1.bf16.msra.mxu0 %v257
  %1410 = vmatprep.subr.bf16.mxu0 0
  %1411 = vmatpush1.bf16.msra.mxu0 %v258
  %1412 = vmatprep.subr.bf16.mxu0 0
  %1413 = vmatpush1.bf16.msra.mxu0 %v259
  %1414 = vmatprep.subr.bf16.mxu0 0
  %1415 = vmatpush1.bf16.msra.mxu0 %v1404
  %1416 = vmatprep.subr.bf16.mxu0 0
  %1417 = vmatpush1.bf16.msra.mxu0 0
  %1418 = vmatprep.subr.bf16.mxu0 0
  %1419 = vmatpush1.bf16.msra.mxu0 0
  %1420 = vmatprep.subr.bf16.mxu0 0
  %1421 = vmatpush1.bf16.msra.mxu0 0
  %1422 = vmatprep.subr.bf16.mxu0 0
  %1423 = vmatpush1.bf16.msra.mxu0 0
  %1424 = vmatprep.subr.bf16.mxu0 0
  %1425 = vmatpush1.bf16.msra.mxu0 0
  %1426 = vmatprep.subr.bf16.mxu0 0
  %1427 = vmatpush1.bf16.msra.mxu0 0
  %1428 = vmatprep.subr.bf16.mxu0 0
  %1429 = vmatpush1.bf16.msra.mxu0 0
  %1430 = vmatprep.subr.bf16.mxu0 0
  %1431 = vmatpush1.bf16.msra.mxu0 0
  %1432 = vmatprep.subr.bf16.mxu0 0
  %1433 = vmatpush1.bf16.msra.mxu0 0
  %1434 = vmatprep.subr.bf16.mxu0 0
  %1435 = vmatpush1.bf16.msra.mxu0 0
  %1436 = vmatprep.subr.bf16.mxu0 0
  %1437 = vmatpush1.bf16.msra.mxu0 0
  %1438 = vmatprep.mubr.bf16.mxu0 0
  %1439 = vmatmul.mubr.bf16.gmra.mrb[0].mxu0 %v1061
  %v1440 = vpop.f32.mrb[0].mxu0
  %v1441 = vadd.f32 %v261, %v1440
  %v1442 = vpop.f32.mrb[0].mxu0
  %v1443 = vpop.f32.mrb[0].mxu0
  %v1444 = vadd.f32 %v262, %v1443
  %v1445 = vpop.f32.mrb[0].mxu0
  %1446 = vmatprep.mubr.bf16.mxu0 0
  %1447 = vmatmul.mubr.bf16.gmra.mrb[0].mxu0 %v1064
  %v1448 = vpop.f32.mrb[0].mxu0
  %v1449 = vadd.f32 %v263, %v1448
  %v1450 = vpop.f32.mrb[0].mxu0
  %v1451 = vpop.f32.mrb[0].mxu0
  %v1452 = vadd.f32 %v264, %v1451
  %v1453 = vpop.f32.mrb[0].mxu0
  %1454 = vmatprep.mubr.bf16.mxu0 0
  %1455 = vmatmul.mubr.bf16.gmra.mrb[0].mxu0 %v1067
  %v1456 = vpop.f32.mrb[0].mxu0
  %v1457 = vadd.f32 %v265, %v1456
  %v1458 = vpop.f32.mrb[0].mxu0
  %v1459 = vpop.f32.mrb[0].mxu0
  %v1460 = vadd.f32 %v266, %v1459
  %v1461 = vpop.f32.mrb[0].mxu0
  %1462 = vmatprep.mubr.bf16.mxu0 0
  %1463 = vmatmul.mubr.bf16.gmra.mrb[0].mxu0 %v1070
  %v1464 = vpop.f32.mrb[0].mxu0
  %v1465 = vadd.f32 %v267, %v1464
  %v1466 = vpop.f32.mrb[0].mxu0
  %v1467 = vpop.f32.mrb[0].mxu0
  %v1468 = vadd.f32 %v268, %v1467
  %v1469 = vpop.f32.mrb[0].mxu0
  %1470 = vmatprep.mubr.bf16.mxu0 0
  %1471 = vmatmul.mubr.bf16.gmra.mrb[0].mxu0 %v1073
  %v1472 = vpop.f32.mrb[0].mxu0
  %v1473 = vadd.f32 %v269, %v1472
  %v1474 = vpop.f32.mrb[0].mxu0
  %v1475 = vpop.f32.mrb[0].mxu0
  %v1476 = vadd.f32 %v270, %v1475
  %v1477 = vpop.f32.mrb[0].mxu0
  %1478 = vmatprep.mubr.bf16.mxu0 0
  %1479 = vmatmul.mubr.bf16.gmra.mrb[0].mxu0 %v1076
  %v1480 = vpop.f32.mrb[0].mxu0
  %v1481 = vadd.f32 %v271, %v1480
  %v1482 = vpop.f32.mrb[0].mxu0
  %v1483 = vpop.f32.mrb[0].mxu0
  %v1484 = vadd.f32 %v272, %v1483
  %v1485 = vpop.f32.mrb[0].mxu0
  %1486 = vmatprep.mubr.bf16.mxu0 0
  %1487 = vmatmul.mubr.bf16.gmra.mrb[0].mxu0 %v1079
  %v1488 = vpop.f32.mrb[0].mxu0
  %v1489 = vadd.f32 %v273, %v1488
  %v1490 = vpop.f32.mrb[0].mxu0
  %v1491 = vpop.f32.mrb[0].mxu0
  %v1492 = vadd.f32 %v274, %v1491
  %v1493 = vpop.f32.mrb[0].mxu0
  %1494 = vmatprep.mubr.bf16.mxu0 0
  %1495 = vmatmul.mubr.bf16.gmra.mrb[0].mxu0 %v1082
  %v1496 = vpop.f32.mrb[0].mxu0
  %v1497 = vadd.f32 %v275, %v1496
  %v1498 = vpop.f32.mrb[0].mxu0
  %v1499 = vpop.f32.mrb[0].mxu0
  %v1500 = vadd.f32 %v276, %v1499
  %v1501 = vpop.f32.mrb[0].mxu0
  %1502 = vmatprep.mubr.bf16.mxu0 0
  %1503 = vmatmul.mubr.bf16.gmra.mrb[0].mxu0 %v1085
  %v1504 = vpop.f32.mrb[0].mxu0
  %v1505 = vadd.f32 %v277, %v1504
  %v1506 = vpop.f32.mrb[0].mxu0
  %v1507 = vpop.f32.mrb[0].mxu0
  %v1508 = vadd.f32 %v278, %v1507
  %v1509 = vpop.f32.mrb[0].mxu0
  %1510 = vmatprep.mubr.bf16.mxu0 0
  %1511 = vmatmul.mubr.bf16.gmra.mrb[0].mxu0 %v1088
  %v1512 = vpop.f32.mrb[0].mxu0
  %v1513 = vadd.f32 %v279, %v1512
  %v1514 = vpop.f32.mrb[0].mxu0
  %v1515 = vpop.f32.mrb[0].mxu0
  %v1516 = vadd.f32 %v280, %v1515
  %v1517 = vpop.f32.mrb[0].mxu0
  %1518 = vmatprep.mubr.bf16.mxu0 0
  %1519 = vmatmul.mubr.bf16.gmra.mrb[0].mxu0 %v1091
  %v1520 = vpop.f32.mrb[0].mxu0
  %v1521 = vadd.f32 %v281, %v1520
  %v1522 = vpop.f32.mrb[0].mxu0
  %v1523 = vpop.f32.mrb[0].mxu0
  %v1524 = vadd.f32 %v282, %v1523
  %v1525 = vpop.f32.mrb[0].mxu0
  %1526 = vmatprep.mubr.bf16.mxu0 0
  %1527 = vmatmul.mubr.bf16.gmra.mrb[0].mxu0 %v1094
  %v1528 = vpop.f32.mrb[0].mxu0
  %v1529 = vadd.f32 %v283, %v1528
  %v1530 = vpop.f32.mrb[0].mxu0
  %v1531 = vpop.f32.mrb[0].mxu0
  %v1532 = vadd.f32 %v284, %v1531
  %v1533 = vpop.f32.mrb[0].mxu0
  %1534 = vmatprep.mubr.bf16.mxu0 0
  %1535 = vmatmul.mubr.bf16.gmra.mrb[0].mxu0 %v1097
  %v1536 = vpop.f32.mrb[0].mxu0
  %v1537 = vadd.f32 %v285, %v1536
  %v1538 = vpop.f32.mrb[0].mxu0
  %v1539 = vpop.f32.mrb[0].mxu0
  %v1540 = vadd.f32 %v286, %v1539
  %v1541 = vpop.f32.mrb[0].mxu0
  %1542 = vmatprep.mubr.bf16.mxu0 0
  %1543 = vmatmul.mubr.bf16.gmra.mrb[0].mxu0 %v1100
  %v1544 = vpop.f32.mrb[0].mxu0
  %v1545 = vadd.f32 %v287, %v1544
  %v1546 = vpop.f32.mrb[0].mxu0
  %v1547 = vpop.f32.mrb[0].mxu0
  %v1548 = vadd.f32 %v288, %v1547
  %v1549 = vpop.f32.mrb[0].mxu0
  %1550 = vmatprep.mubr.bf16.mxu0 0
  %1551 = vmatmul.mubr.bf16.gmra.mrb[0].mxu0 %v1103
  %v1552 = vpop.f32.mrb[0].mxu0
  %v1553 = vadd.f32 %v289, %v1552
  %v1554 = vpop.f32.mrb[0].mxu0
  %v1555 = vpop.f32.mrb[0].mxu0
  %v1556 = vadd.f32 %v290, %v1555
  %v1557 = vpop.f32.mrb[0].mxu0
  %1558 = vmatprep.mubr.bf16.mxu0 0
  %1559 = vmatmul.mubr.bf16.gmra.mrb[0].mxu0 %v1106
  %v1560 = vpop.f32.mrb[0].mxu0
  %v1561 = vadd.f32 %v291, %v1560
  %v1562 = vpop.f32.mrb[0].mxu0
  %v1563 = vpop.f32.mrb[0].mxu0
  %v1564 = vadd.f32 %v292, %v1563
  %v1565 = vpop.f32.mrb[0].mxu0
  %1566 = vmatprep.mubr.bf16.mxu0 0
  %1567 = vmatmul.mubr.bf16.gmra.mrb[0].mxu0 %v1109
  %v1568 = vpop.f32.mrb[0].mxu0
  %v1569 = vadd.f32 %v293, %v1568
  %v1570 = vpop.f32.mrb[0].mxu0
  %v1571 = vpop.f32.mrb[0].mxu0
  %v1572 = vadd.f32 %v294, %v1571
  %v1573 = vpop.f32.mrb[0].mxu0
  %1574 = vmatprep.mubr.bf16.mxu0 0
  %1575 = vmatmul.mubr.bf16.gmra.mrb[0].mxu0 %v1112
  %v1576 = vpop.f32.mrb[0].mxu0
  %v1577 = vadd.f32 %v295, %v1576
  %v1578 = vpop.f32.mrb[0].mxu0
  %v1579 = vpop.f32.mrb[0].mxu0
  %v1580 = vadd.f32 %v296, %v1579
  %v1581 = vpop.f32.mrb[0].mxu0
  %1582 = vmatprep.mubr.bf16.mxu0 0
  %1583 = vmatmul.mubr.bf16.gmra.mrb[0].mxu0 %v1115
  %v1584 = vpop.f32.mrb[0].mxu0
  %v1585 = vadd.f32 %v297, %v1584
  %v1586 = vpop.f32.mrb[0].mxu0
  %v1587 = vpop.f32.mrb[0].mxu0
  %v1588 = vadd.f32 %v298, %v1587
  %v1589 = vpop.f32.mrb[0].mxu0
  %1590 = vmatprep.mubr.bf16.mxu0 0
  %1591 = vmatmul.mubr.bf16.gmra.mrb[0].mxu0 %v1118
  %v1592 = vpop.f32.mrb[0].mxu0
  %v1593 = vadd.f32 %v299, %v1592
  %v1594 = vpop.f32.mrb[0].mxu0
  %v1595 = vpop.f32.mrb[0].mxu0
  %v1596 = vadd.f32 %v300, %v1595
  %v1597 = vpop.f32.mrb[0].mxu0
  %1598 = vmatprep.mubr.bf16.mxu0 0
  %1599 = vmatmul.mubr.bf16.gmra.mrb[0].mxu0 %v1121
  %v1600 = vpop.f32.mrb[0].mxu0
  %v1601 = vadd.f32 %v301, %v1600
  %v1602 = vpop.f32.mrb[0].mxu0
  %v1603 = vpop.f32.mrb[0].mxu0
  %v1604 = vadd.f32 %v302, %v1603
  %v1605 = vpop.f32.mrb[0].mxu0
  %1606 = vmatprep.mubr.bf16.mxu0 0
  %1607 = vmatmul.mubr.bf16.gmra.mrb[0].mxu0 %v1124
  %v1608 = vpop.f32.mrb[0].mxu0
  %v1609 = vadd.f32 %v303, %v1608
  %v1610 = vpop.f32.mrb[0].mxu0
  %v1611 = vpop.f32.mrb[0].mxu0
  %v1612 = vadd.f32 %v304, %v1611
  %v1613 = vpop.f32.mrb[0].mxu0
  %1614 = vmatprep.mubr.bf16.mxu0 0
  %1615 = vmatmul.mubr.bf16.gmra.mrb[0].mxu0 %v1127
  %v1616 = vpop.f32.mrb[0].mxu0
  %v1617 = vadd.f32 %v305, %v1616
  %v1618 = vpop.f32.mrb[0].mxu0
  %v1619 = vpop.f32.mrb[0].mxu0
  %v1620 = vadd.f32 %v306, %v1619
  %v1621 = vpop.f32.mrb[0].mxu0
  %1622 = vmatprep.mubr.bf16.mxu0 0
  %1623 = vmatmul.mubr.bf16.gmra.mrb[0].mxu0 %v1130
  %v1624 = vpop.f32.mrb[0].mxu0
  %v1625 = vadd.f32 %v307, %v1624
  %v1626 = vpop.f32.mrb[0].mxu0
  %v1627 = vpop.f32.mrb[0].mxu0
  %v1628 = vadd.f32 %v308, %v1627
  %v1629 = vpop.f32.mrb[0].mxu0
  %1630 = vmatprep.mubr.bf16.mxu0 0
  %1631 = vmatmul.mubr.bf16.gmra.mrb[0].mxu0 %v1133
  %v1632 = vpop.f32.mrb[0].mxu0
  %v1633 = vadd.f32 %v309, %v1632
  %v1634 = vpop.f32.mrb[0].mxu0
  %v1635 = vpop.f32.mrb[0].mxu0
  %v1636 = vadd.f32 %v310, %v1635
  %v1637 = vpop.f32.mrb[0].mxu0
  %1638 = vmatprep.mubr.bf16.mxu0 0
  %1639 = vmatmul.mubr.bf16.gmra.mrb[0].mxu0 %v1136
  %v1640 = vpop.f32.mrb[0].mxu0
  %v1641 = vadd.f32 %v311, %v1640
  %v1642 = vpop.f32.mrb[0].mxu0
  %v1643 = vpop.f32.mrb[0].mxu0
  %v1644 = vadd.f32 %v312, %v1643
  %v1645 = vpop.f32.mrb[0].mxu0
  %1646 = vmatprep.mubr.bf16.mxu0 0
  %1647 = vmatmul.mubr.bf16.gmra.mrb[0].mxu0 %v1139
  %v1648 = vpop.f32.mrb[0].mxu0
  %v1649 = vadd.f32 %v313, %v1648
  %v1650 = vpop.f32.mrb[0].mxu0
  %v1651 = vpop.f32.mrb[0].mxu0
  %v1652 = vadd.f32 %v314, %v1651
  %v1653 = vpop.f32.mrb[0].mxu0
  %1654 = vmatprep.mubr.bf16.mxu0 0
  %1655 = vmatmul.mubr.bf16.gmra.mrb[0].mxu0 %v1142
  %v1656 = vpop.f32.mrb[0].mxu0
  %v1657 = vadd.f32 %v315, %v1656
  %v1658 = vpop.f32.mrb[0].mxu0
  %v1659 = vpop.f32.mrb[0].mxu0
  %v1660 = vadd.f32 %v316, %v1659
  %v1661 = vpop.f32.mrb[0].mxu0
  %1662 = vmatprep.mubr.bf16.mxu0 0
  %1663 = vmatmul.mubr.bf16.gmra.mrb[0].mxu0 %v1145
  %v1664 = vpop.f32.mrb[0].mxu0
  %v1665 = vadd.f32 %v317, %v1664
  %v1666 = vpop.f32.mrb[0].mxu0
  %v1667 = vpop.f32.mrb[0].mxu0
  %v1668 = vadd.f32 %v318, %v1667
  %v1669 = vpop.f32.mrb[0].mxu0
  %1670 = vmatprep.mubr.bf16.mxu0 0
  %1671 = vmatmul.mubr.bf16.gmra.mrb[0].mxu0 %v1148
  %v1672 = vpop.f32.mrb[0].mxu0
  %v1673 = vadd.f32 %v319, %v1672
  %v1674 = vpop.f32.mrb[0].mxu0
  %v1675 = vpop.f32.mrb[0].mxu0
  %v1676 = vadd.f32 %v320, %v1675
  %v1677 = vpop.f32.mrb[0].mxu0
  %1678 = vmatprep.mubr.bf16.mxu0 0
  %1679 = vmatmul.mubr.bf16.gmra.mrb[0].mxu0 %v1151
  %v1680 = vpop.f32.mrb[0].mxu0
  %v1681 = vadd.f32 %v321, %v1680
  %v1682 = vpop.f32.mrb[0].mxu0
  %v1683 = vpop.f32.mrb[0].mxu0
  %v1684 = vadd.f32 %v322, %v1683
  %v1685 = vpop.f32.mrb[0].mxu0
  %1686 = vmatprep.mubr.bf16.mxu0 0
  %1687 = vmatmul.mubr.bf16.gmra.mrb[0].mxu0 %v1154
  %v1688 = vpop.f32.mrb[0].mxu0
  %v1689 = vadd.f32 %v323, %v1688
  %v1690 = vpop.f32.mrb[0].mxu0
  %v1691 = vpop.f32.mrb[0].mxu0
  %v1692 = vadd.f32 %v324, %v1691
  %v1693 = vpop.f32.mrb[0].mxu0
  %1694 = vmatprep.mubr.bf16.mxu0 0
  %1695 = vmatmul.mubr.bf16.gmra.mrb[0].mxu0 %v1157
  %v1696 = vpop.f32.mrb[0].mxu0
  %v1697 = vadd.f32 %v325, %v1696
  %v1698 = vpop.f32.mrb[0].mxu0
  %v1699 = vpop.f32.mrb[0].mxu0
  %v1700 = vadd.f32 %v326, %v1699
  %v1701 = vpop.f32.mrb[0].mxu0
  %1702 = vmatprep.mubr.bf16.mxu0 0
  %1703 = vmatmul.mubr.bf16.gmra.mrb[0].mxu0 %v1160
  %v1704 = vpop.f32.mrb[0].mxu0
  %v1705 = vadd.f32 %v327, %v1704
  %v1706 = vpop.f32.mrb[0].mxu0
  %v1707 = vpop.f32.mrb[0].mxu0
  %v1708 = vadd.f32 %v328, %v1707
  %v1709 = vpop.f32.mrb[0].mxu0
  %1710 = vmatprep.mubr.bf16.mxu0 0
  %1711 = vmatmul.mubr.bf16.gmra.mrb[0].mxu0 %v1163
  %v1712 = vpop.f32.mrb[0].mxu0
  %v1713 = vadd.f32 %v329, %v1712
  %v1714 = vpop.f32.mrb[0].mxu0
  %v1715 = vpop.f32.mrb[0].mxu0
  %v1716 = vadd.f32 %v330, %v1715
  %v1717 = vpop.f32.mrb[0].mxu0
  %1718 = vmatprep.mubr.bf16.mxu0 0
  %1719 = vmatmul.mubr.bf16.gmra.mrb[0].mxu0 %v1166
  %v1720 = vpop.f32.mrb[0].mxu0
  %v1721 = vadd.f32 %v331, %v1720
  %v1722 = vpop.f32.mrb[0].mxu0
  %v1723 = vpop.f32.mrb[0].mxu0
  %v1724 = vadd.f32 %v332, %v1723
  %v1725 = vpop.f32.mrb[0].mxu0
  %1726 = vmatprep.mubr.bf16.mxu0 0
  %1727 = vmatmul.mubr.bf16.gmra.mrb[0].mxu0 %v1169
  %v1728 = vpop.f32.mrb[0].mxu0
  %v1729 = vadd.f32 %v333, %v1728
  %v1730 = vpop.f32.mrb[0].mxu0
  %v1731 = vpop.f32.mrb[0].mxu0
  %v1732 = vadd.f32 %v334, %v1731
  %v1733 = vpop.f32.mrb[0].mxu0
  %1734 = vmatprep.mubr.bf16.mxu0 0
  %1735 = vmatmul.mubr.bf16.gmra.mrb[0].mxu0 %v1172
  %v1736 = vpop.f32.mrb[0].mxu0
  %v1737 = vadd.f32 %v335, %v1736
  %v1738 = vpop.f32.mrb[0].mxu0
  %v1739 = vpop.f32.mrb[0].mxu0
  %v1740 = vadd.f32 %v336, %v1739
  %v1741 = vpop.f32.mrb[0].mxu0
  %1742 = vmatprep.mubr.bf16.mxu0 0
  %1743 = vmatmul.mubr.bf16.gmra.mrb[0].mxu0 %v1175
  %v1744 = vpop.f32.mrb[0].mxu0
  %v1745 = vadd.f32 %v337, %v1744
  %v1746 = vpop.f32.mrb[0].mxu0
  %v1747 = vpop.f32.mrb[0].mxu0
  %v1748 = vadd.f32 %v338, %v1747
  %v1749 = vpop.f32.mrb[0].mxu0
  %1750 = vmatprep.mubr.bf16.mxu0 0
  %1751 = vmatmul.mubr.bf16.gmra.mrb[0].mxu0 %v1178
  %v1752 = vpop.f32.mrb[0].mxu0
  %v1753 = vadd.f32 %v339, %v1752
  %v1754 = vpop.f32.mrb[0].mxu0
  %v1755 = vpop.f32.mrb[0].mxu0
  %v1756 = vadd.f32 %v340, %v1755
  %v1757 = vpop.f32.mrb[0].mxu0
  %1758 = vmatprep.mubr.bf16.mxu0 0
  %1759 = vmatmul.mubr.bf16.gmra.mrb[0].mxu0 %v1181
  %v1760 = vpop.f32.mrb[0].mxu0
  %v1761 = vadd.f32 %v341, %v1760
  %v1762 = vpop.f32.mrb[0].mxu0
  %v1763 = vpop.f32.mrb[0].mxu0
  %v1764 = vadd.f32 %v342, %v1763
  %v1765 = vpop.f32.mrb[0].mxu0
  %1766 = vmatprep.mubr.bf16.mxu0 0
  %1767 = vmatmul.mubr.bf16.gmra.mrb[0].mxu0 %v1184
  %v1768 = vpop.f32.mrb[0].mxu0
  %v1769 = vadd.f32 %v343, %v1768
  %v1770 = vpop.f32.mrb[0].mxu0
  %v1771 = vpop.f32.mrb[0].mxu0
  %v1772 = vadd.f32 %v344, %v1771
  %v1773 = vpop.f32.mrb[0].mxu0
  %1774 = vmatprep.mubr.bf16.mxu0 0
  %1775 = vmatmul.mubr.bf16.gmra.mrb[0].mxu0 %v1187
  %v1776 = vpop.f32.mrb[0].mxu0
  %v1777 = vadd.f32 %v345, %v1776
  %v1778 = vpop.f32.mrb[0].mxu0
  %v1779 = vpop.f32.mrb[0].mxu0
  %v1780 = vadd.f32 %v346, %v1779
  %v1781 = vpop.f32.mrb[0].mxu0
  %1782 = vmatprep.mubr.bf16.mxu0 0
  %1783 = vmatmul.mubr.bf16.gmra.mrb[0].mxu0 %v1190
  %v1784 = vpop.f32.mrb[0].mxu0
  %v1785 = vadd.f32 %v347, %v1784
  %v1786 = vpop.f32.mrb[0].mxu0
  %v1787 = vpop.f32.mrb[0].mxu0
  %v1788 = vadd.f32 %v348, %v1787
  %v1789 = vpop.f32.mrb[0].mxu0
  %1790 = vmatprep.mubr.bf16.mxu0 0
  %1791 = vmatmul.mubr.bf16.gmra.mrb[0].mxu0 %v1193
  %v1792 = vpop.f32.mrb[0].mxu0
  %v1793 = vadd.f32 %v349, %v1792
  %v1794 = vpop.f32.mrb[0].mxu0
  %v1795 = vpop.f32.mrb[0].mxu0
  %v1796 = vadd.f32 %v350, %v1795
  %v1797 = vpop.f32.mrb[0].mxu0
  %1798 = vmatprep.mubr.bf16.mxu0 0
  %1799 = vmatmul.mubr.bf16.gmra.mrb[0].mxu0 %v1196
  %v1800 = vpop.f32.mrb[0].mxu0
  %v1801 = vadd.f32 %v351, %v1800
  %v1802 = vpop.f32.mrb[0].mxu0
  %v1803 = vpop.f32.mrb[0].mxu0
  %v1804 = vadd.f32 %v352, %v1803
  %v1805 = vpop.f32.mrb[0].mxu0
  %1806 = vmatprep.mubr.bf16.mxu0 0
  %1807 = vmatmul.mubr.bf16.gmra.mrb[0].mxu0 %v1199
  %v1808 = vpop.f32.mrb[0].mxu0
  %v1809 = vadd.f32 %v353, %v1808
  %v1810 = vpop.f32.mrb[0].mxu0
  %v1811 = vpop.f32.mrb[0].mxu0
  %v1812 = vadd.f32 %v354, %v1811
  %v1813 = vpop.f32.mrb[0].mxu0
  %1814 = vmatprep.mubr.bf16.mxu0 0
  %1815 = vmatmul.mubr.bf16.gmra.mrb[0].mxu0 %v1202
  %v1816 = vpop.f32.mrb[0].mxu0
  %v1817 = vadd.f32 %v355, %v1816
  %v1818 = vpop.f32.mrb[0].mxu0
  %v1819 = vpop.f32.mrb[0].mxu0
  %v1820 = vadd.f32 %v356, %v1819
  %v1821 = vpop.f32.mrb[0].mxu0
  %1822 = vmatprep.mubr.bf16.mxu0 0
  %1823 = vmatmul.mubr.bf16.gmra.mrb[0].mxu0 %v1205
  %v1824 = vpop.f32.mrb[0].mxu0
  %v1825 = vadd.f32 %v357, %v1824
  %v1826 = vpop.f32.mrb[0].mxu0
  %v1827 = vpop.f32.mrb[0].mxu0
  %v1828 = vadd.f32 %v358, %v1827
  %v1829 = vpop.f32.mrb[0].mxu0
  %1830 = vmatprep.mubr.bf16.mxu0 0
  %1831 = vmatmul.mubr.bf16.gmra.mrb[0].mxu0 %v1208
  %v1832 = vpop.f32.mrb[0].mxu0
  %v1833 = vadd.f32 %v359, %v1832
  %v1834 = vpop.f32.mrb[0].mxu0
  %v1835 = vpop.f32.mrb[0].mxu0
  %v1836 = vadd.f32 %v360, %v1835
  %v1837 = vpop.f32.mrb[0].mxu0
  %1838 = vmatprep.mubr.bf16.mxu0 0
  %1839 = vmatmul.mubr.bf16.gmra.mrb[0].mxu0 %v1211
  %v1840 = vpop.f32.mrb[0].mxu0
  %v1841 = vadd.f32 %v361, %v1840
  %v1842 = vpop.f32.mrb[0].mxu0
  %v1843 = vpop.f32.mrb[0].mxu0
  %v1844 = vadd.f32 %v362, %v1843
  %v1845 = vpop.f32.mrb[0].mxu0
  %1846 = vmatprep.mubr.bf16.mxu0 0
  %1847 = vmatmul.mubr.bf16.gmra.mrb[0].mxu0 %v1214
  %v1848 = vpop.f32.mrb[0].mxu0
  %v1849 = vadd.f32 %v363, %v1848
  %v1850 = vpop.f32.mrb[0].mxu0
  %v1851 = vpop.f32.mrb[0].mxu0
  %v1852 = vadd.f32 %v364, %v1851
  %v1853 = vpop.f32.mrb[0].mxu0
  %1854 = vmatprep.mubr.bf16.mxu0 0
  %1855 = vmatmul.mubr.bf16.gmra.mrb[0].mxu0 %v1217
  %v1856 = vpop.f32.mrb[0].mxu0
  %v1857 = vadd.f32 %v365, %v1856
  %v1858 = vpop.f32.mrb[0].mxu0
  %v1859 = vpop.f32.mrb[0].mxu0
  %v1860 = vadd.f32 %v366, %v1859
  %v1861 = vpop.f32.mrb[0].mxu0
  %1862 = vmatprep.mubr.bf16.mxu0 0
  %1863 = vmatmul.mubr.bf16.gmra.mrb[0].mxu0 %v1220
  %v1864 = vpop.f32.mrb[0].mxu0
  %v1865 = vadd.f32 %v367, %v1864
  %v1866 = vpop.f32.mrb[0].mxu0
  %v1867 = vpop.f32.mrb[0].mxu0
  %v1868 = vadd.f32 %v368, %v1867
  %v1869 = vpop.f32.mrb[0].mxu0
  %1870 = vmatprep.mubr.bf16.mxu0 0
  %1871 = vmatmul.mubr.bf16.gmra.mrb[0].mxu0 %v1223
  %v1872 = vpop.f32.mrb[0].mxu0
  %v1873 = vadd.f32 %v369, %v1872
  %v1874 = vpop.f32.mrb[0].mxu0
  %v1875 = vpop.f32.mrb[0].mxu0
  %v1876 = vadd.f32 %v370, %v1875
  %v1877 = vpop.f32.mrb[0].mxu0
  %1878 = vmatprep.mubr.bf16.mxu0 0
  %1879 = vmatmul.mubr.bf16.gmra.mrb[0].mxu0 %v1226
  %v1880 = vpop.f32.mrb[0].mxu0
  %v1881 = vadd.f32 %v371, %v1880
  %v1882 = vpop.f32.mrb[0].mxu0
  %v1883 = vpop.f32.mrb[0].mxu0
  %v1884 = vadd.f32 %v372, %v1883
  %v1885 = vpop.f32.mrb[0].mxu0
  %1886 = vmatprep.mubr.bf16.mxu0 0
  %1887 = vmatmul.mubr.bf16.gmra.mrb[0].mxu0 %v1229
  %v1888 = vpop.f32.mrb[0].mxu0
  %v1889 = vadd.f32 %v373, %v1888
  %v1890 = vpop.f32.mrb[0].mxu0
  %v1891 = vpop.f32.mrb[0].mxu0
  %v1892 = vadd.f32 %v374, %v1891
  %v1893 = vpop.f32.mrb[0].mxu0
  %1894 = vmatprep.mubr.bf16.mxu0 0
  %1895 = vmatmul.mubr.bf16.gmra.mrb[0].mxu0 %v1232
  %v1896 = vpop.f32.mrb[0].mxu0
  %v1897 = vadd.f32 %v375, %v1896
  %v1898 = vpop.f32.mrb[0].mxu0
  %v1899 = vpop.f32.mrb[0].mxu0
  %v1900 = vadd.f32 %v376, %v1899
  %v1901 = vpop.f32.mrb[0].mxu0
  %1902 = vmatprep.mubr.bf16.mxu0 0
  %1903 = vmatmul.mubr.bf16.gmra.mrb[0].mxu0 %v1235
  %v1904 = vpop.f32.mrb[0].mxu0
  %v1905 = vadd.f32 %v377, %v1904
  %v1906 = vpop.f32.mrb[0].mxu0
  %v1907 = vpop.f32.mrb[0].mxu0
  %v1908 = vadd.f32 %v378, %v1907
  %v1909 = vpop.f32.mrb[0].mxu0
  %1910 = vmatprep.mubr.bf16.mxu0 0
  %1911 = vmatmul.mubr.bf16.gmra.mrb[0].mxu0 %v1238
  %v1912 = vpop.f32.mrb[0].mxu0
  %v1913 = vadd.f32 %v379, %v1912
  %v1914 = vpop.f32.mrb[0].mxu0
  %v1915 = vpop.f32.mrb[0].mxu0
  %v1916 = vadd.f32 %v380, %v1915
  %v1917 = vpop.f32.mrb[0].mxu0
  %1918 = vmatprep.mubr.bf16.mxu0 0
  %1919 = vmatmul.mubr.bf16.gmra.mrb[0].mxu0 %v1241
  %v1920 = vpop.f32.mrb[0].mxu0
  %v1921 = vadd.f32 %v381, %v1920
  %v1922 = vpop.f32.mrb[0].mxu0
  %v1923 = vpop.f32.mrb[0].mxu0
  %v1924 = vadd.f32 %v382, %v1923
  %v1925 = vpop.f32.mrb[0].mxu0
  %1926 = vmatprep.mubr.bf16.mxu0 0
  %1927 = vmatmul.mubr.bf16.gmra.mrb[0].mxu0 %v1244
  %v1928 = vpop.f32.mrb[0].mxu0
  %v1929 = vadd.f32 %v383, %v1928
  %v1930 = vpop.f32.mrb[0].mxu0
  %v1931 = vpop.f32.mrb[0].mxu0
  %v1932 = vadd.f32 %v384, %v1931
  %v1933 = vpop.f32.mrb[0].mxu0
  %1934 = vmatprep.mubr.bf16.mxu0 0
  %1935 = vmatmul.mubr.bf16.gmra.mrb[0].mxu0 %v1247
  %v1936 = vpop.f32.mrb[0].mxu0
  %v1937 = vadd.f32 %v385, %v1936
  %v1938 = vpop.f32.mrb[0].mxu0
  %v1939 = vpop.f32.mrb[0].mxu0
  %v1940 = vadd.f32 %v386, %v1939
  %v1941 = vpop.f32.mrb[0].mxu0
  %1942 = vmatprep.mubr.bf16.mxu0 0
  %1943 = vmatmul.mubr.bf16.gmra.mrb[0].mxu0 %v1250
  %v1944 = vpop.f32.mrb[0].mxu0
  %v1945 = vadd.f32 %v387, %v1944
  %v1946 = vpop.f32.mrb[0].mxu0
  %v1947 = vpop.f32.mrb[0].mxu0
  %v1948 = vadd.f32 %v388, %v1947
  %v1949 = vpop.f32.mrb[0].mxu0
  %1950 = vmatprep.mubr.bf16.mxu0 0
  %1951 = vmatmul.mubr.bf16.gmra.mrb[0].mxu0 %v1253
  %v1952 = vpop.f32.mrb[0].mxu0
  %v1953 = vadd.f32 %v389, %v1952
  %v1954 = vpop.f32.mrb[0].mxu0
  %v1955 = vpop.f32.mrb[0].mxu0
  %v1956 = vadd.f32 %v390, %v1955
  %v1957 = vpop.f32.mrb[0].mxu0
  %1958 = vmatprep.mubr.bf16.mxu0 0
  %1959 = vmatmul.mubr.bf16.gmra.mrb[0].mxu0 %v1256
  %v1960 = vpop.f32.mrb[0].mxu0
  %v1961 = vadd.f32 %v391, %v1960
  %v1962 = vpop.f32.mrb[0].mxu0
  %v1963 = vpop.f32.mrb[0].mxu0
  %v1964 = vadd.f32 %v392, %v1963
  %v1965 = vpop.f32.mrb[0].mxu0
  %1966 = vmatprep.mubr.bf16.mxu0 0
  %1967 = vmatmul.mubr.bf16.gmra.mrb[0].mxu0 %v1259
  %v1968 = vpop.f32.mrb[0].mxu0
  %v1969 = vadd.f32 %v393, %v1968
  %v1970 = vpop.f32.mrb[0].mxu0
  %v1971 = vpop.f32.mrb[0].mxu0
  %v1972 = vadd.f32 %v394, %v1971
  %v1973 = vpop.f32.mrb[0].mxu0
  %1974 = vmatprep.mubr.bf16.mxu0 0
  %1975 = vmatmul.mubr.bf16.gmra.mrb[0].mxu0 %v1262
  %v1976 = vpop.f32.mrb[0].mxu0
  %v1977 = vadd.f32 %v395, %v1976
  %v1978 = vpop.f32.mrb[0].mxu0
  %v1979 = vpop.f32.mrb[0].mxu0
  %v1980 = vadd.f32 %v396, %v1979
  %v1981 = vpop.f32.mrb[0].mxu0
  %1982 = vmatprep.mubr.bf16.mxu0 0
  %1983 = vmatmul.mubr.bf16.gmra.mrb[0].mxu0 %v1265
  %v1984 = vpop.f32.mrb[0].mxu0
  %v1985 = vadd.f32 %v397, %v1984
  %v1986 = vpop.f32.mrb[0].mxu0
  %v1987 = vpop.f32.mrb[0].mxu0
  %v1988 = vadd.f32 %v398, %v1987
  %v1989 = vpop.f32.mrb[0].mxu0
  %1990 = vmatprep.mubr.bf16.mxu0 0
  %1991 = vmatmul.mubr.bf16.gmra.mrb[0].mxu0 %v1268
  %v1992 = vpop.f32.mrb[0].mxu0
  %v1993 = vadd.f32 %v399, %v1992
  %v1994 = vpop.f32.mrb[0].mxu0
  %v1995 = vpop.f32.mrb[0].mxu0
  %v1996 = vadd.f32 %v400, %v1995
  %v1997 = vpop.f32.mrb[0].mxu0
  %1998 = vmatprep.mubr.bf16.mxu0 0
  %1999 = vmatmul.mubr.bf16.gmra.mrb[0].mxu0 %v1271
  %v2000 = vpop.f32.mrb[0].mxu0
  %v2001 = vadd.f32 %v401, %v2000
  %v2002 = vpop.f32.mrb[0].mxu0
  %v2003 = vpop.f32.mrb[0].mxu0
  %v2004 = vadd.f32 %v402, %v2003
  %v2005 = vpop.f32.mrb[0].mxu0
  %2006 = vmatprep.mubr.bf16.mxu0 0
  %2007 = vmatmul.mubr.bf16.gmra.mrb[0].mxu0 %v1274
  %v2008 = vpop.f32.mrb[0].mxu0
  %v2009 = vadd.f32 %v403, %v2008
  %v2010 = vpop.f32.mrb[0].mxu0
  %v2011 = vpop.f32.mrb[0].mxu0
  %v2012 = vadd.f32 %v404, %v2011
  %v2013 = vpop.f32.mrb[0].mxu0
  %2014 = vmatprep.mubr.bf16.mxu0 0
  %2015 = vmatmul.mubr.bf16.gmra.mrb[0].mxu0 %v1277
  %v2016 = vpop.f32.mrb[0].mxu0
  %v2017 = vadd.f32 %v405, %v2016
  %v2018 = vpop.f32.mrb[0].mxu0
  %v2019 = vpop.f32.mrb[0].mxu0
  %v2020 = vadd.f32 %v406, %v2019
  %v2021 = vpop.f32.mrb[0].mxu0
  %2022 = vmatprep.mubr.bf16.mxu0 0
  %2023 = vmatmul.mubr.bf16.gmra.mrb[0].mxu0 %v1280
  %v2024 = vpop.f32.mrb[0].mxu0
  %v2025 = vadd.f32 %v407, %v2024
  %v2026 = vpop.f32.mrb[0].mxu0
  %v2027 = vpop.f32.mrb[0].mxu0
  %v2028 = vadd.f32 %v408, %v2027
  %v2029 = vpop.f32.mrb[0].mxu0
  %2030 = vmatprep.mubr.bf16.mxu0 0
  %2031 = vmatmul.mubr.bf16.gmra.mrb[0].mxu0 %v1283
  %v2032 = vpop.f32.mrb[0].mxu0
  %v2033 = vadd.f32 %v409, %v2032
  %v2034 = vpop.f32.mrb[0].mxu0
  %v2035 = vpop.f32.mrb[0].mxu0
  %v2036 = vadd.f32 %v410, %v2035
  %v2037 = vpop.f32.mrb[0].mxu0
  %2038 = vmatprep.mubr.bf16.mxu0 0
  %2039 = vmatmul.mubr.bf16.gmra.mrb[0].mxu0 %v1286
  %v2040 = vpop.f32.mrb[0].mxu0
  %v2041 = vadd.f32 %v411, %v2040
  %v2042 = vpop.f32.mrb[0].mxu0
  %v2043 = vpop.f32.mrb[0].mxu0
  %v2044 = vadd.f32 %v412, %v2043
  %v2045 = vpop.f32.mrb[0].mxu0
  %2046 = vmatprep.mubr.bf16.mxu0 0
  %2047 = vmatmul.mubr.bf16.gmra.mrb[0].mxu0 %v1289
  %v2048 = vpop.f32.mrb[0].mxu0
  %v2049 = vadd.f32 %v413, %v2048
  %v2050 = vpop.f32.mrb[0].mxu0
  %v2051 = vpop.f32.mrb[0].mxu0
  %v2052 = vadd.f32 %v414, %v2051
  %v2053 = vpop.f32.mrb[0].mxu0
  %2054 = vmatprep.mubr.bf16.mxu0 0
  %2055 = vmatmul.mubr.bf16.gmra.mrb[0].mxu0 %v1292
  %v2056 = vpop.f32.mrb[0].mxu0
  %v2057 = vadd.f32 %v415, %v2056
  %v2058 = vpop.f32.mrb[0].mxu0
  %v2059 = vpop.f32.mrb[0].mxu0
  %v2060 = vadd.f32 %v416, %v2059
  %v2061 = vpop.f32.mrb[0].mxu0
  %2062 = vmatprep.mubr.bf16.mxu0 0
  %2063 = vmatmul.mubr.bf16.gmra.mrb[0].mxu0 %v1295
  %v2064 = vpop.f32.mrb[0].mxu0
  %v2065 = vadd.f32 %v417, %v2064
  %v2066 = vpop.f32.mrb[0].mxu0
  %v2067 = vpop.f32.mrb[0].mxu0
  %v2068 = vadd.f32 %v418, %v2067
  %v2069 = vpop.f32.mrb[0].mxu0
  %2070 = vmatprep.mubr.bf16.mxu0 0
  %2071 = vmatmul.mubr.bf16.gmra.mrb[0].mxu0 %v1298
  %v2072 = vpop.f32.mrb[0].mxu0
  %v2073 = vadd.f32 %v419, %v2072
  %v2074 = vpop.f32.mrb[0].mxu0
  %v2075 = vpop.f32.mrb[0].mxu0
  %v2076 = vadd.f32 %v420, %v2075
  %v2077 = vpop.f32.mrb[0].mxu0
  %2078 = vmatprep.mubr.bf16.mxu0 0
  %2079 = vmatmul.mubr.bf16.gmra.mrb[0].mxu0 %v1301
  %v2080 = vpop.f32.mrb[0].mxu0
  %v2081 = vadd.f32 %v421, %v2080
  %v2082 = vpop.f32.mrb[0].mxu0
  %v2083 = vpop.f32.mrb[0].mxu0
  %v2084 = vadd.f32 %v422, %v2083
  %v2085 = vpop.f32.mrb[0].mxu0
  %2086 = vmatprep.mubr.bf16.mxu0 0
  %2087 = vmatmul.mubr.bf16.gmra.mrb[0].mxu0 %v1304
  %v2088 = vpop.f32.mrb[0].mxu0
  %v2089 = vadd.f32 %v423, %v2088
  %v2090 = vpop.f32.mrb[0].mxu0
  %v2091 = vpop.f32.mrb[0].mxu0
  %v2092 = vadd.f32 %v424, %v2091
  %v2093 = vpop.f32.mrb[0].mxu0
  %2094 = vmatprep.mubr.bf16.mxu0 0
  %2095 = vmatmul.mubr.bf16.gmra.mrb[0].mxu0 %v1307
  %v2096 = vpop.f32.mrb[0].mxu0
  %v2097 = vadd.f32 %v425, %v2096
  %v2098 = vpop.f32.mrb[0].mxu0
  %v2099 = vpop.f32.mrb[0].mxu0
  %v2100 = vadd.f32 %v426, %v2099
  %v2101 = vpop.f32.mrb[0].mxu0
  %2102 = vmatprep.mubr.bf16.mxu0 0
  %2103 = vmatmul.mubr.bf16.gmra.mrb[0].mxu0 %v1310
  %v2104 = vpop.f32.mrb[0].mxu0
  %v2105 = vadd.f32 %v427, %v2104
  %v2106 = vpop.f32.mrb[0].mxu0
  %v2107 = vpop.f32.mrb[0].mxu0
  %v2108 = vadd.f32 %v428, %v2107
  %v2109 = vpop.f32.mrb[0].mxu0
  %2110 = vmatprep.mubr.bf16.mxu0 0
  %2111 = vmatmul.mubr.bf16.gmra.mrb[0].mxu0 %v1313
  %v2112 = vpop.f32.mrb[0].mxu0
  %v2113 = vadd.f32 %v429, %v2112
  %v2114 = vpop.f32.mrb[0].mxu0
  %v2115 = vpop.f32.mrb[0].mxu0
  %v2116 = vadd.f32 %v430, %v2115
  %v2117 = vpop.f32.mrb[0].mxu0
  %2118 = vmatprep.mubr.bf16.mxu0 0
  %2119 = vmatmul.mubr.bf16.gmra.mrb[0].mxu0 %v1316
  %v2120 = vpop.f32.mrb[0].mxu0
  %v2121 = vadd.f32 %v431, %v2120
  %v2122 = vpop.f32.mrb[0].mxu0
  %v2123 = vpop.f32.mrb[0].mxu0
  %v2124 = vadd.f32 %v432, %v2123
  %v2125 = vpop.f32.mrb[0].mxu0
  %2126 = vmatprep.mubr.bf16.mxu0 0
  %2127 = vmatmul.mubr.bf16.gmra.mrb[0].mxu0 %v1319
  %v2128 = vpop.f32.mrb[0].mxu0
  %v2129 = vadd.f32 %v433, %v2128
  %v2130 = vpop.f32.mrb[0].mxu0
  %v2131 = vpop.f32.mrb[0].mxu0
  %v2132 = vadd.f32 %v434, %v2131
  %v2133 = vpop.f32.mrb[0].mxu0
  %2134 = vmatprep.mubr.bf16.mxu0 0
  %2135 = vmatmul.mubr.bf16.gmra.mrb[0].mxu0 %v1322
  %v2136 = vpop.f32.mrb[0].mxu0
  %v2137 = vadd.f32 %v435, %v2136
  %v2138 = vpop.f32.mrb[0].mxu0
  %v2139 = vpop.f32.mrb[0].mxu0
  %v2140 = vadd.f32 %v436, %v2139
  %v2141 = vpop.f32.mrb[0].mxu0
  %2142 = vmatprep.mubr.bf16.mxu0 0
  %2143 = vmatmul.mubr.bf16.gmra.mrb[0].mxu0 %v1325
  %v2144 = vpop.f32.mrb[0].mxu0
  %v2145 = vadd.f32 %v437, %v2144
  %v2146 = vpop.f32.mrb[0].mxu0
  %v2147 = vpop.f32.mrb[0].mxu0
  %v2148 = vadd.f32 %v438, %v2147
  %v2149 = vpop.f32.mrb[0].mxu0
  %2150 = vmatprep.mubr.bf16.mxu0 0
  %2151 = vmatmul.mubr.bf16.gmra.mrb[0].mxu0 %v1328
  %v2152 = vpop.f32.mrb[0].mxu0
  %v2153 = vadd.f32 %v439, %v2152
  %v2154 = vpop.f32.mrb[0].mxu0
  %v2155 = vpop.f32.mrb[0].mxu0
  %v2156 = vadd.f32 %v440, %v2155
  %v2157 = vpop.f32.mrb[0].mxu0
  %2158 = vmatprep.mubr.bf16.mxu0 0
  %2159 = vmatmul.mubr.bf16.gmra.mrb[0].mxu0 %v1331
  %v2160 = vpop.f32.mrb[0].mxu0
  %v2161 = vadd.f32 %v441, %v2160
  %v2162 = vpop.f32.mrb[0].mxu0
  %v2163 = vpop.f32.mrb[0].mxu0
  %v2164 = vadd.f32 %v442, %v2163
  %v2165 = vpop.f32.mrb[0].mxu0
  %2166 = vmatprep.mubr.bf16.mxu0 0
  %2167 = vmatmul.mubr.bf16.gmra.mrb[0].mxu0 %v1334
  %v2168 = vpop.f32.mrb[0].mxu0
  %v2169 = vadd.f32 %v443, %v2168
  %v2170 = vpop.f32.mrb[0].mxu0
  %v2171 = vpop.f32.mrb[0].mxu0
  %v2172 = vadd.f32 %v444, %v2171
  %v2173 = vpop.f32.mrb[0].mxu0
  %2174 = vmatprep.mubr.bf16.mxu0 0
  %2175 = vmatmul.mubr.bf16.gmra.mrb[0].mxu0 %v1337
  %v2176 = vpop.f32.mrb[0].mxu0
  %v2177 = vadd.f32 %v445, %v2176
  %v2178 = vpop.f32.mrb[0].mxu0
  %v2179 = vpop.f32.mrb[0].mxu0
  %v2180 = vadd.f32 %v446, %v2179
  %v2181 = vpop.f32.mrb[0].mxu0
  %2182 = vmatprep.mubr.bf16.mxu0 0
  %2183 = vmatmul.mubr.bf16.gmra.mrb[0].mxu0 %v1340
  %v2184 = vpop.f32.mrb[0].mxu0
  %v2185 = vadd.f32 %v447, %v2184
  %v2186 = vpop.f32.mrb[0].mxu0
  %v2187 = vpop.f32.mrb[0].mxu0
  %v2188 = vadd.f32 %v448, %v2187
  %v2189 = vpop.f32.mrb[0].mxu0
  %2190 = vmatprep.mubr.bf16.mxu0 0
  %2191 = vmatmul.mubr.bf16.gmra.mrb[0].mxu0 %v1343
  %v2192 = vpop.f32.mrb[0].mxu0
  %v2193 = vadd.f32 %v449, %v2192
  %v2194 = vpop.f32.mrb[0].mxu0
  %v2195 = vpop.f32.mrb[0].mxu0
  %v2196 = vadd.f32 %v450, %v2195
  %v2197 = vpop.f32.mrb[0].mxu0
  %2198 = vmatprep.mubr.bf16.mxu0 0
  %2199 = vmatmul.mubr.bf16.gmra.mrb[0].mxu0 %v1346
  %v2200 = vpop.f32.mrb[0].mxu0
  %v2201 = vadd.f32 %v451, %v2200
  %v2202 = vpop.f32.mrb[0].mxu0
  %v2203 = vpop.f32.mrb[0].mxu0
  %v2204 = vadd.f32 %v452, %v2203
  %v2205 = vpop.f32.mrb[0].mxu0
  %2206 = vmatprep.mubr.bf16.mxu0 0
  %2207 = vmatmul.mubr.bf16.gmra.mrb[0].mxu0 %v1349
  %v2208 = vpop.f32.mrb[0].mxu0
  %v2209 = vadd.f32 %v453, %v2208
  %v2210 = vpop.f32.mrb[0].mxu0
  %v2211 = vpop.f32.mrb[0].mxu0
  %v2212 = vadd.f32 %v454, %v2211
  %v2213 = vpop.f32.mrb[0].mxu0
  %2214 = vmatprep.mubr.bf16.mxu0 0
  %2215 = vmatmul.mubr.bf16.gmra.mrb[0].mxu0 %v1352
  %v2216 = vpop.f32.mrb[0].mxu0
  %v2217 = vadd.f32 %v455, %v2216
  %v2218 = vpop.f32.mrb[0].mxu0
  %v2219 = vpop.f32.mrb[0].mxu0
  %v2220 = vadd.f32 %v456, %v2219
  %v2221 = vpop.f32.mrb[0].mxu0
  %2222 = vmatprep.mubr.bf16.mxu0 0
  %2223 = vmatmul.mubr.bf16.gmra.mrb[0].mxu0 %v1355
  %v2224 = vpop.f32.mrb[0].mxu0
  %v2225 = vadd.f32 %v457, %v2224
  %v2226 = vpop.f32.mrb[0].mxu0
  %v2227 = vpop.f32.mrb[0].mxu0
  %v2228 = vadd.f32 %v458, %v2227
  %v2229 = vpop.f32.mrb[0].mxu0
  %2230 = vmatprep.mubr.bf16.mxu0 0
  %2231 = vmatmul.mubr.bf16.gmra.mrb[0].mxu0 %v1358
  %v2232 = vpop.f32.mrb[0].mxu0
  %v2233 = vadd.f32 %v459, %v2232
  %v2234 = vpop.f32.mrb[0].mxu0
  %v2235 = vpop.f32.mrb[0].mxu0
  %v2236 = vadd.f32 %v460, %v2235
  %v2237 = vpop.f32.mrb[0].mxu0
  %2238 = vmatprep.mubr.bf16.mxu0 0
  %2239 = vmatmul.mubr.bf16.gmra.mrb[0].mxu0 %v1361
  %v2240 = vpop.f32.mrb[0].mxu0
  %v2241 = vadd.f32 %v461, %v2240
  %v2242 = vpop.f32.mrb[0].mxu0
  %v2243 = vpop.f32.mrb[0].mxu0
  %v2244 = vadd.f32 %v462, %v2243
  %v2245 = vpop.f32.mrb[0].mxu0
  %2246 = vmatprep.mubr.bf16.mxu0 0
  %2247 = vmatmul.mubr.bf16.gmra.mrb[0].mxu0 %v1364
  %v2248 = vpop.f32.mrb[0].mxu0
  %v2249 = vadd.f32 %v463, %v2248
  %v2250 = vpop.f32.mrb[0].mxu0
  %v2251 = vpop.f32.mrb[0].mxu0
  %v2252 = vadd.f32 %v464, %v2251
  %v2253 = vpop.f32.mrb[0].mxu0
  %2254 = vmatprep.mubr.bf16.mxu0 0
  %2255 = vmatmul.mubr.bf16.gmra.mrb[0].mxu0 %v1367
  %v2256 = vpop.f32.mrb[0].mxu0
  %v2257 = vadd.f32 %v465, %v2256
  %v2258 = vpop.f32.mrb[0].mxu0
  %v2259 = vpop.f32.mrb[0].mxu0
  %v2260 = vadd.f32 %v466, %v2259
  %v2261 = vpop.f32.mrb[0].mxu0
  %2262 = vmatprep.mubr.bf16.mxu0 0
  %2263 = vmatmul.mubr.bf16.gmra.mrb[0].mxu0 %v1370
  %v2264 = vpop.f32.mrb[0].mxu0
  %v2265 = vadd.f32 %v467, %v2264
  %v2266 = vpop.f32.mrb[0].mxu0
  %v2267 = vpop.f32.mrb[0].mxu0
  %v2268 = vadd.f32 %v468, %v2267
  %v2269 = vpop.f32.mrb[0].mxu0
  %2270 = vmatprep.mubr.bf16.mxu0 0
  %2271 = vmatmul.mubr.bf16.gmra.mrb[0].mxu0 %v1373
  %v2272 = vpop.f32.mrb[0].mxu0
  %v2273 = vadd.f32 %v469, %v2272
  %v2274 = vpop.f32.mrb[0].mxu0
  %v2275 = vpop.f32.mrb[0].mxu0
  %v2276 = vadd.f32 %v470, %v2275
  %v2277 = vpop.f32.mrb[0].mxu0
  %2278 = vmatprep.mubr.bf16.mxu0 0
  %2279 = vmatmul.mubr.bf16.gmra.mrb[0].mxu0 %v1376
  %v2280 = vpop.f32.mrb[0].mxu0
  %v2281 = vadd.f32 %v471, %v2280
  %v2282 = vpop.f32.mrb[0].mxu0
  %v2283 = vpop.f32.mrb[0].mxu0
  %v2284 = vadd.f32 %v472, %v2283
  %v2285 = vpop.f32.mrb[0].mxu0
  %2286 = vmatprep.mubr.bf16.mxu0 0
  %2287 = vmatmul.mubr.bf16.gmra.mrb[0].mxu0 %v1379
  %v2288 = vpop.f32.mrb[0].mxu0
  %v2289 = vadd.f32 %v473, %v2288
  %v2290 = vpop.f32.mrb[0].mxu0
  %v2291 = vpop.f32.mrb[0].mxu0
  %v2292 = vadd.f32 %v474, %v2291
  %v2293 = vpop.f32.mrb[0].mxu0
  %2294 = vmatprep.mubr.bf16.mxu0 0
  %2295 = vmatmul.mubr.bf16.gmra.mrb[0].mxu0 %v1382
  %v2296 = vpop.f32.mrb[0].mxu0
  %v2297 = vadd.f32 %v475, %v2296
  %v2298 = vpop.f32.mrb[0].mxu0
  %v2299 = vpop.f32.mrb[0].mxu0
  %v2300 = vadd.f32 %v476, %v2299
  %v2301 = vpop.f32.mrb[0].mxu0
  %2302 = vmatprep.mubr.bf16.mxu0 0
  %2303 = vmatmul.mubr.bf16.gmra.mrb[0].mxu0 %v1385
  %v2304 = vpop.f32.mrb[0].mxu0
  %v2305 = vadd.f32 %v477, %v2304
  %v2306 = vpop.f32.mrb[0].mxu0
  %v2307 = vpop.f32.mrb[0].mxu0
  %v2308 = vadd.f32 %v478, %v2307
  %v2309 = vpop.f32.mrb[0].mxu0
  %2310 = vmatprep.mubr.bf16.mxu0 0
  %2311 = vmatmul.mubr.bf16.gmra.mrb[0].mxu0 %v1388
  %v2312 = vpop.f32.mrb[0].mxu0
  %v2313 = vadd.f32 %v479, %v2312
  %v2314 = vpop.f32.mrb[0].mxu0
  %v2315 = vpop.f32.mrb[0].mxu0
  %v2316 = vadd.f32 %v480, %v2315
  %v2317 = vpop.f32.mrb[0].mxu0
  %2318 = vmatprep.mubr.bf16.mxu0 0
  %2319 = vmatmul.mubr.bf16.gmra.mrb[0].mxu0 %v1391
  %v2320 = vpop.f32.mrb[0].mxu0
  %v2321 = vadd.f32 %v481, %v2320
  %v2322 = vpop.f32.mrb[0].mxu0
  %v2323 = vpop.f32.mrb[0].mxu0
  %v2324 = vadd.f32 %v482, %v2323
  %v2325 = vpop.f32.mrb[0].mxu0
  %2326 = vmatprep.mubr.bf16.mxu0 0
  %2327 = vmatmul.mubr.bf16.gmra.mrb[0].mxu0 %v1394
  %v2328 = vpop.f32.mrb[0].mxu0
  %v2329 = vadd.f32 %v483, %v2328
  %v2330 = vpop.f32.mrb[0].mxu0
  %v2331 = vpop.f32.mrb[0].mxu0
  %v2332 = vadd.f32 %v484, %v2331
  %v2333 = vpop.f32.mrb[0].mxu0
  %2334 = vmatprep.mubr.bf16.mxu0 0
  %2335 = vmatmul.mubr.bf16.gmra.mrb[0].mxu0 %v1397
  %v2336 = vpop.f32.mrb[0].mxu0
  %v2337 = vadd.f32 %v485, %v2336
  %v2338 = vpop.f32.mrb[0].mxu0
  %v2339 = vpop.f32.mrb[0].mxu0
  %v2340 = vadd.f32 %v486, %v2339
  %v2341 = vpop.f32.mrb[0].mxu0
  %2342 = vmatprep.mubr.bf16.mxu0 0
  %2343 = vmatmul.mubr.bf16.gmra.mrb[0].mxu0 %v1400
  %v2344 = vpop.f32.mrb[0].mxu0
  %v2345 = vadd.f32 %v487, %v2344
  %v2346 = vpop.f32.mrb[0].mxu0
  %v2347 = vpop.f32.mrb[0].mxu0
  %v2348 = vadd.f32 %v488, %v2347
  %v2349 = vpop.f32.mrb[0].mxu0
  %2350 = vdwg.mxu0
  %v2351 = vxor.u32 %v1441, 2147483648
  %v2352 = vxor.u32 %v1444, 2147483648
  %v2353 = vxor.u32 %v1449, 2147483648
  %v2354 = vxor.u32 %v1452, 2147483648
  %v2355 = vxor.u32 %v1457, 2147483648
  %v2356 = vxor.u32 %v1460, 2147483648
  %v2357 = vxor.u32 %v1465, 2147483648
  %v2358 = vxor.u32 %v1468, 2147483648
  %v2359 = vxor.u32 %v1473, 2147483648
  %v2360 = vxor.u32 %v1476, 2147483648
  %v2361 = vxor.u32 %v1481, 2147483648
  %v2362 = vxor.u32 %v1484, 2147483648
  %v2363 = vxor.u32 %v1489, 2147483648
  %v2364 = vxor.u32 %v1492, 2147483648
  %v2365 = vxor.u32 %v1497, 2147483648
  %v2366 = vxor.u32 %v1500, 2147483648
  %v2367 = vxor.u32 %v1505, 2147483648
  %v2368 = vxor.u32 %v1508, 2147483648
  %v2369 = vxor.u32 %v1513, 2147483648
  %v2370 = vxor.u32 %v1516, 2147483648
  %v2371 = vxor.u32 %v1521, 2147483648
  %v2372 = vxor.u32 %v1524, 2147483648
  %v2373 = vxor.u32 %v1529, 2147483648
  %v2374 = vxor.u32 %v1532, 2147483648
  %v2375 = vxor.u32 %v1537, 2147483648
  %v2376 = vxor.u32 %v1540, 2147483648
  %v2377 = vxor.u32 %v1545, 2147483648
  %v2378 = vxor.u32 %v1548, 2147483648
  %v2379 = vxor.u32 %v1553, 2147483648
  %v2380 = vxor.u32 %v1556, 2147483648
  %v2381 = vxor.u32 %v1561, 2147483648
  %v2382 = vxor.u32 %v1564, 2147483648
  %v2383 = vxor.u32 %v1569, 2147483648
  %v2384 = vxor.u32 %v1572, 2147483648
  %v2385 = vxor.u32 %v1577, 2147483648
  %v2386 = vxor.u32 %v1580, 2147483648
  %v2387 = vxor.u32 %v1585, 2147483648
  %v2388 = vxor.u32 %v1588, 2147483648
  %v2389 = vxor.u32 %v1593, 2147483648
  %v2390 = vxor.u32 %v1596, 2147483648
  %v2391 = vxor.u32 %v1601, 2147483648
  %v2392 = vxor.u32 %v1604, 2147483648
  %v2393 = vxor.u32 %v1609, 2147483648
  %v2394 = vxor.u32 %v1612, 2147483648
  %v2395 = vxor.u32 %v1617, 2147483648
  %v2396 = vxor.u32 %v1620, 2147483648
  %v2397 = vxor.u32 %v1625, 2147483648
  %v2398 = vxor.u32 %v1628, 2147483648
  %v2399 = vxor.u32 %v1633, 2147483648
  %v2400 = vxor.u32 %v1636, 2147483648
  %v2401 = vxor.u32 %v1641, 2147483648
  %v2402 = vxor.u32 %v1644, 2147483648
  %v2403 = vxor.u32 %v1649, 2147483648
  %v2404 = vxor.u32 %v1652, 2147483648
  %v2405 = vxor.u32 %v1657, 2147483648
  %v2406 = vxor.u32 %v1660, 2147483648
  %v2407 = vxor.u32 %v1665, 2147483648
  %v2408 = vxor.u32 %v1668, 2147483648
  %v2409 = vxor.u32 %v1673, 2147483648
  %v2410 = vxor.u32 %v1676, 2147483648
  %v2411 = vxor.u32 %v1681, 2147483648
  %v2412 = vxor.u32 %v1684, 2147483648
  %v2413 = vxor.u32 %v1689, 2147483648
  %v2414 = vxor.u32 %v1692, 2147483648
  %v2415 = vxor.u32 %v1697, 2147483648
  %v2416 = vxor.u32 %v1700, 2147483648
  %v2417 = vxor.u32 %v1705, 2147483648
  %v2418 = vxor.u32 %v1708, 2147483648
  %v2419 = vxor.u32 %v1713, 2147483648
  %v2420 = vxor.u32 %v1716, 2147483648
  %v2421 = vxor.u32 %v1721, 2147483648
  %v2422 = vxor.u32 %v1724, 2147483648
  %v2423 = vxor.u32 %v1729, 2147483648
  %v2424 = vxor.u32 %v1732, 2147483648
  %v2425 = vxor.u32 %v1737, 2147483648
  %v2426 = vxor.u32 %v1740, 2147483648
  %v2427 = vxor.u32 %v1745, 2147483648
  %v2428 = vxor.u32 %v1748, 2147483648
  %v2429 = vxor.u32 %v1753, 2147483648
  %v2430 = vxor.u32 %v1756, 2147483648
  %v2431 = vxor.u32 %v1761, 2147483648
  %v2432 = vxor.u32 %v1764, 2147483648
  %v2433 = vxor.u32 %v1769, 2147483648
  %v2434 = vxor.u32 %v1772, 2147483648
  %v2435 = vxor.u32 %v1777, 2147483648
  %v2436 = vxor.u32 %v1780, 2147483648
  %v2437 = vxor.u32 %v1785, 2147483648
  %v2438 = vxor.u32 %v1788, 2147483648
  %v2439 = vxor.u32 %v1793, 2147483648
  %v2440 = vxor.u32 %v1796, 2147483648
  %v2441 = vxor.u32 %v1801, 2147483648
  %v2442 = vxor.u32 %v1804, 2147483648
  %v2443 = vxor.u32 %v1809, 2147483648
  %v2444 = vxor.u32 %v1812, 2147483648
  %v2445 = vxor.u32 %v1817, 2147483648
  %v2446 = vxor.u32 %v1820, 2147483648
  %v2447 = vxor.u32 %v1825, 2147483648
  %v2448 = vxor.u32 %v1828, 2147483648
  %v2449 = vxor.u32 %v1833, 2147483648
  %v2450 = vxor.u32 %v1836, 2147483648
  %v2451 = vxor.u32 %v1841, 2147483648
  %v2452 = vxor.u32 %v1844, 2147483648
  %v2453 = vxor.u32 %v1849, 2147483648
  %v2454 = vxor.u32 %v1852, 2147483648
  %v2455 = vxor.u32 %v1857, 2147483648
  %v2456 = vxor.u32 %v1860, 2147483648
  %v2457 = vxor.u32 %v1865, 2147483648
  %v2458 = vxor.u32 %v1868, 2147483648
  %v2459 = vxor.u32 %v1873, 2147483648
  %v2460 = vxor.u32 %v1876, 2147483648
  %v2461 = vxor.u32 %v1881, 2147483648
  %v2462 = vxor.u32 %v1884, 2147483648
  %v2463 = vxor.u32 %v1889, 2147483648
  %v2464 = vxor.u32 %v1892, 2147483648
  %v2465 = vxor.u32 %v1897, 2147483648
  %v2466 = vxor.u32 %v1900, 2147483648
  %v2467 = vxor.u32 %v1905, 2147483648
  %v2468 = vxor.u32 %v1908, 2147483648
  %v2469 = vxor.u32 %v1913, 2147483648
  %v2470 = vxor.u32 %v1916, 2147483648
  %v2471 = vxor.u32 %v1921, 2147483648
  %v2472 = vxor.u32 %v1924, 2147483648
  %v2473 = vxor.u32 %v1929, 2147483648
  %v2474 = vxor.u32 %v1932, 2147483648
  %v2475 = vxor.u32 %v1937, 2147483648
  %v2476 = vxor.u32 %v1940, 2147483648
  %v2477 = vxor.u32 %v1945, 2147483648
  %v2478 = vxor.u32 %v1948, 2147483648
  %v2479 = vxor.u32 %v1953, 2147483648
  %v2480 = vxor.u32 %v1956, 2147483648
  %v2481 = vxor.u32 %v1961, 2147483648
  %v2482 = vxor.u32 %v1964, 2147483648
  %v2483 = vxor.u32 %v1969, 2147483648
  %v2484 = vxor.u32 %v1972, 2147483648
  %v2485 = vxor.u32 %v1977, 2147483648
  %v2486 = vxor.u32 %v1980, 2147483648
  %v2487 = vxor.u32 %v1985, 2147483648
  %v2488 = vxor.u32 %v1988, 2147483648
  %v2489 = vxor.u32 %v1993, 2147483648
  %v2490 = vxor.u32 %v1996, 2147483648
  %v2491 = vxor.u32 %v2001, 2147483648
  %v2492 = vxor.u32 %v2004, 2147483648
  %v2493 = vxor.u32 %v2009, 2147483648
  %v2494 = vxor.u32 %v2012, 2147483648
  %v2495 = vxor.u32 %v2017, 2147483648
  %v2496 = vxor.u32 %v2020, 2147483648
  %v2497 = vxor.u32 %v2025, 2147483648
  %v2498 = vxor.u32 %v2028, 2147483648
  %v2499 = vxor.u32 %v2033, 2147483648
  %v2500 = vxor.u32 %v2036, 2147483648
  %v2501 = vxor.u32 %v2041, 2147483648
  %v2502 = vxor.u32 %v2044, 2147483648
  %v2503 = vxor.u32 %v2049, 2147483648
  %v2504 = vxor.u32 %v2052, 2147483648
  %v2505 = vxor.u32 %v2057, 2147483648
  %v2506 = vxor.u32 %v2060, 2147483648
  %v2507 = vxor.u32 %v2065, 2147483648
  %v2508 = vxor.u32 %v2068, 2147483648
  %v2509 = vxor.u32 %v2073, 2147483648
  %v2510 = vxor.u32 %v2076, 2147483648
  %v2511 = vxor.u32 %v2081, 2147483648
  %v2512 = vxor.u32 %v2084, 2147483648
  %v2513 = vxor.u32 %v2089, 2147483648
  %v2514 = vxor.u32 %v2092, 2147483648
  %v2515 = vxor.u32 %v2097, 2147483648
  %v2516 = vxor.u32 %v2100, 2147483648
  %v2517 = vxor.u32 %v2105, 2147483648
  %v2518 = vxor.u32 %v2108, 2147483648
  %v2519 = vxor.u32 %v2113, 2147483648
  %v2520 = vxor.u32 %v2116, 2147483648
  %v2521 = vxor.u32 %v2121, 2147483648
  %v2522 = vxor.u32 %v2124, 2147483648
  %v2523 = vxor.u32 %v2129, 2147483648
  %v2524 = vxor.u32 %v2132, 2147483648
  %v2525 = vxor.u32 %v2137, 2147483648
  %v2526 = vxor.u32 %v2140, 2147483648
  %v2527 = vxor.u32 %v2145, 2147483648
  %v2528 = vxor.u32 %v2148, 2147483648
  %v2529 = vxor.u32 %v2153, 2147483648
  %v2530 = vxor.u32 %v2156, 2147483648
  %v2531 = vxor.u32 %v2161, 2147483648
  %v2532 = vxor.u32 %v2164, 2147483648
  %v2533 = vxor.u32 %v2169, 2147483648
  %v2534 = vxor.u32 %v2172, 2147483648
  %v2535 = vxor.u32 %v2177, 2147483648
  %v2536 = vxor.u32 %v2180, 2147483648
  %v2537 = vxor.u32 %v2185, 2147483648
  %v2538 = vxor.u32 %v2188, 2147483648
  %v2539 = vxor.u32 %v2193, 2147483648
  %v2540 = vxor.u32 %v2196, 2147483648
  %v2541 = vxor.u32 %v2201, 2147483648
  %v2542 = vxor.u32 %v2204, 2147483648
  %v2543 = vxor.u32 %v2209, 2147483648
  %v2544 = vxor.u32 %v2212, 2147483648
  %v2545 = vxor.u32 %v2217, 2147483648
  %v2546 = vxor.u32 %v2220, 2147483648
  %v2547 = vxor.u32 %v2225, 2147483648
  %v2548 = vxor.u32 %v2228, 2147483648
  %v2549 = vxor.u32 %v2233, 2147483648
  %v2550 = vxor.u32 %v2236, 2147483648
  %v2551 = vxor.u32 %v2241, 2147483648
  %v2552 = vxor.u32 %v2244, 2147483648
  %v2553 = vxor.u32 %v2249, 2147483648
  %v2554 = vxor.u32 %v2252, 2147483648
  %v2555 = vxor.u32 %v2257, 2147483648
  %v2556 = vxor.u32 %v2260, 2147483648
  %v2557 = vxor.u32 %v2265, 2147483648
  %v2558 = vxor.u32 %v2268, 2147483648
  %v2559 = vxor.u32 %v2273, 2147483648
  %v2560 = vxor.u32 %v2276, 2147483648
  %v2561 = vxor.u32 %v2281, 2147483648
  %v2562 = vxor.u32 %v2284, 2147483648
  %v2563 = vxor.u32 %v2289, 2147483648
  %v2564 = vxor.u32 %v2292, 2147483648
  %v2565 = vxor.u32 %v2297, 2147483648
  %v2566 = vxor.u32 %v2300, 2147483648
  %v2567 = vxor.u32 %v2305, 2147483648
  %v2568 = vxor.u32 %v2308, 2147483648
  %v2569 = vxor.u32 %v2313, 2147483648
  %v2570 = vxor.u32 %v2316, 2147483648
  %v2571 = vxor.u32 %v2321, 2147483648
  %v2572 = vxor.u32 %v2324, 2147483648
  %v2573 = vxor.u32 %v2329, 2147483648
  %v2574 = vxor.u32 %v2332, 2147483648
  %v2575 = vxor.u32 %v2337, 2147483648
  %v2576 = vxor.u32 %v2340, 2147483648
  %v2577 = vxor.u32 %v2345, 2147483648
  %v2578 = vxor.u32 %v2348, 2147483648
  %v2579 = vmul.f32 %v2351, 1.442695
  %v2580 = vpow.pop %v2579
  %v2581 = vmul.f32 %v2352, 1.442695
  %v2582 = vpow.pop %v2581
  %v2583 = vmul.f32 %v2353, 1.442695
  %v2584 = vpow.pop %v2583
  %v2585 = vmul.f32 %v2354, 1.442695
  %v2586 = vpow.pop %v2585
  %v2587 = vmul.f32 %v2355, 1.442695
  %v2588 = vpow.pop %v2587
  %v2589 = vmul.f32 %v2356, 1.442695
  %v2590 = vpow.pop %v2589
  %v2591 = vmul.f32 %v2357, 1.442695
  %v2592 = vpow.pop %v2591
  %v2593 = vmul.f32 %v2358, 1.442695
  %v2594 = vpow.pop %v2593
  %v2595 = vmul.f32 %v2359, 1.442695
  %v2596 = vpow.pop %v2595
  %v2597 = vmul.f32 %v2360, 1.442695
  %v2598 = vpow.pop %v2597
  %v2599 = vmul.f32 %v2361, 1.442695
  %v2600 = vpow.pop %v2599
  %v2601 = vmul.f32 %v2362, 1.442695
  %v2602 = vpow.pop %v2601
  %v2603 = vmul.f32 %v2363, 1.442695
  %v2604 = vpow.pop %v2603
  %v2605 = vmul.f32 %v2364, 1.442695
  %v2606 = vpow.pop %v2605
  %v2607 = vmul.f32 %v2365, 1.442695
  %v2608 = vpow.pop %v2607
  %v2609 = vmul.f32 %v2366, 1.442695
  %v2610 = vpow.pop %v2609
  %v2611 = vmul.f32 %v2367, 1.442695
  %v2612 = vpow.pop %v2611
  %v2613 = vmul.f32 %v2368, 1.442695
  %v2614 = vpow.pop %v2613
  %v2615 = vmul.f32 %v2369, 1.442695
  %v2616 = vpow.pop %v2615
  %v2617 = vmul.f32 %v2370, 1.442695
  %v2618 = vpow.pop %v2617
  %v2619 = vmul.f32 %v2371, 1.442695
  %v2620 = vpow.pop %v2619
  %v2621 = vmul.f32 %v2372, 1.442695
  %v2622 = vpow.pop %v2621
  %v2623 = vmul.f32 %v2373, 1.442695
  %v2624 = vpow.pop %v2623
  %v2625 = vmul.f32 %v2374, 1.442695
  %v2626 = vpow.pop %v2625
  %v2627 = vmul.f32 %v2375, 1.442695
  %v2628 = vpow.pop %v2627
  %v2629 = vmul.f32 %v2376, 1.442695
  %v2630 = vpow.pop %v2629
  %v2631 = vmul.f32 %v2377, 1.442695
  %v2632 = vpow.pop %v2631
  %v2633 = vmul.f32 %v2378, 1.442695
  %v2634 = vpow.pop %v2633
  %v2635 = vmul.f32 %v2379, 1.442695
  %v2636 = vpow.pop %v2635
  %v2637 = vmul.f32 %v2380, 1.442695
  %v2638 = vpow.pop %v2637
  %v2639 = vmul.f32 %v2381, 1.442695
  %v2640 = vpow.pop %v2639
  %v2641 = vmul.f32 %v2382, 1.442695
  %v2642 = vpow.pop %v2641
  %v2643 = vmul.f32 %v2383, 1.442695
  %v2644 = vpow.pop %v2643
  %v2645 = vmul.f32 %v2384, 1.442695
  %v2646 = vpow.pop %v2645
  %v2647 = vmul.f32 %v2385, 1.442695
  %v2648 = vpow.pop %v2647
  %v2649 = vmul.f32 %v2386, 1.442695
  %v2650 = vpow.pop %v2649
  %v2651 = vmul.f32 %v2387, 1.442695
  %v2652 = vpow.pop %v2651
  %v2653 = vmul.f32 %v2388, 1.442695
  %v2654 = vpow.pop %v2653
  %v2655 = vmul.f32 %v2389, 1.442695
  %v2656 = vpow.pop %v2655
  %v2657 = vmul.f32 %v2390, 1.442695
  %v2658 = vpow.pop %v2657
  %v2659 = vmul.f32 %v2391, 1.442695
  %v2660 = vpow.pop %v2659
  %v2661 = vmul.f32 %v2392, 1.442695
  %v2662 = vpow.pop %v2661
  %v2663 = vmul.f32 %v2393, 1.442695
  %v2664 = vpow.pop %v2663
  %v2665 = vmul.f32 %v2394, 1.442695
  %v2666 = vpow.pop %v2665
  %v2667 = vmul.f32 %v2395, 1.442695
  %v2668 = vpow.pop %v2667
  %v2669 = vmul.f32 %v2396, 1.442695
  %v2670 = vpow.pop %v2669
  %v2671 = vmul.f32 %v2397, 1.442695
  %v2672 = vpow.pop %v2671
  %v2673 = vmul.f32 %v2398, 1.442695
  %v2674 = vpow.pop %v2673
  %v2675 = vmul.f32 %v2399, 1.442695
  %v2676 = vpow.pop %v2675
  %v2677 = vmul.f32 %v2400, 1.442695
  %v2678 = vpow.pop %v2677
  %v2679 = vmul.f32 %v2401, 1.442695
  %v2680 = vpow.pop %v2679
  %v2681 = vmul.f32 %v2402, 1.442695
  %v2682 = vpow.pop %v2681
  %v2683 = vmul.f32 %v2403, 1.442695
  %v2684 = vpow.pop %v2683
  %v2685 = vmul.f32 %v2404, 1.442695
  %v2686 = vpow.pop %v2685
  %v2687 = vmul.f32 %v2405, 1.442695
  %v2688 = vpow.pop %v2687
  %v2689 = vmul.f32 %v2406, 1.442695
  %v2690 = vpow.pop %v2689
  %v2691 = vmul.f32 %v2407, 1.442695
  %v2692 = vpow.pop %v2691
  %v2693 = vmul.f32 %v2408, 1.442695
  %v2694 = vpow.pop %v2693
  %v2695 = vmul.f32 %v2409, 1.442695
  %v2696 = vpow.pop %v2695
  %v2697 = vmul.f32 %v2410, 1.442695
  %v2698 = vpow.pop %v2697
  %v2699 = vmul.f32 %v2411, 1.442695
  %v2700 = vpow.pop %v2699
  %v2701 = vmul.f32 %v2412, 1.442695
  %v2702 = vpow.pop %v2701
  %v2703 = vmul.f32 %v2413, 1.442695
  %v2704 = vpow.pop %v2703
  %v2705 = vmul.f32 %v2414, 1.442695
  %v2706 = vpow.pop %v2705
  %v2707 = vmul.f32 %v2415, 1.442695
  %v2708 = vpow.pop %v2707
  %v2709 = vmul.f32 %v2416, 1.442695
  %v2710 = vpow.pop %v2709
  %v2711 = vmul.f32 %v2417, 1.442695
  %v2712 = vpow.pop %v2711
  %v2713 = vmul.f32 %v2418, 1.442695
  %v2714 = vpow.pop %v2713
  %v2715 = vmul.f32 %v2419, 1.442695
  %v2716 = vpow.pop %v2715
  %v2717 = vmul.f32 %v2420, 1.442695
  %v2718 = vpow.pop %v2717
  %v2719 = vmul.f32 %v2421, 1.442695
  %v2720 = vpow.pop %v2719
  %v2721 = vmul.f32 %v2422, 1.442695
  %v2722 = vpow.pop %v2721
  %v2723 = vmul.f32 %v2423, 1.442695
  %v2724 = vpow.pop %v2723
  %v2725 = vmul.f32 %v2424, 1.442695
  %v2726 = vpow.pop %v2725
  %v2727 = vmul.f32 %v2425, 1.442695
  %v2728 = vpow.pop %v2727
  %v2729 = vmul.f32 %v2426, 1.442695
  %v2730 = vpow.pop %v2729
  %v2731 = vmul.f32 %v2427, 1.442695
  %v2732 = vpow.pop %v2731
  %v2733 = vmul.f32 %v2428, 1.442695
  %v2734 = vpow.pop %v2733
  %v2735 = vmul.f32 %v2429, 1.442695
  %v2736 = vpow.pop %v2735
  %v2737 = vmul.f32 %v2430, 1.442695
  %v2738 = vpow.pop %v2737
  %v2739 = vmul.f32 %v2431, 1.442695
  %v2740 = vpow.pop %v2739
  %v2741 = vmul.f32 %v2432, 1.442695
  %v2742 = vpow.pop %v2741
  %v2743 = vmul.f32 %v2433, 1.442695
  %v2744 = vpow.pop %v2743
  %v2745 = vmul.f32 %v2434, 1.442695
  %v2746 = vpow.pop %v2745
  %v2747 = vmul.f32 %v2435, 1.442695
  %v2748 = vpow.pop %v2747
  %v2749 = vmul.f32 %v2436, 1.442695
  %v2750 = vpow.pop %v2749
  %v2751 = vmul.f32 %v2437, 1.442695
  %v2752 = vpow.pop %v2751
  %v2753 = vmul.f32 %v2438, 1.442695
  %v2754 = vpow.pop %v2753
  %v2755 = vmul.f32 %v2439, 1.442695
  %v2756 = vpow.pop %v2755
  %v2757 = vmul.f32 %v2440, 1.442695
  %v2758 = vpow.pop %v2757
  %v2759 = vmul.f32 %v2441, 1.442695
  %v2760 = vpow.pop %v2759
  %v2761 = vmul.f32 %v2442, 1.442695
  %v2762 = vpow.pop %v2761
  %v2763 = vmul.f32 %v2443, 1.442695
  %v2764 = vpow.pop %v2763
  %v2765 = vmul.f32 %v2444, 1.442695
  %v2766 = vpow.pop %v2765
  %v2767 = vmul.f32 %v2445, 1.442695
  %v2768 = vpow.pop %v2767
  %v2769 = vmul.f32 %v2446, 1.442695
  %v2770 = vpow.pop %v2769
  %v2771 = vmul.f32 %v2447, 1.442695
  %v2772 = vpow.pop %v2771
  %v2773 = vmul.f32 %v2448, 1.442695
  %v2774 = vpow.pop %v2773
  %v2775 = vmul.f32 %v2449, 1.442695
  %v2776 = vpow.pop %v2775
  %v2777 = vmul.f32 %v2450, 1.442695
  %v2778 = vpow.pop %v2777
  %v2779 = vmul.f32 %v2451, 1.442695
  %v2780 = vpow.pop %v2779
  %v2781 = vmul.f32 %v2452, 1.442695
  %v2782 = vpow.pop %v2781
  %v2783 = vmul.f32 %v2453, 1.442695
  %v2784 = vpow.pop %v2783
  %v2785 = vmul.f32 %v2454, 1.442695
  %v2786 = vpow.pop %v2785
  %v2787 = vmul.f32 %v2455, 1.442695
  %v2788 = vpow.pop %v2787
  %v2789 = vmul.f32 %v2456, 1.442695
  %v2790 = vpow.pop %v2789
  %v2791 = vmul.f32 %v2457, 1.442695
  %v2792 = vpow.pop %v2791
  %v2793 = vmul.f32 %v2458, 1.442695
  %v2794 = vpow.pop %v2793
  %v2795 = vmul.f32 %v2459, 1.442695
  %v2796 = vpow.pop %v2795
  %v2797 = vmul.f32 %v2460, 1.442695
  %v2798 = vpow.pop %v2797
  %v2799 = vmul.f32 %v2461, 1.442695
  %v2800 = vpow.pop %v2799
  %v2801 = vmul.f32 %v2462, 1.442695
  %v2802 = vpow.pop %v2801
  %v2803 = vmul.f32 %v2463, 1.442695
  %v2804 = vpow.pop %v2803
  %v2805 = vmul.f32 %v2464, 1.442695
  %v2806 = vpow.pop %v2805
  %v2807 = vmul.f32 %v2465, 1.442695
  %v2808 = vpow.pop %v2807
  %v2809 = vmul.f32 %v2466, 1.442695
  %v2810 = vpow.pop %v2809
  %v2811 = vmul.f32 %v2467, 1.442695
  %v2812 = vpow.pop %v2811
  %v2813 = vmul.f32 %v2468, 1.442695
  %v2814 = vpow.pop %v2813
  %v2815 = vmul.f32 %v2469, 1.442695
  %v2816 = vpow.pop %v2815
  %v2817 = vmul.f32 %v2470, 1.442695
  %v2818 = vpow.pop %v2817
  %v2819 = vmul.f32 %v2471, 1.442695
  %v2820 = vpow.pop %v2819
  %v2821 = vmul.f32 %v2472, 1.442695
  %v2822 = vpow.pop %v2821
  %v2823 = vmul.f32 %v2473, 1.442695
  %v2824 = vpow.pop %v2823
  %v2825 = vmul.f32 %v2474, 1.442695
  %v2826 = vpow.pop %v2825
  %v2827 = vmul.f32 %v2475, 1.442695
  %v2828 = vpow.pop %v2827
  %v2829 = vmul.f32 %v2476, 1.442695
  %v2830 = vpow.pop %v2829
  %v2831 = vmul.f32 %v2477, 1.442695
  %v2832 = vpow.pop %v2831
  %v2833 = vmul.f32 %v2478, 1.442695
  %v2834 = vpow.pop %v2833
  %v2835 = vmul.f32 %v2479, 1.442695
  %v2836 = vpow.pop %v2835
  %v2837 = vmul.f32 %v2480, 1.442695
  %v2838 = vpow.pop %v2837
  %v2839 = vmul.f32 %v2481, 1.442695
  %v2840 = vpow.pop %v2839
  %v2841 = vmul.f32 %v2482, 1.442695
  %v2842 = vpow.pop %v2841
  %v2843 = vmul.f32 %v2483, 1.442695
  %v2844 = vpow.pop %v2843
  %v2845 = vmul.f32 %v2484, 1.442695
  %v2846 = vpow.pop %v2845
  %v2847 = vmul.f32 %v2485, 1.442695
  %v2848 = vpow.pop %v2847
  %v2849 = vmul.f32 %v2486, 1.442695
  %v2850 = vpow.pop %v2849
  %v2851 = vmul.f32 %v2487, 1.442695
  %v2852 = vpow.pop %v2851
  %v2853 = vmul.f32 %v2488, 1.442695
  %v2854 = vpow.pop %v2853
  %v2855 = vmul.f32 %v2489, 1.442695
  %v2856 = vpow.pop %v2855
  %v2857 = vmul.f32 %v2490, 1.442695
  %v2858 = vpow.pop %v2857
  %v2859 = vmul.f32 %v2491, 1.442695
  %v2860 = vpow.pop %v2859
  %v2861 = vmul.f32 %v2492, 1.442695
  %v2862 = vpow.pop %v2861
  %v2863 = vmul.f32 %v2493, 1.442695
  %v2864 = vpow.pop %v2863
  %v2865 = vmul.f32 %v2494, 1.442695
  %v2866 = vpow.pop %v2865
  %v2867 = vmul.f32 %v2495, 1.442695
  %v2868 = vpow.pop %v2867
  %v2869 = vmul.f32 %v2496, 1.442695
  %v2870 = vpow.pop %v2869
  %v2871 = vmul.f32 %v2497, 1.442695
  %v2872 = vpow.pop %v2871
  %v2873 = vmul.f32 %v2498, 1.442695
  %v2874 = vpow.pop %v2873
  %v2875 = vmul.f32 %v2499, 1.442695
  %v2876 = vpow.pop %v2875
  %v2877 = vmul.f32 %v2500, 1.442695
  %v2878 = vpow.pop %v2877
  %v2879 = vmul.f32 %v2501, 1.442695
  %v2880 = vpow.pop %v2879
  %v2881 = vmul.f32 %v2502, 1.442695
  %v2882 = vpow.pop %v2881
  %v2883 = vmul.f32 %v2503, 1.442695
  %v2884 = vpow.pop %v2883
  %v2885 = vmul.f32 %v2504, 1.442695
  %v2886 = vpow.pop %v2885
  %v2887 = vmul.f32 %v2505, 1.442695
  %v2888 = vpow.pop %v2887
  %v2889 = vmul.f32 %v2506, 1.442695
  %v2890 = vpow.pop %v2889
  %v2891 = vmul.f32 %v2507, 1.442695
  %v2892 = vpow.pop %v2891
  %v2893 = vmul.f32 %v2508, 1.442695
  %v2894 = vpow.pop %v2893
  %v2895 = vmul.f32 %v2509, 1.442695
  %v2896 = vpow.pop %v2895
  %v2897 = vmul.f32 %v2510, 1.442695
  %v2898 = vpow.pop %v2897
  %v2899 = vmul.f32 %v2511, 1.442695
  %v2900 = vpow.pop %v2899
  %v2901 = vmul.f32 %v2512, 1.442695
  %v2902 = vpow.pop %v2901
  %v2903 = vmul.f32 %v2513, 1.442695
  %v2904 = vpow.pop %v2903
  %v2905 = vmul.f32 %v2514, 1.442695
  %v2906 = vpow.pop %v2905
  %v2907 = vmul.f32 %v2515, 1.442695
  %v2908 = vpow.pop %v2907
  %v2909 = vmul.f32 %v2516, 1.442695
  %v2910 = vpow.pop %v2909
  %v2911 = vmul.f32 %v2517, 1.442695
  %v2912 = vpow.pop %v2911
  %v2913 = vmul.f32 %v2518, 1.442695
  %v2914 = vpow.pop %v2913
  %v2915 = vmul.f32 %v2519, 1.442695
  %v2916 = vpow.pop %v2915
  %v2917 = vmul.f32 %v2520, 1.442695
  %v2918 = vpow.pop %v2917
  %v2919 = vmul.f32 %v2521, 1.442695
  %v2920 = vpow.pop %v2919
  %v2921 = vmul.f32 %v2522, 1.442695
  %v2922 = vpow.pop %v2921
  %v2923 = vmul.f32 %v2523, 1.442695
  %v2924 = vpow.pop %v2923
  %v2925 = vmul.f32 %v2524, 1.442695
  %v2926 = vpow.pop %v2925
  %v2927 = vmul.f32 %v2525, 1.442695
  %v2928 = vpow.pop %v2927
  %v2929 = vmul.f32 %v2526, 1.442695
  %v2930 = vpow.pop %v2929
  %v2931 = vmul.f32 %v2527, 1.442695
  %v2932 = vpow.pop %v2931
  %v2933 = vmul.f32 %v2528, 1.442695
  %v2934 = vpow.pop %v2933
  %v2935 = vmul.f32 %v2529, 1.442695
  %v2936 = vpow.pop %v2935
  %v2937 = vmul.f32 %v2530, 1.442695
  %v2938 = vpow.pop %v2937
  %v2939 = vmul.f32 %v2531, 1.442695
  %v2940 = vpow.pop %v2939
  %v2941 = vmul.f32 %v2532, 1.442695
  %v2942 = vpow.pop %v2941
  %v2943 = vmul.f32 %v2533, 1.442695
  %v2944 = vpow.pop %v2943
  %v2945 = vmul.f32 %v2534, 1.442695
  %v2946 = vpow.pop %v2945
  %v2947 = vmul.f32 %v2535, 1.442695
  %v2948 = vpow.pop %v2947
  %v2949 = vmul.f32 %v2536, 1.442695
  %v2950 = vpow.pop %v2949
  %v2951 = vmul.f32 %v2537, 1.442695
  %v2952 = vpow.pop %v2951
  %v2953 = vmul.f32 %v2538, 1.442695
  %v2954 = vpow.pop %v2953
  %v2955 = vmul.f32 %v2539, 1.442695
  %v2956 = vpow.pop %v2955
  %v2957 = vmul.f32 %v2540, 1.442695
  %v2958 = vpow.pop %v2957
  %v2959 = vmul.f32 %v2541, 1.442695
  %v2960 = vpow.pop %v2959
  %v2961 = vmul.f32 %v2542, 1.442695
  %v2962 = vpow.pop %v2961
  %v2963 = vmul.f32 %v2543, 1.442695
  %v2964 = vpow.pop %v2963
  %v2965 = vmul.f32 %v2544, 1.442695
  %v2966 = vpow.pop %v2965
  %v2967 = vmul.f32 %v2545, 1.442695
  %v2968 = vpow.pop %v2967
  %v2969 = vmul.f32 %v2546, 1.442695
  %v2970 = vpow.pop %v2969
  %v2971 = vmul.f32 %v2547, 1.442695
  %v2972 = vpow.pop %v2971
  %v2973 = vmul.f32 %v2548, 1.442695
  %v2974 = vpow.pop %v2973
  %v2975 = vmul.f32 %v2549, 1.442695
  %v2976 = vpow.pop %v2975
  %v2977 = vmul.f32 %v2550, 1.442695
  %v2978 = vpow.pop %v2977
  %v2979 = vmul.f32 %v2551, 1.442695
  %v2980 = vpow.pop %v2979
  %v2981 = vmul.f32 %v2552, 1.442695
  %v2982 = vpow.pop %v2981
  %v2983 = vmul.f32 %v2553, 1.442695
  %v2984 = vpow.pop %v2983
  %v2985 = vmul.f32 %v2554, 1.442695
  %v2986 = vpow.pop %v2985
  %v2987 = vmul.f32 %v2555, 1.442695
  %v2988 = vpow.pop %v2987
  %v2989 = vmul.f32 %v2556, 1.442695
  %v2990 = vpow.pop %v2989
  %v2991 = vmul.f32 %v2557, 1.442695
  %v2992 = vpow.pop %v2991
  %v2993 = vmul.f32 %v2558, 1.442695
  %v2994 = vpow.pop %v2993
  %v2995 = vmul.f32 %v2559, 1.442695
  %v2996 = vpow.pop %v2995
  %v2997 = vmul.f32 %v2560, 1.442695
  %v2998 = vpow.pop %v2997
  %v2999 = vmul.f32 %v2561, 1.442695
  %v3000 = vpow.pop %v2999
  %v3001 = vmul.f32 %v2562, 1.442695
  %v3002 = vpow.pop %v3001
  %v3003 = vmul.f32 %v2563, 1.442695
  %v3004 = vpow.pop %v3003
  %v3005 = vmul.f32 %v2564, 1.442695
  %v3006 = vpow.pop %v3005
  %v3007 = vmul.f32 %v2565, 1.442695
  %v3008 = vpow.pop %v3007
  %v3009 = vmul.f32 %v2566, 1.442695
  %v3010 = vpow.pop %v3009
  %v3011 = vmul.f32 %v2567, 1.442695
  %v3012 = vpow.pop %v3011
  %v3013 = vmul.f32 %v2568, 1.442695
  %v3014 = vpow.pop %v3013
  %v3015 = vmul.f32 %v2569, 1.442695
  %v3016 = vpow.pop %v3015
  %v3017 = vmul.f32 %v2570, 1.442695
  %v3018 = vpow.pop %v3017
  %v3019 = vmul.f32 %v2571, 1.442695
  %v3020 = vpow.pop %v3019
  %v3021 = vmul.f32 %v2572, 1.442695
  %v3022 = vpow.pop %v3021
  %v3023 = vmul.f32 %v2573, 1.442695
  %v3024 = vpow.pop %v3023
  %v3025 = vmul.f32 %v2574, 1.442695
  %v3026 = vpow.pop %v3025
  %v3027 = vmul.f32 %v2575, 1.442695
  %v3028 = vpow.pop %v3027
  %v3029 = vmul.f32 %v2576, 1.442695
  %v3030 = vpow.pop %v3029
  %v3031 = vmul.f32 %v2577, 1.442695
  %v3032 = vpow.pop %v3031
  %v3033 = vmul.f32 %v2578, 1.442695
  %v3034 = vpow.pop %v3033
  %v3035 = vadd.f32 %v2580, 1.0
  %v3036 = vadd.f32 %v2582, 1.0
  %v3037 = vadd.f32 %v2584, 1.0
  %v3038 = vadd.f32 %v2586, 1.0
  %v3039 = vadd.f32 %v2588, 1.0
  %v3040 = vadd.f32 %v2590, 1.0
  %v3041 = vadd.f32 %v2592, 1.0
  %v3042 = vadd.f32 %v2594, 1.0
  %v3043 = vadd.f32 %v2596, 1.0
  %v3044 = vadd.f32 %v2598, 1.0
  %v3045 = vadd.f32 %v2600, 1.0
  %v3046 = vadd.f32 %v2602, 1.0
  %v3047 = vadd.f32 %v2604, 1.0
  %v3048 = vadd.f32 %v2606, 1.0
  %v3049 = vadd.f32 %v2608, 1.0
  %v3050 = vadd.f32 %v2610, 1.0
  %v3051 = vadd.f32 %v2612, 1.0
  %v3052 = vadd.f32 %v2614, 1.0
  %v3053 = vadd.f32 %v2616, 1.0
  %v3054 = vadd.f32 %v2618, 1.0
  %v3055 = vadd.f32 %v2620, 1.0
  %v3056 = vadd.f32 %v2622, 1.0
  %v3057 = vadd.f32 %v2624, 1.0
  %v3058 = vadd.f32 %v2626, 1.0
  %v3059 = vadd.f32 %v2628, 1.0
  %v3060 = vadd.f32 %v2630, 1.0
  %v3061 = vadd.f32 %v2632, 1.0
  %v3062 = vadd.f32 %v2634, 1.0
  %v3063 = vadd.f32 %v2636, 1.0
  %v3064 = vadd.f32 %v2638, 1.0
  %v3065 = vadd.f32 %v2640, 1.0
  %v3066 = vadd.f32 %v2642, 1.0
  %v3067 = vadd.f32 %v2644, 1.0
  %v3068 = vadd.f32 %v2646, 1.0
  %v3069 = vadd.f32 %v2648, 1.0
  %v3070 = vadd.f32 %v2650, 1.0
  %v3071 = vadd.f32 %v2652, 1.0
  %v3072 = vadd.f32 %v2654, 1.0
  %v3073 = vadd.f32 %v2656, 1.0
  %v3074 = vadd.f32 %v2658, 1.0
  %v3075 = vadd.f32 %v2660, 1.0
  %v3076 = vadd.f32 %v2662, 1.0
  %v3077 = vadd.f32 %v2664, 1.0
  %v3078 = vadd.f32 %v2666, 1.0
  %v3079 = vadd.f32 %v2668, 1.0
  %v3080 = vadd.f32 %v2670, 1.0
  %v3081 = vadd.f32 %v2672, 1.0
  %v3082 = vadd.f32 %v2674, 1.0
  %v3083 = vadd.f32 %v2676, 1.0
  %v3084 = vadd.f32 %v2678, 1.0
  %v3085 = vadd.f32 %v2680, 1.0
  %v3086 = vadd.f32 %v2682, 1.0
  %v3087 = vadd.f32 %v2684, 1.0
  %v3088 = vadd.f32 %v2686, 1.0
  %v3089 = vadd.f32 %v2688, 1.0
  %v3090 = vadd.f32 %v2690, 1.0
  %v3091 = vadd.f32 %v2692, 1.0
  %v3092 = vadd.f32 %v2694, 1.0
  %v3093 = vadd.f32 %v2696, 1.0
  %v3094 = vadd.f32 %v2698, 1.0
  %v3095 = vadd.f32 %v2700, 1.0
  %v3096 = vadd.f32 %v2702, 1.0
  %v3097 = vadd.f32 %v2704, 1.0
  %v3098 = vadd.f32 %v2706, 1.0
  %v3099 = vadd.f32 %v2708, 1.0
  %v3100 = vadd.f32 %v2710, 1.0
  %v3101 = vadd.f32 %v2712, 1.0
  %v3102 = vadd.f32 %v2714, 1.0
  %v3103 = vadd.f32 %v2716, 1.0
  %v3104 = vadd.f32 %v2718, 1.0
  %v3105 = vadd.f32 %v2720, 1.0
  %v3106 = vadd.f32 %v2722, 1.0
  %v3107 = vadd.f32 %v2724, 1.0
  %v3108 = vadd.f32 %v2726, 1.0
  %v3109 = vadd.f32 %v2728, 1.0
  %v3110 = vadd.f32 %v2730, 1.0
  %v3111 = vadd.f32 %v2732, 1.0
  %v3112 = vadd.f32 %v2734, 1.0
  %v3113 = vadd.f32 %v2736, 1.0
  %v3114 = vadd.f32 %v2738, 1.0
  %v3115 = vadd.f32 %v2740, 1.0
  %v3116 = vadd.f32 %v2742, 1.0
  %v3117 = vadd.f32 %v2744, 1.0
  %v3118 = vadd.f32 %v2746, 1.0
  %v3119 = vadd.f32 %v2748, 1.0
  %v3120 = vadd.f32 %v2750, 1.0
  %v3121 = vadd.f32 %v2752, 1.0
  %v3122 = vadd.f32 %v2754, 1.0
  %v3123 = vadd.f32 %v2756, 1.0
  %v3124 = vadd.f32 %v2758, 1.0
  %v3125 = vadd.f32 %v2760, 1.0
  %v3126 = vadd.f32 %v2762, 1.0
  %v3127 = vadd.f32 %v2764, 1.0
  %v3128 = vadd.f32 %v2766, 1.0
  %v3129 = vadd.f32 %v2768, 1.0
  %v3130 = vadd.f32 %v2770, 1.0
  %v3131 = vadd.f32 %v2772, 1.0
  %v3132 = vadd.f32 %v2774, 1.0
  %v3133 = vadd.f32 %v2776, 1.0
  %v3134 = vadd.f32 %v2778, 1.0
  %v3135 = vadd.f32 %v2780, 1.0
  %v3136 = vadd.f32 %v2782, 1.0
  %v3137 = vadd.f32 %v2784, 1.0
  %v3138 = vadd.f32 %v2786, 1.0
  %v3139 = vadd.f32 %v2788, 1.0
  %v3140 = vadd.f32 %v2790, 1.0
  %v3141 = vadd.f32 %v2792, 1.0
  %v3142 = vadd.f32 %v2794, 1.0
  %v3143 = vadd.f32 %v2796, 1.0
  %v3144 = vadd.f32 %v2798, 1.0
  %v3145 = vadd.f32 %v2800, 1.0
  %v3146 = vadd.f32 %v2802, 1.0
  %v3147 = vadd.f32 %v2804, 1.0
  %v3148 = vadd.f32 %v2806, 1.0
  %v3149 = vadd.f32 %v2808, 1.0
  %v3150 = vadd.f32 %v2810, 1.0
  %v3151 = vadd.f32 %v2812, 1.0
  %v3152 = vadd.f32 %v2814, 1.0
  %v3153 = vadd.f32 %v2816, 1.0
  %v3154 = vadd.f32 %v2818, 1.0
  %v3155 = vadd.f32 %v2820, 1.0
  %v3156 = vadd.f32 %v2822, 1.0
  %v3157 = vadd.f32 %v2824, 1.0
  %v3158 = vadd.f32 %v2826, 1.0
  %v3159 = vadd.f32 %v2828, 1.0
  %v3160 = vadd.f32 %v2830, 1.0
  %v3161 = vadd.f32 %v2832, 1.0
  %v3162 = vadd.f32 %v2834, 1.0
  %v3163 = vadd.f32 %v2836, 1.0
  %v3164 = vadd.f32 %v2838, 1.0
  %v3165 = vadd.f32 %v2840, 1.0
  %v3166 = vadd.f32 %v2842, 1.0
  %v3167 = vadd.f32 %v2844, 1.0
  %v3168 = vadd.f32 %v2846, 1.0
  %v3169 = vadd.f32 %v2848, 1.0
  %v3170 = vadd.f32 %v2850, 1.0
  %v3171 = vadd.f32 %v2852, 1.0
  %v3172 = vadd.f32 %v2854, 1.0
  %v3173 = vadd.f32 %v2856, 1.0
  %v3174 = vadd.f32 %v2858, 1.0
  %v3175 = vadd.f32 %v2860, 1.0
  %v3176 = vadd.f32 %v2862, 1.0
  %v3177 = vadd.f32 %v2864, 1.0
  %v3178 = vadd.f32 %v2866, 1.0
  %v3179 = vadd.f32 %v2868, 1.0
  %v3180 = vadd.f32 %v2870, 1.0
  %v3181 = vadd.f32 %v2872, 1.0
  %v3182 = vadd.f32 %v2874, 1.0
  %v3183 = vadd.f32 %v2876, 1.0
  %v3184 = vadd.f32 %v2878, 1.0
  %v3185 = vadd.f32 %v2880, 1.0
  %v3186 = vadd.f32 %v2882, 1.0
  %v3187 = vadd.f32 %v2884, 1.0
  %v3188 = vadd.f32 %v2886, 1.0
  %v3189 = vadd.f32 %v2888, 1.0
  %v3190 = vadd.f32 %v2890, 1.0
  %v3191 = vadd.f32 %v2892, 1.0
  %v3192 = vadd.f32 %v2894, 1.0
  %v3193 = vadd.f32 %v2896, 1.0
  %v3194 = vadd.f32 %v2898, 1.0
  %v3195 = vadd.f32 %v2900, 1.0
  %v3196 = vadd.f32 %v2902, 1.0
  %v3197 = vadd.f32 %v2904, 1.0
  %v3198 = vadd.f32 %v2906, 1.0
  %v3199 = vadd.f32 %v2908, 1.0
  %v3200 = vadd.f32 %v2910, 1.0
  %v3201 = vadd.f32 %v2912, 1.0
  %v3202 = vadd.f32 %v2914, 1.0
  %v3203 = vadd.f32 %v2916, 1.0
  %v3204 = vadd.f32 %v2918, 1.0
  %v3205 = vadd.f32 %v2920, 1.0
  %v3206 = vadd.f32 %v2922, 1.0
  %v3207 = vadd.f32 %v2924, 1.0
  %v3208 = vadd.f32 %v2926, 1.0
  %v3209 = vadd.f32 %v2928, 1.0
  %v3210 = vadd.f32 %v2930, 1.0
  %v3211 = vadd.f32 %v2932, 1.0
  %v3212 = vadd.f32 %v2934, 1.0
  %v3213 = vadd.f32 %v2936, 1.0
  %v3214 = vadd.f32 %v2938, 1.0
  %v3215 = vadd.f32 %v2940, 1.0
  %v3216 = vadd.f32 %v2942, 1.0
  %v3217 = vadd.f32 %v2944, 1.0
  %v3218 = vadd.f32 %v2946, 1.0
  %v3219 = vadd.f32 %v2948, 1.0
  %v3220 = vadd.f32 %v2950, 1.0
  %v3221 = vadd.f32 %v2952, 1.0
  %v3222 = vadd.f32 %v2954, 1.0
  %v3223 = vadd.f32 %v2956, 1.0
  %v3224 = vadd.f32 %v2958, 1.0
  %v3225 = vadd.f32 %v2960, 1.0
  %v3226 = vadd.f32 %v2962, 1.0
  %v3227 = vadd.f32 %v2964, 1.0
  %v3228 = vadd.f32 %v2966, 1.0
  %v3229 = vadd.f32 %v2968, 1.0
  %v3230 = vadd.f32 %v2970, 1.0
  %v3231 = vadd.f32 %v2972, 1.0
  %v3232 = vadd.f32 %v2974, 1.0
  %v3233 = vadd.f32 %v2976, 1.0
  %v3234 = vadd.f32 %v2978, 1.0
  %v3235 = vadd.f32 %v2980, 1.0
  %v3236 = vadd.f32 %v2982, 1.0
  %v3237 = vadd.f32 %v2984, 1.0
  %v3238 = vadd.f32 %v2986, 1.0
  %v3239 = vadd.f32 %v2988, 1.0
  %v3240 = vadd.f32 %v2990, 1.0
  %v3241 = vadd.f32 %v2992, 1.0
  %v3242 = vadd.f32 %v2994, 1.0
  %v3243 = vadd.f32 %v2996, 1.0
  %v3244 = vadd.f32 %v2998, 1.0
  %v3245 = vadd.f32 %v3000, 1.0
  %v3246 = vadd.f32 %v3002, 1.0
  %v3247 = vadd.f32 %v3004, 1.0
  %v3248 = vadd.f32 %v3006, 1.0
  %v3249 = vadd.f32 %v3008, 1.0
  %v3250 = vadd.f32 %v3010, 1.0
  %v3251 = vadd.f32 %v3012, 1.0
  %v3252 = vadd.f32 %v3014, 1.0
  %v3253 = vadd.f32 %v3016, 1.0
  %v3254 = vadd.f32 %v3018, 1.0
  %v3255 = vadd.f32 %v3020, 1.0
  %v3256 = vadd.f32 %v3022, 1.0
  %v3257 = vadd.f32 %v3024, 1.0
  %v3258 = vadd.f32 %v3026, 1.0
  %v3259 = vadd.f32 %v3028, 1.0
  %v3260 = vadd.f32 %v3030, 1.0
  %v3261 = vadd.f32 %v3032, 1.0
  %v3262 = vadd.f32 %v3034, 1.0
  %v3263 = vrcp.pop %v3035
  %v3264 = vmul.f32 1.0, %v3263
  %v3265 = vrcp.pop %v3036
  %v3266 = vmul.f32 1.0, %v3265
  %v3267 = vrcp.pop %v3037
  %v3268 = vmul.f32 1.0, %v3267
  %v3269 = vrcp.pop %v3038
  %v3270 = vmul.f32 1.0, %v3269
  %v3271 = vrcp.pop %v3039
  %v3272 = vmul.f32 1.0, %v3271
  %v3273 = vrcp.pop %v3040
  %v3274 = vmul.f32 1.0, %v3273
  %v3275 = vrcp.pop %v3041
  %v3276 = vmul.f32 1.0, %v3275
  %v3277 = vrcp.pop %v3042
  %v3278 = vmul.f32 1.0, %v3277
  %v3279 = vrcp.pop %v3043
  %v3280 = vmul.f32 1.0, %v3279
  %v3281 = vrcp.pop %v3044
  %v3282 = vmul.f32 1.0, %v3281
  %v3283 = vrcp.pop %v3045
  %v3284 = vmul.f32 1.0, %v3283
  %v3285 = vrcp.pop %v3046
  %v3286 = vmul.f32 1.0, %v3285
  %v3287 = vrcp.pop %v3047
  %v3288 = vmul.f32 1.0, %v3287
  %v3289 = vrcp.pop %v3048
  %v3290 = vmul.f32 1.0, %v3289
  %v3291 = vrcp.pop %v3049
  %v3292 = vmul.f32 1.0, %v3291
  %v3293 = vrcp.pop %v3050
  %v3294 = vmul.f32 1.0, %v3293
  %v3295 = vrcp.pop %v3051
  %v3296 = vmul.f32 1.0, %v3295
  %v3297 = vrcp.pop %v3052
  %v3298 = vmul.f32 1.0, %v3297
  %v3299 = vrcp.pop %v3053
  %v3300 = vmul.f32 1.0, %v3299
  %v3301 = vrcp.pop %v3054
  %v3302 = vmul.f32 1.0, %v3301
  %v3303 = vrcp.pop %v3055
  %v3304 = vmul.f32 1.0, %v3303
  %v3305 = vrcp.pop %v3056
  %v3306 = vmul.f32 1.0, %v3305
  %v3307 = vrcp.pop %v3057
  %v3308 = vmul.f32 1.0, %v3307
  %v3309 = vrcp.pop %v3058
  %v3310 = vmul.f32 1.0, %v3309
  %v3311 = vrcp.pop %v3059
  %v3312 = vmul.f32 1.0, %v3311
  %v3313 = vrcp.pop %v3060
  %v3314 = vmul.f32 1.0, %v3313
  %v3315 = vrcp.pop %v3061
  %v3316 = vmul.f32 1.0, %v3315
  %v3317 = vrcp.pop %v3062
  %v3318 = vmul.f32 1.0, %v3317
  %v3319 = vrcp.pop %v3063
  %v3320 = vmul.f32 1.0, %v3319
  %v3321 = vrcp.pop %v3064
  %v3322 = vmul.f32 1.0, %v3321
  %v3323 = vrcp.pop %v3065
  %v3324 = vmul.f32 1.0, %v3323
  %v3325 = vrcp.pop %v3066
  %v3326 = vmul.f32 1.0, %v3325
  %v3327 = vrcp.pop %v3067
  %v3328 = vmul.f32 1.0, %v3327
  %v3329 = vrcp.pop %v3068
  %v3330 = vmul.f32 1.0, %v3329
  %v3331 = vrcp.pop %v3069
  %v3332 = vmul.f32 1.0, %v3331
  %v3333 = vrcp.pop %v3070
  %v3334 = vmul.f32 1.0, %v3333
  %v3335 = vrcp.pop %v3071
  %v3336 = vmul.f32 1.0, %v3335
  %v3337 = vrcp.pop %v3072
  %v3338 = vmul.f32 1.0, %v3337
  %v3339 = vrcp.pop %v3073
  %v3340 = vmul.f32 1.0, %v3339
  %v3341 = vrcp.pop %v3074
  %v3342 = vmul.f32 1.0, %v3341
  %v3343 = vrcp.pop %v3075
  %v3344 = vmul.f32 1.0, %v3343
  %v3345 = vrcp.pop %v3076
  %v3346 = vmul.f32 1.0, %v3345
  %v3347 = vrcp.pop %v3077
  %v3348 = vmul.f32 1.0, %v3347
  %v3349 = vrcp.pop %v3078
  %v3350 = vmul.f32 1.0, %v3349
  %v3351 = vrcp.pop %v3079
  %v3352 = vmul.f32 1.0, %v3351
  %v3353 = vrcp.pop %v3080
  %v3354 = vmul.f32 1.0, %v3353
  %v3355 = vrcp.pop %v3081
  %v3356 = vmul.f32 1.0, %v3355
  %v3357 = vrcp.pop %v3082
  %v3358 = vmul.f32 1.0, %v3357
  %v3359 = vrcp.pop %v3083
  %v3360 = vmul.f32 1.0, %v3359
  %v3361 = vrcp.pop %v3084
  %v3362 = vmul.f32 1.0, %v3361
  %v3363 = vrcp.pop %v3085
  %v3364 = vmul.f32 1.0, %v3363
  %v3365 = vrcp.pop %v3086
  %v3366 = vmul.f32 1.0, %v3365
  %v3367 = vrcp.pop %v3087
  %v3368 = vmul.f32 1.0, %v3367
  %v3369 = vrcp.pop %v3088
  %v3370 = vmul.f32 1.0, %v3369
  %v3371 = vrcp.pop %v3089
  %v3372 = vmul.f32 1.0, %v3371
  %v3373 = vrcp.pop %v3090
  %v3374 = vmul.f32 1.0, %v3373
  %v3375 = vrcp.pop %v3091
  %v3376 = vmul.f32 1.0, %v3375
  %v3377 = vrcp.pop %v3092
  %v3378 = vmul.f32 1.0, %v3377
  %v3379 = vrcp.pop %v3093
  %v3380 = vmul.f32 1.0, %v3379
  %v3381 = vrcp.pop %v3094
  %v3382 = vmul.f32 1.0, %v3381
  %v3383 = vrcp.pop %v3095
  %v3384 = vmul.f32 1.0, %v3383
  %v3385 = vrcp.pop %v3096
  %v3386 = vmul.f32 1.0, %v3385
  %v3387 = vrcp.pop %v3097
  %v3388 = vmul.f32 1.0, %v3387
  %v3389 = vrcp.pop %v3098
  %v3390 = vmul.f32 1.0, %v3389
  %v3391 = vrcp.pop %v3099
  %v3392 = vmul.f32 1.0, %v3391
  %v3393 = vrcp.pop %v3100
  %v3394 = vmul.f32 1.0, %v3393
  %v3395 = vrcp.pop %v3101
  %v3396 = vmul.f32 1.0, %v3395
  %v3397 = vrcp.pop %v3102
  %v3398 = vmul.f32 1.0, %v3397
  %v3399 = vrcp.pop %v3103
  %v3400 = vmul.f32 1.0, %v3399
  %v3401 = vrcp.pop %v3104
  %v3402 = vmul.f32 1.0, %v3401
  %v3403 = vrcp.pop %v3105
  %v3404 = vmul.f32 1.0, %v3403
  %v3405 = vrcp.pop %v3106
  %v3406 = vmul.f32 1.0, %v3405
  %v3407 = vrcp.pop %v3107
  %v3408 = vmul.f32 1.0, %v3407
  %v3409 = vrcp.pop %v3108
  %v3410 = vmul.f32 1.0, %v3409
  %v3411 = vrcp.pop %v3109
  %v3412 = vmul.f32 1.0, %v3411
  %v3413 = vrcp.pop %v3110
  %v3414 = vmul.f32 1.0, %v3413
  %v3415 = vrcp.pop %v3111
  %v3416 = vmul.f32 1.0, %v3415
  %v3417 = vrcp.pop %v3112
  %v3418 = vmul.f32 1.0, %v3417
  %v3419 = vrcp.pop %v3113
  %v3420 = vmul.f32 1.0, %v3419
  %v3421 = vrcp.pop %v3114
  %v3422 = vmul.f32 1.0, %v3421
  %v3423 = vrcp.pop %v3115
  %v3424 = vmul.f32 1.0, %v3423
  %v3425 = vrcp.pop %v3116
  %v3426 = vmul.f32 1.0, %v3425
  %v3427 = vrcp.pop %v3117
  %v3428 = vmul.f32 1.0, %v3427
  %v3429 = vrcp.pop %v3118
  %v3430 = vmul.f32 1.0, %v3429
  %v3431 = vrcp.pop %v3119
  %v3432 = vmul.f32 1.0, %v3431
  %v3433 = vrcp.pop %v3120
  %v3434 = vmul.f32 1.0, %v3433
  %v3435 = vrcp.pop %v3121
  %v3436 = vmul.f32 1.0, %v3435
  %v3437 = vrcp.pop %v3122
  %v3438 = vmul.f32 1.0, %v3437
  %v3439 = vrcp.pop %v3123
  %v3440 = vmul.f32 1.0, %v3439
  %v3441 = vrcp.pop %v3124
  %v3442 = vmul.f32 1.0, %v3441
  %v3443 = vrcp.pop %v3125
  %v3444 = vmul.f32 1.0, %v3443
  %v3445 = vrcp.pop %v3126
  %v3446 = vmul.f32 1.0, %v3445
  %v3447 = vrcp.pop %v3127
  %v3448 = vmul.f32 1.0, %v3447
  %v3449 = vrcp.pop %v3128
  %v3450 = vmul.f32 1.0, %v3449
  %v3451 = vrcp.pop %v3129
  %v3452 = vmul.f32 1.0, %v3451
  %v3453 = vrcp.pop %v3130
  %v3454 = vmul.f32 1.0, %v3453
  %v3455 = vrcp.pop %v3131
  %v3456 = vmul.f32 1.0, %v3455
  %v3457 = vrcp.pop %v3132
  %v3458 = vmul.f32 1.0, %v3457
  %v3459 = vrcp.pop %v3133
  %v3460 = vmul.f32 1.0, %v3459
  %v3461 = vrcp.pop %v3134
  %v3462 = vmul.f32 1.0, %v3461
  %v3463 = vrcp.pop %v3135
  %v3464 = vmul.f32 1.0, %v3463
  %v3465 = vrcp.pop %v3136
  %v3466 = vmul.f32 1.0, %v3465
  %v3467 = vrcp.pop %v3137
  %v3468 = vmul.f32 1.0, %v3467
  %v3469 = vrcp.pop %v3138
  %v3470 = vmul.f32 1.0, %v3469
  %v3471 = vrcp.pop %v3139
  %v3472 = vmul.f32 1.0, %v3471
  %v3473 = vrcp.pop %v3140
  %v3474 = vmul.f32 1.0, %v3473
  %v3475 = vrcp.pop %v3141
  %v3476 = vmul.f32 1.0, %v3475
  %v3477 = vrcp.pop %v3142
  %v3478 = vmul.f32 1.0, %v3477
  %v3479 = vrcp.pop %v3143
  %v3480 = vmul.f32 1.0, %v3479
  %v3481 = vrcp.pop %v3144
  %v3482 = vmul.f32 1.0, %v3481
  %v3483 = vrcp.pop %v3145
  %v3484 = vmul.f32 1.0, %v3483
  %v3485 = vrcp.pop %v3146
  %v3486 = vmul.f32 1.0, %v3485
  %v3487 = vrcp.pop %v3147
  %v3488 = vmul.f32 1.0, %v3487
  %v3489 = vrcp.pop %v3148
  %v3490 = vmul.f32 1.0, %v3489
  %v3491 = vrcp.pop %v3149
  %v3492 = vmul.f32 1.0, %v3491
  %v3493 = vrcp.pop %v3150
  %v3494 = vmul.f32 1.0, %v3493
  %v3495 = vrcp.pop %v3151
  %v3496 = vmul.f32 1.0, %v3495
  %v3497 = vrcp.pop %v3152
  %v3498 = vmul.f32 1.0, %v3497
  %v3499 = vrcp.pop %v3153
  %v3500 = vmul.f32 1.0, %v3499
  %v3501 = vrcp.pop %v3154
  %v3502 = vmul.f32 1.0, %v3501
  %v3503 = vrcp.pop %v3155
  %v3504 = vmul.f32 1.0, %v3503
  %v3505 = vrcp.pop %v3156
  %v3506 = vmul.f32 1.0, %v3505
  %v3507 = vrcp.pop %v3157
  %v3508 = vmul.f32 1.0, %v3507
  %v3509 = vrcp.pop %v3158
  %v3510 = vmul.f32 1.0, %v3509
  %v3511 = vrcp.pop %v3159
  %v3512 = vmul.f32 1.0, %v3511
  %v3513 = vrcp.pop %v3160
  %v3514 = vmul.f32 1.0, %v3513
  %v3515 = vrcp.pop %v3161
  %v3516 = vmul.f32 1.0, %v3515
  %v3517 = vrcp.pop %v3162
  %v3518 = vmul.f32 1.0, %v3517
  %v3519 = vrcp.pop %v3163
  %v3520 = vmul.f32 1.0, %v3519
  %v3521 = vrcp.pop %v3164
  %v3522 = vmul.f32 1.0, %v3521
  %v3523 = vrcp.pop %v3165
  %v3524 = vmul.f32 1.0, %v3523
  %v3525 = vrcp.pop %v3166
  %v3526 = vmul.f32 1.0, %v3525
  %v3527 = vrcp.pop %v3167
  %v3528 = vmul.f32 1.0, %v3527
  %v3529 = vrcp.pop %v3168
  %v3530 = vmul.f32 1.0, %v3529
  %v3531 = vrcp.pop %v3169
  %v3532 = vmul.f32 1.0, %v3531
  %v3533 = vrcp.pop %v3170
  %v3534 = vmul.f32 1.0, %v3533
  %v3535 = vrcp.pop %v3171
  %v3536 = vmul.f32 1.0, %v3535
  %v3537 = vrcp.pop %v3172
  %v3538 = vmul.f32 1.0, %v3537
  %v3539 = vrcp.pop %v3173
  %v3540 = vmul.f32 1.0, %v3539
  %v3541 = vrcp.pop %v3174
  %v3542 = vmul.f32 1.0, %v3541
  %v3543 = vrcp.pop %v3175
  %v3544 = vmul.f32 1.0, %v3543
  %v3545 = vrcp.pop %v3176
  %v3546 = vmul.f32 1.0, %v3545
  %v3547 = vrcp.pop %v3177
  %v3548 = vmul.f32 1.0, %v3547
  %v3549 = vrcp.pop %v3178
  %v3550 = vmul.f32 1.0, %v3549
  %v3551 = vrcp.pop %v3179
  %v3552 = vmul.f32 1.0, %v3551
  %v3553 = vrcp.pop %v3180
  %v3554 = vmul.f32 1.0, %v3553
  %v3555 = vrcp.pop %v3181
  %v3556 = vmul.f32 1.0, %v3555
  %v3557 = vrcp.pop %v3182
  %v3558 = vmul.f32 1.0, %v3557
  %v3559 = vrcp.pop %v3183
  %v3560 = vmul.f32 1.0, %v3559
  %v3561 = vrcp.pop %v3184
  %v3562 = vmul.f32 1.0, %v3561
  %v3563 = vrcp.pop %v3185
  %v3564 = vmul.f32 1.0, %v3563
  %v3565 = vrcp.pop %v3186
  %v3566 = vmul.f32 1.0, %v3565
  %v3567 = vrcp.pop %v3187
  %v3568 = vmul.f32 1.0, %v3567
  %v3569 = vrcp.pop %v3188
  %v3570 = vmul.f32 1.0, %v3569
  %v3571 = vrcp.pop %v3189
  %v3572 = vmul.f32 1.0, %v3571
  %v3573 = vrcp.pop %v3190
  %v3574 = vmul.f32 1.0, %v3573
  %v3575 = vrcp.pop %v3191
  %v3576 = vmul.f32 1.0, %v3575
  %v3577 = vrcp.pop %v3192
  %v3578 = vmul.f32 1.0, %v3577
  %v3579 = vrcp.pop %v3193
  %v3580 = vmul.f32 1.0, %v3579
  %v3581 = vrcp.pop %v3194
  %v3582 = vmul.f32 1.0, %v3581
  %v3583 = vrcp.pop %v3195
  %v3584 = vmul.f32 1.0, %v3583
  %v3585 = vrcp.pop %v3196
  %v3586 = vmul.f32 1.0, %v3585
  %v3587 = vrcp.pop %v3197
  %v3588 = vmul.f32 1.0, %v3587
  %v3589 = vrcp.pop %v3198
  %v3590 = vmul.f32 1.0, %v3589
  %v3591 = vrcp.pop %v3199
  %v3592 = vmul.f32 1.0, %v3591
  %v3593 = vrcp.pop %v3200
  %v3594 = vmul.f32 1.0, %v3593
  %v3595 = vrcp.pop %v3201
  %v3596 = vmul.f32 1.0, %v3595
  %v3597 = vrcp.pop %v3202
  %v3598 = vmul.f32 1.0, %v3597
  %v3599 = vrcp.pop %v3203
  %v3600 = vmul.f32 1.0, %v3599
  %v3601 = vrcp.pop %v3204
  %v3602 = vmul.f32 1.0, %v3601
  %v3603 = vrcp.pop %v3205
  %v3604 = vmul.f32 1.0, %v3603
  %v3605 = vrcp.pop %v3206
  %v3606 = vmul.f32 1.0, %v3605
  %v3607 = vrcp.pop %v3207
  %v3608 = vmul.f32 1.0, %v3607
  %v3609 = vrcp.pop %v3208
  %v3610 = vmul.f32 1.0, %v3609
  %v3611 = vrcp.pop %v3209
  %v3612 = vmul.f32 1.0, %v3611
  %v3613 = vrcp.pop %v3210
  %v3614 = vmul.f32 1.0, %v3613
  %v3615 = vrcp.pop %v3211
  %v3616 = vmul.f32 1.0, %v3615
  %v3617 = vrcp.pop %v3212
  %v3618 = vmul.f32 1.0, %v3617
  %v3619 = vrcp.pop %v3213
  %v3620 = vmul.f32 1.0, %v3619
  %v3621 = vrcp.pop %v3214
  %v3622 = vmul.f32 1.0, %v3621
  %v3623 = vrcp.pop %v3215
  %v3624 = vmul.f32 1.0, %v3623
  %v3625 = vrcp.pop %v3216
  %v3626 = vmul.f32 1.0, %v3625
  %v3627 = vrcp.pop %v3217
  %v3628 = vmul.f32 1.0, %v3627
  %v3629 = vrcp.pop %v3218
  %v3630 = vmul.f32 1.0, %v3629
  %v3631 = vrcp.pop %v3219
  %v3632 = vmul.f32 1.0, %v3631
  %v3633 = vrcp.pop %v3220
  %v3634 = vmul.f32 1.0, %v3633
  %v3635 = vrcp.pop %v3221
  %v3636 = vmul.f32 1.0, %v3635
  %v3637 = vrcp.pop %v3222
  %v3638 = vmul.f32 1.0, %v3637
  %v3639 = vrcp.pop %v3223
  %v3640 = vmul.f32 1.0, %v3639
  %v3641 = vrcp.pop %v3224
  %v3642 = vmul.f32 1.0, %v3641
  %v3643 = vrcp.pop %v3225
  %v3644 = vmul.f32 1.0, %v3643
  %v3645 = vrcp.pop %v3226
  %v3646 = vmul.f32 1.0, %v3645
  %v3647 = vrcp.pop %v3227
  %v3648 = vmul.f32 1.0, %v3647
  %v3649 = vrcp.pop %v3228
  %v3650 = vmul.f32 1.0, %v3649
  %v3651 = vrcp.pop %v3229
  %v3652 = vmul.f32 1.0, %v3651
  %v3653 = vrcp.pop %v3230
  %v3654 = vmul.f32 1.0, %v3653
  %v3655 = vrcp.pop %v3231
  %v3656 = vmul.f32 1.0, %v3655
  %v3657 = vrcp.pop %v3232
  %v3658 = vmul.f32 1.0, %v3657
  %v3659 = vrcp.pop %v3233
  %v3660 = vmul.f32 1.0, %v3659
  %v3661 = vrcp.pop %v3234
  %v3662 = vmul.f32 1.0, %v3661
  %v3663 = vrcp.pop %v3235
  %v3664 = vmul.f32 1.0, %v3663
  %v3665 = vrcp.pop %v3236
  %v3666 = vmul.f32 1.0, %v3665
  %v3667 = vrcp.pop %v3237
  %v3668 = vmul.f32 1.0, %v3667
  %v3669 = vrcp.pop %v3238
  %v3670 = vmul.f32 1.0, %v3669
  %v3671 = vrcp.pop %v3239
  %v3672 = vmul.f32 1.0, %v3671
  %v3673 = vrcp.pop %v3240
  %v3674 = vmul.f32 1.0, %v3673
  %v3675 = vrcp.pop %v3241
  %v3676 = vmul.f32 1.0, %v3675
  %v3677 = vrcp.pop %v3242
  %v3678 = vmul.f32 1.0, %v3677
  %v3679 = vrcp.pop %v3243
  %v3680 = vmul.f32 1.0, %v3679
  %v3681 = vrcp.pop %v3244
  %v3682 = vmul.f32 1.0, %v3681
  %v3683 = vrcp.pop %v3245
  %v3684 = vmul.f32 1.0, %v3683
  %v3685 = vrcp.pop %v3246
  %v3686 = vmul.f32 1.0, %v3685
  %v3687 = vrcp.pop %v3247
  %v3688 = vmul.f32 1.0, %v3687
  %v3689 = vrcp.pop %v3248
  %v3690 = vmul.f32 1.0, %v3689
  %v3691 = vrcp.pop %v3249
  %v3692 = vmul.f32 1.0, %v3691
  %v3693 = vrcp.pop %v3250
  %v3694 = vmul.f32 1.0, %v3693
  %v3695 = vrcp.pop %v3251
  %v3696 = vmul.f32 1.0, %v3695
  %v3697 = vrcp.pop %v3252
  %v3698 = vmul.f32 1.0, %v3697
  %v3699 = vrcp.pop %v3253
  %v3700 = vmul.f32 1.0, %v3699
  %v3701 = vrcp.pop %v3254
  %v3702 = vmul.f32 1.0, %v3701
  %v3703 = vrcp.pop %v3255
  %v3704 = vmul.f32 1.0, %v3703
  %v3705 = vrcp.pop %v3256
  %v3706 = vmul.f32 1.0, %v3705
  %v3707 = vrcp.pop %v3257
  %v3708 = vmul.f32 1.0, %v3707
  %v3709 = vrcp.pop %v3258
  %v3710 = vmul.f32 1.0, %v3709
  %v3711 = vrcp.pop %v3259
  %v3712 = vmul.f32 1.0, %v3711
  %v3713 = vrcp.pop %v3260
  %v3714 = vmul.f32 1.0, %v3713
  %v3715 = vrcp.pop %v3261
  %v3716 = vmul.f32 1.0, %v3715
  %v3717 = vrcp.pop %v3262
  %v3718 = vmul.f32 1.0, %v3717
  %v3719 = vld [vmem:[%s3] sm:$0xff]
  %v3720 = vld [vmem:[%s3 + $0x8] sm:$0xff]
  %v3721 = vld [vmem:[%s3 + $0x10] sm:$0xff]
  %v3722 = vld [vmem:[%s3 + $0x18] sm:$0xff]
  %v3723 = vld [vmem:[%s3 + $0x20] sm:$0xff]
  %v3724 = vld [vmem:[%s3 + $0x28] sm:$0xff]
  %v3725 = vld [vmem:[%s3 + $0x30] sm:$0xff]
  %v3726 = vld [vmem:[%s3 + $0x38] sm:$0xff]
  %v3727 = vld [vmem:[%s3 + $0x40] sm:$0xff]
  %v3728 = vld [vmem:[%s3 + $0x48] sm:$0xff]
  %v3729 = vld [vmem:[%s3 + $0x50] sm:$0xff]
  %v3730 = vld [vmem:[%s3 + $0x58] sm:$0xff]
  %v3731 = vld [vmem:[%s3 + $0x60] sm:$0xff]
  %v3732 = vld [vmem:[%s3 + $0x68] sm:$0xff]
  %v3733 = vld [vmem:[%s3 + $0x70] sm:$0xff]
  %v3734 = vld [vmem:[%s3 + $0x78] sm:$0xff]
  %v3735 = vld [vmem:[%s3 + $0x80] sm:$0xff]
  %v3736 = vld [vmem:[%s3 + $0x88] sm:$0xff]
  %v3737 = vld [vmem:[%s3 + $0x90] sm:$0xff]
  %v3738 = vld [vmem:[%s3 + $0x98] sm:$0xff]
  %v3739 = vld [vmem:[%s3 + $0xa0] sm:$0xff]
  %v3740 = vld [vmem:[%s3 + $0xa8] sm:$0xff]
  %v3741 = vld [vmem:[%s3 + $0xb0] sm:$0xff]
  %v3742 = vld [vmem:[%s3 + $0xb8] sm:$0xff]
  %v3743 = vld [vmem:[%s3 + $0xc0] sm:$0xff]
  %v3744 = vld [vmem:[%s3 + $0xc8] sm:$0xff]
  %v3745 = vld [vmem:[%s3 + $0xd0] sm:$0xff]
  %v3746 = vld [vmem:[%s3 + $0xd8] sm:$0xff]
  %v3747 = vld [vmem:[%s3 + $0xe0] sm:$0xff]
  %v3748 = vld [vmem:[%s3 + $0xe8] sm:$0xff]
  %v3749 = vld [vmem:[%s3 + $0xf0] sm:$0xff]
  %v3750 = vld [vmem:[%s3 + $0xf8] sm:$0xff]
  %v3751 = vld [vmem:[%s3 + $0x100] sm:$0xff]
  %v3752 = vld [vmem:[%s3 + $0x108] sm:$0xff]
  %v3753 = vld [vmem:[%s3 + $0x110] sm:$0xff]
  %v3754 = vld [vmem:[%s3 + $0x118] sm:$0xff]
  %v3755 = vld [vmem:[%s3 + $0x120] sm:$0xff]
  %v3756 = vld [vmem:[%s3 + $0x128] sm:$0xff]
  %v3757 = vld [vmem:[%s3 + $0x130] sm:$0xff]
  %v3758 = vld [vmem:[%s3 + $0x138] sm:$0xff]
  %v3759 = vld [vmem:[%s3 + $0x140] sm:$0xff]
  %v3760 = vld [vmem:[%s3 + $0x148] sm:$0xff]
  %v3761 = vld [vmem:[%s3 + $0x150] sm:$0xff]
  %v3762 = vld [vmem:[%s3 + $0x158] sm:$0xff]
  %v3763 = vld [vmem:[%s3 + $0x160] sm:$0xff]
  %v3764 = vld [vmem:[%s3 + $0x168] sm:$0xff]
  %v3765 = vld [vmem:[%s3 + $0x170] sm:$0xff]
  %v3766 = vld [vmem:[%s3 + $0x178] sm:$0xff]
  %v3767 = vld [vmem:[%s3 + $0x180] sm:$0xff]
  %v3768 = vld [vmem:[%s3 + $0x188] sm:$0xff]
  %v3769 = vld [vmem:[%s3 + $0x190] sm:$0xff]
  %v3770 = vld [vmem:[%s3 + $0x198] sm:$0xff]
  %v3771 = vld [vmem:[%s3 + $0x1a0] sm:$0xff]
  %v3772 = vld [vmem:[%s3 + $0x1a8] sm:$0xff]
  %v3773 = vld [vmem:[%s3 + $0x1b0] sm:$0xff]
  %v3774 = vld [vmem:[%s3 + $0x1b8] sm:$0xff]
  %v3775 = vld [vmem:[%s3 + $0x1c0] sm:$0xff]
  %v3776 = vld [vmem:[%s3 + $0x1c8] sm:$0xff]
  %v3777 = vld [vmem:[%s3 + $0x1d0] sm:$0xff]
  %v3778 = vld [vmem:[%s3 + $0x1d8] sm:$0xff]
  %v3779 = vld [vmem:[%s3 + $0x1e0] sm:$0xff]
  %v3780 = vld [vmem:[%s3 + $0x1e8] sm:$0xff]
  %v3781 = vld [vmem:[%s3 + $0x1f0] sm:$0xff]
  %v3782 = vld [vmem:[%s3 + $0x1f8] sm:$0xff]
  %v3783 = vld [vmem:[%s3 + $0x200] sm:$0xff]
  %v3784 = vld [vmem:[%s3 + $0x208] sm:$0xff]
  %v3785 = vld [vmem:[%s3 + $0x210] sm:$0xff]
  %v3786 = vld [vmem:[%s3 + $0x218] sm:$0xff]
  %v3787 = vld [vmem:[%s3 + $0x220] sm:$0xff]
  %v3788 = vld [vmem:[%s3 + $0x228] sm:$0xff]
  %v3789 = vld [vmem:[%s3 + $0x230] sm:$0xff]
  %v3790 = vld [vmem:[%s3 + $0x238] sm:$0xff]
  %v3791 = vld [vmem:[%s3 + $0x240] sm:$0xff]
  %v3792 = vld [vmem:[%s3 + $0x248] sm:$0xff]
  %v3793 = vld [vmem:[%s3 + $0x250] sm:$0xff]
  %v3794 = vld [vmem:[%s3 + $0x258] sm:$0xff]
  %v3795 = vld [vmem:[%s3 + $0x260] sm:$0xff]
  %v3796 = vld [vmem:[%s3 + $0x268] sm:$0xff]
  %v3797 = vld [vmem:[%s3 + $0x270] sm:$0xff]
  %v3798 = vld [vmem:[%s3 + $0x278] sm:$0xff]
  %v3799 = vld [vmem:[%s3 + $0x280] sm:$0xff]
  %v3800 = vld [vmem:[%s3 + $0x288] sm:$0xff]
  %v3801 = vld [vmem:[%s3 + $0x290] sm:$0xff]
  %v3802 = vld [vmem:[%s3 + $0x298] sm:$0xff]
  %v3803 = vld [vmem:[%s3 + $0x2a0] sm:$0xff]
  %v3804 = vld [vmem:[%s3 + $0x2a8] sm:$0xff]
  %v3805 = vld [vmem:[%s3 + $0x2b0] sm:$0xff]
  %v3806 = vld [vmem:[%s3 + $0x2b8] sm:$0xff]
  %v3807 = vld [vmem:[%s3 + $0x2c0] sm:$0xff]
  %v3808 = vld [vmem:[%s3 + $0x2c8] sm:$0xff]
  %v3809 = vld [vmem:[%s3 + $0x2d0] sm:$0xff]
  %v3810 = vld [vmem:[%s3 + $0x2d8] sm:$0xff]
  %v3811 = vld [vmem:[%s3 + $0x2e0] sm:$0xff]
  %v3812 = vld [vmem:[%s3 + $0x2e8] sm:$0xff]
  %v3813 = vld [vmem:[%s3 + $0x2f0] sm:$0xff]
  %v3814 = vld [vmem:[%s3 + $0x2f8] sm:$0xff]
  %v3815 = vld [vmem:[%s3 + $0x300] sm:$0xff]
  %v3816 = vld [vmem:[%s3 + $0x308] sm:$0xff]
  %v3817 = vld [vmem:[%s3 + $0x310] sm:$0xff]
  %v3818 = vld [vmem:[%s3 + $0x318] sm:$0xff]
  %v3819 = vld [vmem:[%s3 + $0x320] sm:$0xff]
  %v3820 = vld [vmem:[%s3 + $0x328] sm:$0xff]
  %v3821 = vld [vmem:[%s3 + $0x330] sm:$0xff]
  %v3822 = vld [vmem:[%s3 + $0x338] sm:$0xff]
  %v3823 = vld [vmem:[%s3 + $0x340] sm:$0xff]
  %v3824 = vld [vmem:[%s3 + $0x348] sm:$0xff]
  %v3825 = vld [vmem:[%s3 + $0x350] sm:$0xff]
  %v3826 = vld [vmem:[%s3 + $0x358] sm:$0xff]
  %v3827 = vld [vmem:[%s3 + $0x360] sm:$0xff]
  %v3828 = vld [vmem:[%s3 + $0x368] sm:$0xff]
  %v3829 = vld [vmem:[%s3 + $0x370] sm:$0xff]
  %v3830 = vld [vmem:[%s3 + $0x378] sm:$0xff]
  %v3831 = vld [vmem:[%s3 + $0x380] sm:$0xff]
  %v3832 = vld [vmem:[%s3 + $0x388] sm:$0xff]
  %v3833 = vld [vmem:[%s3 + $0x390] sm:$0xff]
  %v3834 = vld [vmem:[%s3 + $0x398] sm:$0xff]
  %v3835 = vld [vmem:[%s3 + $0x3a0] sm:$0xff]
  %v3836 = vld [vmem:[%s3 + $0x3a8] sm:$0xff]
  %v3837 = vld [vmem:[%s3 + $0x3b0] sm:$0xff]
  %v3838 = vld [vmem:[%s3 + $0x3b8] sm:$0xff]
  %v3839 = vld [vmem:[%s3 + $0x3c0] sm:$0xff]
  %v3840 = vld [vmem:[%s3 + $0x3c8] sm:$0xff]
  %v3841 = vld [vmem:[%s3 + $0x3d0] sm:$0xff]
  %v3842 = vld [vmem:[%s3 + $0x3d8] sm:$0xff]
  %v3843 = vld [vmem:[%s3 + $0x3e0] sm:$0xff]
  %v3844 = vld [vmem:[%s3 + $0x3e8] sm:$0xff]
  %v3845 = vld [vmem:[%s3 + $0x3f0] sm:$0xff]
  %v3846 = vld [vmem:[%s3 + $0x3f8] sm:$0xff]
  %v3847 = vld [vmem:[%s3 + $0x400] sm:$0xff]
  %v3848 = vld [vmem:[%s3 + $0x408] sm:$0xff]
  %v3849 = vld [vmem:[%s3 + $0x410] sm:$0xff]
  %v3850 = vld [vmem:[%s3 + $0x418] sm:$0xff]
  %v3851 = vld [vmem:[%s3 + $0x420] sm:$0xff]
  %v3852 = vld [vmem:[%s3 + $0x428] sm:$0xff]
  %v3853 = vld [vmem:[%s3 + $0x430] sm:$0xff]
  %v3854 = vld [vmem:[%s3 + $0x438] sm:$0xff]
  %v3855 = vld [vmem:[%s3 + $0x440] sm:$0xff]
  %v3856 = vld [vmem:[%s3 + $0x448] sm:$0xff]
  %v3857 = vld [vmem:[%s3 + $0x450] sm:$0xff]
  %v3858 = vld [vmem:[%s3 + $0x458] sm:$0xff]
  %v3859 = vld [vmem:[%s3 + $0x460] sm:$0xff]
  %v3860 = vld [vmem:[%s3 + $0x468] sm:$0xff]
  %v3861 = vld [vmem:[%s3 + $0x470] sm:$0xff]
  %v3862 = vld [vmem:[%s3 + $0x478] sm:$0xff]
  %v3863 = vld [vmem:[%s3 + $0x480] sm:$0xff]
  %v3864 = vld [vmem:[%s3 + $0x488] sm:$0xff]
  %v3865 = vld [vmem:[%s3 + $0x490] sm:$0xff]
  %v3866 = vld [vmem:[%s3 + $0x498] sm:$0xff]
  %v3867 = vld [vmem:[%s3 + $0x4a0] sm:$0xff]
  %v3868 = vld [vmem:[%s3 + $0x4a8] sm:$0xff]
  %v3869 = vld [vmem:[%s3 + $0x4b0] sm:$0xff]
  %v3870 = vld [vmem:[%s3 + $0x4b8] sm:$0xff]
  %v3871 = vld [vmem:[%s3 + $0x4c0] sm:$0xff]
  %v3872 = vld [vmem:[%s3 + $0x4c8] sm:$0xff]
  %v3873 = vld [vmem:[%s3 + $0x4d0] sm:$0xff]
  %v3874 = vld [vmem:[%s3 + $0x4d8] sm:$0xff]
  %v3875 = vld [vmem:[%s3 + $0x4e0] sm:$0xff]
  %v3876 = vld [vmem:[%s3 + $0x4e8] sm:$0xff]
  %v3877 = vld [vmem:[%s3 + $0x4f0] sm:$0xff]
  %v3878 = vld [vmem:[%s3 + $0x4f8] sm:$0xff]
  %v3879 = vld [vmem:[%s3 + $0x500] sm:$0xff]
  %v3880 = vld [vmem:[%s3 + $0x508] sm:$0xff]
  %v3881 = vld [vmem:[%s3 + $0x510] sm:$0xff]
  %v3882 = vld [vmem:[%s3 + $0x518] sm:$0xff]
  %v3883 = vld [vmem:[%s3 + $0x520] sm:$0xff]
  %v3884 = vld [vmem:[%s3 + $0x528] sm:$0xff]
  %v3885 = vld [vmem:[%s3 + $0x530] sm:$0xff]
  %v3886 = vld [vmem:[%s3 + $0x538] sm:$0xff]
  %v3887 = vld [vmem:[%s3 + $0x540] sm:$0xff]
  %v3888 = vld [vmem:[%s3 + $0x548] sm:$0xff]
  %v3889 = vld [vmem:[%s3 + $0x550] sm:$0xff]
  %v3890 = vld [vmem:[%s3 + $0x558] sm:$0xff]
  %v3891 = vld [vmem:[%s3 + $0x560] sm:$0xff]
  %v3892 = vld [vmem:[%s3 + $0x568] sm:$0xff]
  %v3893 = vld [vmem:[%s3 + $0x570] sm:$0xff]
  %v3894 = vld [vmem:[%s3 + $0x578] sm:$0xff]
  %v3895 = vld [vmem:[%s3 + $0x580] sm:$0xff]
  %v3896 = vld [vmem:[%s3 + $0x588] sm:$0xff]
  %v3897 = vld [vmem:[%s3 + $0x590] sm:$0xff]
  %v3898 = vld [vmem:[%s3 + $0x598] sm:$0xff]
  %v3899 = vld [vmem:[%s3 + $0x5a0] sm:$0xff]
  %v3900 = vld [vmem:[%s3 + $0x5a8] sm:$0xff]
  %v3901 = vld [vmem:[%s3 + $0x5b0] sm:$0xff]
  %v3902 = vld [vmem:[%s3 + $0x5b8] sm:$0xff]
  %v3903 = vld [vmem:[%s3 + $0x5c0] sm:$0xff]
  %v3904 = vld [vmem:[%s3 + $0x5c8] sm:$0xff]
  %v3905 = vld [vmem:[%s3 + $0x5d0] sm:$0xff]
  %v3906 = vld [vmem:[%s3 + $0x5d8] sm:$0xff]
  %v3907 = vld [vmem:[%s3 + $0x5e0] sm:$0xff]
  %v3908 = vld [vmem:[%s3 + $0x5e8] sm:$0xff]
  %v3909 = vld [vmem:[%s3 + $0x5f0] sm:$0xff]
  %v3910 = vld [vmem:[%s3 + $0x5f8] sm:$0xff]
  %v3911 = vld [vmem:[%s3 + $0x600] sm:$0xff]
  %v3912 = vld [vmem:[%s3 + $0x608] sm:$0xff]
  %v3913 = vld [vmem:[%s3 + $0x610] sm:$0xff]
  %v3914 = vld [vmem:[%s3 + $0x618] sm:$0xff]
  %v3915 = vld [vmem:[%s3 + $0x620] sm:$0xff]
  %v3916 = vld [vmem:[%s3 + $0x628] sm:$0xff]
  %v3917 = vld [vmem:[%s3 + $0x630] sm:$0xff]
  %v3918 = vld [vmem:[%s3 + $0x638] sm:$0xff]
  %v3919 = vld [vmem:[%s3 + $0x640] sm:$0xff]
  %v3920 = vld [vmem:[%s3 + $0x648] sm:$0xff]
  %v3921 = vld [vmem:[%s3 + $0x650] sm:$0xff]
  %v3922 = vld [vmem:[%s3 + $0x658] sm:$0xff]
  %v3923 = vld [vmem:[%s3 + $0x660] sm:$0xff]
  %v3924 = vld [vmem:[%s3 + $0x668] sm:$0xff]
  %v3925 = vld [vmem:[%s3 + $0x670] sm:$0xff]
  %v3926 = vld [vmem:[%s3 + $0x678] sm:$0xff]
  %v3927 = vld [vmem:[%s3 + $0x680] sm:$0xff]
  %v3928 = vld [vmem:[%s3 + $0x688] sm:$0xff]
  %v3929 = vld [vmem:[%s3 + $0x690] sm:$0xff]
  %v3930 = vld [vmem:[%s3 + $0x698] sm:$0xff]
  %v3931 = vld [vmem:[%s3 + $0x6a0] sm:$0xff]
  %v3932 = vld [vmem:[%s3 + $0x6a8] sm:$0xff]
  %v3933 = vld [vmem:[%s3 + $0x6b0] sm:$0xff]
  %v3934 = vld [vmem:[%s3 + $0x6b8] sm:$0xff]
  %v3935 = vld [vmem:[%s3 + $0x6c0] sm:$0xff]
  %v3936 = vld [vmem:[%s3 + $0x6c8] sm:$0xff]
  %v3937 = vld [vmem:[%s3 + $0x6d0] sm:$0xff]
  %v3938 = vld [vmem:[%s3 + $0x6d8] sm:$0xff]
  %v3939 = vld [vmem:[%s3 + $0x6e0] sm:$0xff]
  %v3940 = vld [vmem:[%s3 + $0x6e8] sm:$0xff]
  %v3941 = vld [vmem:[%s3 + $0x6f0] sm:$0xff]
  %v3942 = vld [vmem:[%s3 + $0x6f8] sm:$0xff]
  %v3943 = vld [vmem:[%s3 + $0x700] sm:$0xff]
  %v3944 = vld [vmem:[%s3 + $0x708] sm:$0xff]
  %v3945 = vld [vmem:[%s3 + $0x710] sm:$0xff]
  %v3946 = vld [vmem:[%s3 + $0x718] sm:$0xff]
  %3948 = vset.pattern.permute.xlu0 0
  %3949 = vperm.xlu0 %3948, %v3264
  %v3950 = vpop.permute.xlu0 %3949
  %3953 = vset.pattern.permute.xlu0 0
  %3954 = vperm.xlu0 %3953, %v3266
  %v3955 = vpop.permute.xlu0 %3954
  %3958 = vset.pattern.permute.xlu0 0
  %3959 = vperm.xlu0 %3958, %v3268
  %v3960 = vpop.permute.xlu0 %3959
  %3963 = vset.pattern.permute.xlu0 0
  %3964 = vperm.xlu0 %3963, %v3270
  %v3965 = vpop.permute.xlu0 %3964
  %3968 = vset.pattern.permute.xlu0 0
  %3969 = vperm.xlu0 %3968, %v3272
  %v3970 = vpop.permute.xlu0 %3969
  %3973 = vset.pattern.permute.xlu0 0
  %3974 = vperm.xlu0 %3973, %v3274
  %v3975 = vpop.permute.xlu0 %3974
  %3978 = vset.pattern.permute.xlu0 0
  %3979 = vperm.xlu0 %3978, %v3276
  %v3980 = vpop.permute.xlu0 %3979
  %3983 = vset.pattern.permute.xlu0 0
  %3984 = vperm.xlu0 %3983, %v3278
  %v3985 = vpop.permute.xlu0 %3984
  %3988 = vset.pattern.permute.xlu0 0
  %3989 = vperm.xlu0 %3988, %v3280
  %v3990 = vpop.permute.xlu0 %3989
  %3993 = vset.pattern.permute.xlu0 0
  %3994 = vperm.xlu0 %3993, %v3282
  %v3995 = vpop.permute.xlu0 %3994
  %3998 = vset.pattern.permute.xlu0 0
  %3999 = vperm.xlu0 %3998, %v3284
  %v4000 = vpop.permute.xlu0 %3999
  %4003 = vset.pattern.permute.xlu0 0
  %4004 = vperm.xlu0 %4003, %v3286
  %v4005 = vpop.permute.xlu0 %4004
  %4008 = vset.pattern.permute.xlu0 0
  %4009 = vperm.xlu0 %4008, %v3288
  %v4010 = vpop.permute.xlu0 %4009
  %4013 = vset.pattern.permute.xlu0 0
  %4014 = vperm.xlu0 %4013, %v3290
  %v4015 = vpop.permute.xlu0 %4014
  %4018 = vset.pattern.permute.xlu0 0
  %4019 = vperm.xlu0 %4018, %v3292
  %v4020 = vpop.permute.xlu0 %4019
  %4023 = vset.pattern.permute.xlu0 0
  %4024 = vperm.xlu0 %4023, %v3294
  %v4025 = vpop.permute.xlu0 %4024
  %4028 = vset.pattern.permute.xlu0 0
  %4029 = vperm.xlu0 %4028, %v3296
  %v4030 = vpop.permute.xlu0 %4029
  %4033 = vset.pattern.permute.xlu0 0
  %4034 = vperm.xlu0 %4033, %v3298
  %v4035 = vpop.permute.xlu0 %4034
  %4038 = vset.pattern.permute.xlu0 0
  %4039 = vperm.xlu0 %4038, %v3300
  %v4040 = vpop.permute.xlu0 %4039
  %4043 = vset.pattern.permute.xlu0 0
  %4044 = vperm.xlu0 %4043, %v3302
  %v4045 = vpop.permute.xlu0 %4044
  %4048 = vset.pattern.permute.xlu0 0
  %4049 = vperm.xlu0 %4048, %v3304
  %v4050 = vpop.permute.xlu0 %4049
  %4053 = vset.pattern.permute.xlu0 0
  %4054 = vperm.xlu0 %4053, %v3306
  %v4055 = vpop.permute.xlu0 %4054
  %4058 = vset.pattern.permute.xlu0 0
  %4059 = vperm.xlu0 %4058, %v3308
  %v4060 = vpop.permute.xlu0 %4059
  %4063 = vset.pattern.permute.xlu0 0
  %4064 = vperm.xlu0 %4063, %v3310
  %v4065 = vpop.permute.xlu0 %4064
  %4068 = vset.pattern.permute.xlu0 0
  %4069 = vperm.xlu0 %4068, %v3312
  %v4070 = vpop.permute.xlu0 %4069
  %4073 = vset.pattern.permute.xlu0 0
  %4074 = vperm.xlu0 %4073, %v3314
  %v4075 = vpop.permute.xlu0 %4074
  %4078 = vset.pattern.permute.xlu0 0
  %4079 = vperm.xlu0 %4078, %v3316
  %v4080 = vpop.permute.xlu0 %4079
  %4083 = vset.pattern.permute.xlu0 0
  %4084 = vperm.xlu0 %4083, %v3318
  %v4085 = vpop.permute.xlu0 %4084
  %4088 = vset.pattern.permute.xlu0 0
  %4089 = vperm.xlu0 %4088, %v3320
  %v4090 = vpop.permute.xlu0 %4089
  %4093 = vset.pattern.permute.xlu0 0
  %4094 = vperm.xlu0 %4093, %v3322
  %v4095 = vpop.permute.xlu0 %4094
  %4098 = vset.pattern.permute.xlu0 0
  %4099 = vperm.xlu0 %4098, %v3324
  %v4100 = vpop.permute.xlu0 %4099
  %4103 = vset.pattern.permute.xlu0 0
  %4104 = vperm.xlu0 %4103, %v3326
  %v4105 = vpop.permute.xlu0 %4104
  %4108 = vset.pattern.permute.xlu0 0
  %4109 = vperm.xlu0 %4108, %v3328
  %v4110 = vpop.permute.xlu0 %4109
  %4113 = vset.pattern.permute.xlu0 0
  %4114 = vperm.xlu0 %4113, %v3330
  %v4115 = vpop.permute.xlu0 %4114
  %4118 = vset.pattern.permute.xlu0 0
  %4119 = vperm.xlu0 %4118, %v3332
  %v4120 = vpop.permute.xlu0 %4119
  %4123 = vset.pattern.permute.xlu0 0
  %4124 = vperm.xlu0 %4123, %v3334
  %v4125 = vpop.permute.xlu0 %4124
  %4128 = vset.pattern.permute.xlu0 0
  %4129 = vperm.xlu0 %4128, %v3336
  %v4130 = vpop.permute.xlu0 %4129
  %4133 = vset.pattern.permute.xlu0 0
  %4134 = vperm.xlu0 %4133, %v3338
  %v4135 = vpop.permute.xlu0 %4134
  %4138 = vset.pattern.permute.xlu0 0
  %4139 = vperm.xlu0 %4138, %v3340
  %v4140 = vpop.permute.xlu0 %4139
  %4143 = vset.pattern.permute.xlu0 0
  %4144 = vperm.xlu0 %4143, %v3342
  %v4145 = vpop.permute.xlu0 %4144
  %4148 = vset.pattern.permute.xlu0 0
  %4149 = vperm.xlu0 %4148, %v3344
  %v4150 = vpop.permute.xlu0 %4149
  %4153 = vset.pattern.permute.xlu0 0
  %4154 = vperm.xlu0 %4153, %v3346
  %v4155 = vpop.permute.xlu0 %4154
  %4158 = vset.pattern.permute.xlu0 0
  %4159 = vperm.xlu0 %4158, %v3348
  %v4160 = vpop.permute.xlu0 %4159
  %4163 = vset.pattern.permute.xlu0 0
  %4164 = vperm.xlu0 %4163, %v3350
  %v4165 = vpop.permute.xlu0 %4164
  %4168 = vset.pattern.permute.xlu0 0
  %4169 = vperm.xlu0 %4168, %v3352
  %v4170 = vpop.permute.xlu0 %4169
  %4173 = vset.pattern.permute.xlu0 0
  %4174 = vperm.xlu0 %4173, %v3354
  %v4175 = vpop.permute.xlu0 %4174
  %4178 = vset.pattern.permute.xlu0 0
  %4179 = vperm.xlu0 %4178, %v3356
  %v4180 = vpop.permute.xlu0 %4179
  %4183 = vset.pattern.permute.xlu0 0
  %4184 = vperm.xlu0 %4183, %v3358
  %v4185 = vpop.permute.xlu0 %4184
  %4188 = vset.pattern.permute.xlu0 0
  %4189 = vperm.xlu0 %4188, %v3360
  %v4190 = vpop.permute.xlu0 %4189
  %4193 = vset.pattern.permute.xlu0 0
  %4194 = vperm.xlu0 %4193, %v3362
  %v4195 = vpop.permute.xlu0 %4194
  %4198 = vset.pattern.permute.xlu0 0
  %4199 = vperm.xlu0 %4198, %v3364
  %v4200 = vpop.permute.xlu0 %4199
  %4203 = vset.pattern.permute.xlu0 0
  %4204 = vperm.xlu0 %4203, %v3366
  %v4205 = vpop.permute.xlu0 %4204
  %4208 = vset.pattern.permute.xlu0 0
  %4209 = vperm.xlu0 %4208, %v3368
  %v4210 = vpop.permute.xlu0 %4209
  %4213 = vset.pattern.permute.xlu0 0
  %4214 = vperm.xlu0 %4213, %v3370
  %v4215 = vpop.permute.xlu0 %4214
  %4218 = vset.pattern.permute.xlu0 0
  %4219 = vperm.xlu0 %4218, %v3372
  %v4220 = vpop.permute.xlu0 %4219
  %4223 = vset.pattern.permute.xlu0 0
  %4224 = vperm.xlu0 %4223, %v3374
  %v4225 = vpop.permute.xlu0 %4224
  %4228 = vset.pattern.permute.xlu0 0
  %4229 = vperm.xlu0 %4228, %v3376
  %v4230 = vpop.permute.xlu0 %4229
  %4233 = vset.pattern.permute.xlu0 0
  %4234 = vperm.xlu0 %4233, %v3378
  %v4235 = vpop.permute.xlu0 %4234
  %4238 = vset.pattern.permute.xlu0 0
  %4239 = vperm.xlu0 %4238, %v3380
  %v4240 = vpop.permute.xlu0 %4239
  %4243 = vset.pattern.permute.xlu0 0
  %4244 = vperm.xlu0 %4243, %v3382
  %v4245 = vpop.permute.xlu0 %4244
  %4248 = vset.pattern.permute.xlu0 0
  %4249 = vperm.xlu0 %4248, %v3384
  %v4250 = vpop.permute.xlu0 %4249
  %4253 = vset.pattern.permute.xlu0 0
  %4254 = vperm.xlu0 %4253, %v3386
  %v4255 = vpop.permute.xlu0 %4254
  %4258 = vset.pattern.permute.xlu0 0
  %4259 = vperm.xlu0 %4258, %v3388
  %v4260 = vpop.permute.xlu0 %4259
  %4263 = vset.pattern.permute.xlu0 0
  %4264 = vperm.xlu0 %4263, %v3390
  %v4265 = vpop.permute.xlu0 %4264
  %4268 = vset.pattern.permute.xlu0 0
  %4269 = vperm.xlu0 %4268, %v3392
  %v4270 = vpop.permute.xlu0 %4269
  %4273 = vset.pattern.permute.xlu0 0
  %4274 = vperm.xlu0 %4273, %v3394
  %v4275 = vpop.permute.xlu0 %4274
  %4278 = vset.pattern.permute.xlu0 0
  %4279 = vperm.xlu0 %4278, %v3396
  %v4280 = vpop.permute.xlu0 %4279
  %4283 = vset.pattern.permute.xlu0 0
  %4284 = vperm.xlu0 %4283, %v3398
  %v4285 = vpop.permute.xlu0 %4284
  %4288 = vset.pattern.permute.xlu0 0
  %4289 = vperm.xlu0 %4288, %v3400
  %v4290 = vpop.permute.xlu0 %4289
  %4293 = vset.pattern.permute.xlu0 0
  %4294 = vperm.xlu0 %4293, %v3402
  %v4295 = vpop.permute.xlu0 %4294
  %4298 = vset.pattern.permute.xlu0 0
  %4299 = vperm.xlu0 %4298, %v3404
  %v4300 = vpop.permute.xlu0 %4299
  %4303 = vset.pattern.permute.xlu0 0
  %4304 = vperm.xlu0 %4303, %v3406
  %v4305 = vpop.permute.xlu0 %4304
  %4308 = vset.pattern.permute.xlu0 0
  %4309 = vperm.xlu0 %4308, %v3408
  %v4310 = vpop.permute.xlu0 %4309
  %4313 = vset.pattern.permute.xlu0 0
  %4314 = vperm.xlu0 %4313, %v3410
  %v4315 = vpop.permute.xlu0 %4314
  %4318 = vset.pattern.permute.xlu0 0
  %4319 = vperm.xlu0 %4318, %v3412
  %v4320 = vpop.permute.xlu0 %4319
  %4323 = vset.pattern.permute.xlu0 0
  %4324 = vperm.xlu0 %4323, %v3414
  %v4325 = vpop.permute.xlu0 %4324
  %4328 = vset.pattern.permute.xlu0 0
  %4329 = vperm.xlu0 %4328, %v3416
  %v4330 = vpop.permute.xlu0 %4329
  %4333 = vset.pattern.permute.xlu0 0
  %4334 = vperm.xlu0 %4333, %v3418
  %v4335 = vpop.permute.xlu0 %4334
  %4338 = vset.pattern.permute.xlu0 0
  %4339 = vperm.xlu0 %4338, %v3420
  %v4340 = vpop.permute.xlu0 %4339
  %4343 = vset.pattern.permute.xlu0 0
  %4344 = vperm.xlu0 %4343, %v3422
  %v4345 = vpop.permute.xlu0 %4344
  %4348 = vset.pattern.permute.xlu0 0
  %4349 = vperm.xlu0 %4348, %v3424
  %v4350 = vpop.permute.xlu0 %4349
  %4353 = vset.pattern.permute.xlu0 0
  %4354 = vperm.xlu0 %4353, %v3426
  %v4355 = vpop.permute.xlu0 %4354
  %4358 = vset.pattern.permute.xlu0 0
  %4359 = vperm.xlu0 %4358, %v3428
  %v4360 = vpop.permute.xlu0 %4359
  %4363 = vset.pattern.permute.xlu0 0
  %4364 = vperm.xlu0 %4363, %v3430
  %v4365 = vpop.permute.xlu0 %4364
  %4368 = vset.pattern.permute.xlu0 0
  %4369 = vperm.xlu0 %4368, %v3432
  %v4370 = vpop.permute.xlu0 %4369
  %4373 = vset.pattern.permute.xlu0 0
  %4374 = vperm.xlu0 %4373, %v3434
  %v4375 = vpop.permute.xlu0 %4374
  %4378 = vset.pattern.permute.xlu0 0
  %4379 = vperm.xlu0 %4378, %v3436
  %v4380 = vpop.permute.xlu0 %4379
  %4383 = vset.pattern.permute.xlu0 0
  %4384 = vperm.xlu0 %4383, %v3438
  %v4385 = vpop.permute.xlu0 %4384
  %4388 = vset.pattern.permute.xlu0 0
  %4389 = vperm.xlu0 %4388, %v3440
  %v4390 = vpop.permute.xlu0 %4389
  %4393 = vset.pattern.permute.xlu0 0
  %4394 = vperm.xlu0 %4393, %v3442
  %v4395 = vpop.permute.xlu0 %4394
  %4398 = vset.pattern.permute.xlu0 0
  %4399 = vperm.xlu0 %4398, %v3444
  %v4400 = vpop.permute.xlu0 %4399
  %4403 = vset.pattern.permute.xlu0 0
  %4404 = vperm.xlu0 %4403, %v3446
  %v4405 = vpop.permute.xlu0 %4404
  %4408 = vset.pattern.permute.xlu0 0
  %4409 = vperm.xlu0 %4408, %v3448
  %v4410 = vpop.permute.xlu0 %4409
  %4413 = vset.pattern.permute.xlu0 0
  %4414 = vperm.xlu0 %4413, %v3450
  %v4415 = vpop.permute.xlu0 %4414
  %4418 = vset.pattern.permute.xlu0 0
  %4419 = vperm.xlu0 %4418, %v3452
  %v4420 = vpop.permute.xlu0 %4419
  %4423 = vset.pattern.permute.xlu0 0
  %4424 = vperm.xlu0 %4423, %v3454
  %v4425 = vpop.permute.xlu0 %4424
  %4428 = vset.pattern.permute.xlu0 0
  %4429 = vperm.xlu0 %4428, %v3456
  %v4430 = vpop.permute.xlu0 %4429
  %4433 = vset.pattern.permute.xlu0 0
  %4434 = vperm.xlu0 %4433, %v3458
  %v4435 = vpop.permute.xlu0 %4434
  %4438 = vset.pattern.permute.xlu0 0
  %4439 = vperm.xlu0 %4438, %v3460
  %v4440 = vpop.permute.xlu0 %4439
  %4443 = vset.pattern.permute.xlu0 0
  %4444 = vperm.xlu0 %4443, %v3462
  %v4445 = vpop.permute.xlu0 %4444
  %4448 = vset.pattern.permute.xlu0 0
  %4449 = vperm.xlu0 %4448, %v3464
  %v4450 = vpop.permute.xlu0 %4449
  %4453 = vset.pattern.permute.xlu0 0
  %4454 = vperm.xlu0 %4453, %v3466
  %v4455 = vpop.permute.xlu0 %4454
  %4458 = vset.pattern.permute.xlu0 0
  %4459 = vperm.xlu0 %4458, %v3468
  %v4460 = vpop.permute.xlu0 %4459
  %4463 = vset.pattern.permute.xlu0 0
  %4464 = vperm.xlu0 %4463, %v3470
  %v4465 = vpop.permute.xlu0 %4464
  %4468 = vset.pattern.permute.xlu0 0
  %4469 = vperm.xlu0 %4468, %v3472
  %v4470 = vpop.permute.xlu0 %4469
  %4473 = vset.pattern.permute.xlu0 0
  %4474 = vperm.xlu0 %4473, %v3474
  %v4475 = vpop.permute.xlu0 %4474
  %4478 = vset.pattern.permute.xlu0 0
  %4479 = vperm.xlu0 %4478, %v3476
  %v4480 = vpop.permute.xlu0 %4479
  %4483 = vset.pattern.permute.xlu0 0
  %4484 = vperm.xlu0 %4483, %v3478
  %v4485 = vpop.permute.xlu0 %4484
  %4488 = vset.pattern.permute.xlu0 0
  %4489 = vperm.xlu0 %4488, %v3480
  %v4490 = vpop.permute.xlu0 %4489
  %4493 = vset.pattern.permute.xlu0 0
  %4494 = vperm.xlu0 %4493, %v3482
  %v4495 = vpop.permute.xlu0 %4494
  %4498 = vset.pattern.permute.xlu0 0
  %4499 = vperm.xlu0 %4498, %v3484
  %v4500 = vpop.permute.xlu0 %4499
  %4503 = vset.pattern.permute.xlu0 0
  %4504 = vperm.xlu0 %4503, %v3486
  %v4505 = vpop.permute.xlu0 %4504
  %4508 = vset.pattern.permute.xlu0 0
  %4509 = vperm.xlu0 %4508, %v3488
  %v4510 = vpop.permute.xlu0 %4509
  %4513 = vset.pattern.permute.xlu0 0
  %4514 = vperm.xlu0 %4513, %v3490
  %v4515 = vpop.permute.xlu0 %4514
  %4518 = vset.pattern.permute.xlu0 0
  %4519 = vperm.xlu0 %4518, %v3492
  %v4520 = vpop.permute.xlu0 %4519
  %4523 = vset.pattern.permute.xlu0 0
  %4524 = vperm.xlu0 %4523, %v3494
  %v4525 = vpop.permute.xlu0 %4524
  %4528 = vset.pattern.permute.xlu0 0
  %4529 = vperm.xlu0 %4528, %v3496
  %v4530 = vpop.permute.xlu0 %4529
  %4533 = vset.pattern.permute.xlu0 0
  %4534 = vperm.xlu0 %4533, %v3498
  %v4535 = vpop.permute.xlu0 %4534
  %4538 = vset.pattern.permute.xlu0 0
  %4539 = vperm.xlu0 %4538, %v3500
  %v4540 = vpop.permute.xlu0 %4539
  %4543 = vset.pattern.permute.xlu0 0
  %4544 = vperm.xlu0 %4543, %v3502
  %v4545 = vpop.permute.xlu0 %4544
  %4548 = vset.pattern.permute.xlu0 0
  %4549 = vperm.xlu0 %4548, %v3504
  %v4550 = vpop.permute.xlu0 %4549
  %4553 = vset.pattern.permute.xlu0 0
  %4554 = vperm.xlu0 %4553, %v3506
  %v4555 = vpop.permute.xlu0 %4554
  %4558 = vset.pattern.permute.xlu0 0
  %4559 = vperm.xlu0 %4558, %v3508
  %v4560 = vpop.permute.xlu0 %4559
  %4563 = vset.pattern.permute.xlu0 0
  %4564 = vperm.xlu0 %4563, %v3510
  %v4565 = vpop.permute.xlu0 %4564
  %4568 = vset.pattern.permute.xlu0 0
  %4569 = vperm.xlu0 %4568, %v3512
  %v4570 = vpop.permute.xlu0 %4569
  %4573 = vset.pattern.permute.xlu0 0
  %4574 = vperm.xlu0 %4573, %v3514
  %v4575 = vpop.permute.xlu0 %4574
  %4578 = vset.pattern.permute.xlu0 0
  %4579 = vperm.xlu0 %4578, %v3516
  %v4580 = vpop.permute.xlu0 %4579
  %4583 = vset.pattern.permute.xlu0 0
  %4584 = vperm.xlu0 %4583, %v3518
  %v4585 = vpop.permute.xlu0 %4584
  %4588 = vset.pattern.permute.xlu0 0
  %4589 = vperm.xlu0 %4588, %v3520
  %v4590 = vpop.permute.xlu0 %4589
  %4593 = vset.pattern.permute.xlu0 0
  %4594 = vperm.xlu0 %4593, %v3522
  %v4595 = vpop.permute.xlu0 %4594
  %4598 = vset.pattern.permute.xlu0 0
  %4599 = vperm.xlu0 %4598, %v3524
  %v4600 = vpop.permute.xlu0 %4599
  %4603 = vset.pattern.permute.xlu0 0
  %4604 = vperm.xlu0 %4603, %v3526
  %v4605 = vpop.permute.xlu0 %4604
  %4608 = vset.pattern.permute.xlu0 0
  %4609 = vperm.xlu0 %4608, %v3528
  %v4610 = vpop.permute.xlu0 %4609
  %4613 = vset.pattern.permute.xlu0 0
  %4614 = vperm.xlu0 %4613, %v3530
  %v4615 = vpop.permute.xlu0 %4614
  %4618 = vset.pattern.permute.xlu0 0
  %4619 = vperm.xlu0 %4618, %v3532
  %v4620 = vpop.permute.xlu0 %4619
  %4623 = vset.pattern.permute.xlu0 0
  %4624 = vperm.xlu0 %4623, %v3534
  %v4625 = vpop.permute.xlu0 %4624
  %4628 = vset.pattern.permute.xlu0 0
  %4629 = vperm.xlu0 %4628, %v3536
  %v4630 = vpop.permute.xlu0 %4629
  %4633 = vset.pattern.permute.xlu0 0
  %4634 = vperm.xlu0 %4633, %v3538
  %v4635 = vpop.permute.xlu0 %4634
  %4638 = vset.pattern.permute.xlu0 0
  %4639 = vperm.xlu0 %4638, %v3540
  %v4640 = vpop.permute.xlu0 %4639
  %4643 = vset.pattern.permute.xlu0 0
  %4644 = vperm.xlu0 %4643, %v3542
  %v4645 = vpop.permute.xlu0 %4644
  %4648 = vset.pattern.permute.xlu0 0
  %4649 = vperm.xlu0 %4648, %v3544
  %v4650 = vpop.permute.xlu0 %4649
  %4653 = vset.pattern.permute.xlu0 0
  %4654 = vperm.xlu0 %4653, %v3546
  %v4655 = vpop.permute.xlu0 %4654
  %4658 = vset.pattern.permute.xlu0 0
  %4659 = vperm.xlu0 %4658, %v3548
  %v4660 = vpop.permute.xlu0 %4659
  %4663 = vset.pattern.permute.xlu0 0
  %4664 = vperm.xlu0 %4663, %v3550
  %v4665 = vpop.permute.xlu0 %4664
  %4668 = vset.pattern.permute.xlu0 0
  %4669 = vperm.xlu0 %4668, %v3552
  %v4670 = vpop.permute.xlu0 %4669
  %4673 = vset.pattern.permute.xlu0 0
  %4674 = vperm.xlu0 %4673, %v3554
  %v4675 = vpop.permute.xlu0 %4674
  %4678 = vset.pattern.permute.xlu0 0
  %4679 = vperm.xlu0 %4678, %v3556
  %v4680 = vpop.permute.xlu0 %4679
  %4683 = vset.pattern.permute.xlu0 0
  %4684 = vperm.xlu0 %4683, %v3558
  %v4685 = vpop.permute.xlu0 %4684
  %4688 = vset.pattern.permute.xlu0 0
  %4689 = vperm.xlu0 %4688, %v3560
  %v4690 = vpop.permute.xlu0 %4689
  %4693 = vset.pattern.permute.xlu0 0
  %4694 = vperm.xlu0 %4693, %v3562
  %v4695 = vpop.permute.xlu0 %4694
  %4698 = vset.pattern.permute.xlu0 0
  %4699 = vperm.xlu0 %4698, %v3564
  %v4700 = vpop.permute.xlu0 %4699
  %4703 = vset.pattern.permute.xlu0 0
  %4704 = vperm.xlu0 %4703, %v3566
  %v4705 = vpop.permute.xlu0 %4704
  %4708 = vset.pattern.permute.xlu0 0
  %4709 = vperm.xlu0 %4708, %v3568
  %v4710 = vpop.permute.xlu0 %4709
  %4713 = vset.pattern.permute.xlu0 0
  %4714 = vperm.xlu0 %4713, %v3570
  %v4715 = vpop.permute.xlu0 %4714
  %4718 = vset.pattern.permute.xlu0 0
  %4719 = vperm.xlu0 %4718, %v3572
  %v4720 = vpop.permute.xlu0 %4719
  %4723 = vset.pattern.permute.xlu0 0
  %4724 = vperm.xlu0 %4723, %v3574
  %v4725 = vpop.permute.xlu0 %4724
  %4728 = vset.pattern.permute.xlu0 0
  %4729 = vperm.xlu0 %4728, %v3576
  %v4730 = vpop.permute.xlu0 %4729
  %4733 = vset.pattern.permute.xlu0 0
  %4734 = vperm.xlu0 %4733, %v3578
  %v4735 = vpop.permute.xlu0 %4734
  %4738 = vset.pattern.permute.xlu0 0
  %4739 = vperm.xlu0 %4738, %v3580
  %v4740 = vpop.permute.xlu0 %4739
  %4743 = vset.pattern.permute.xlu0 0
  %4744 = vperm.xlu0 %4743, %v3582
  %v4745 = vpop.permute.xlu0 %4744
  %4748 = vset.pattern.permute.xlu0 0
  %4749 = vperm.xlu0 %4748, %v3584
  %v4750 = vpop.permute.xlu0 %4749
  %4753 = vset.pattern.permute.xlu0 0
  %4754 = vperm.xlu0 %4753, %v3586
  %v4755 = vpop.permute.xlu0 %4754
  %4758 = vset.pattern.permute.xlu0 0
  %4759 = vperm.xlu0 %4758, %v3588
  %v4760 = vpop.permute.xlu0 %4759
  %4763 = vset.pattern.permute.xlu0 0
  %4764 = vperm.xlu0 %4763, %v3590
  %v4765 = vpop.permute.xlu0 %4764
  %4768 = vset.pattern.permute.xlu0 0
  %4769 = vperm.xlu0 %4768, %v3592
  %v4770 = vpop.permute.xlu0 %4769
  %4773 = vset.pattern.permute.xlu0 0
  %4774 = vperm.xlu0 %4773, %v3594
  %v4775 = vpop.permute.xlu0 %4774
  %4778 = vset.pattern.permute.xlu0 0
  %4779 = vperm.xlu0 %4778, %v3596
  %v4780 = vpop.permute.xlu0 %4779
  %4783 = vset.pattern.permute.xlu0 0
  %4784 = vperm.xlu0 %4783, %v3598
  %v4785 = vpop.permute.xlu0 %4784
  %4788 = vset.pattern.permute.xlu0 0
  %4789 = vperm.xlu0 %4788, %v3600
  %v4790 = vpop.permute.xlu0 %4789
  %4793 = vset.pattern.permute.xlu0 0
  %4794 = vperm.xlu0 %4793, %v3602
  %v4795 = vpop.permute.xlu0 %4794
  %4798 = vset.pattern.permute.xlu0 0
  %4799 = vperm.xlu0 %4798, %v3604
  %v4800 = vpop.permute.xlu0 %4799
  %4803 = vset.pattern.permute.xlu0 0
  %4804 = vperm.xlu0 %4803, %v3606
  %v4805 = vpop.permute.xlu0 %4804
  %4808 = vset.pattern.permute.xlu0 0
  %4809 = vperm.xlu0 %4808, %v3608
  %v4810 = vpop.permute.xlu0 %4809
  %4813 = vset.pattern.permute.xlu0 0
  %4814 = vperm.xlu0 %4813, %v3610
  %v4815 = vpop.permute.xlu0 %4814
  %4818 = vset.pattern.permute.xlu0 0
  %4819 = vperm.xlu0 %4818, %v3612
  %v4820 = vpop.permute.xlu0 %4819
  %4823 = vset.pattern.permute.xlu0 0
  %4824 = vperm.xlu0 %4823, %v3614
  %v4825 = vpop.permute.xlu0 %4824
  %4828 = vset.pattern.permute.xlu0 0
  %4829 = vperm.xlu0 %4828, %v3616
  %v4830 = vpop.permute.xlu0 %4829
  %4833 = vset.pattern.permute.xlu0 0
  %4834 = vperm.xlu0 %4833, %v3618
  %v4835 = vpop.permute.xlu0 %4834
  %4838 = vset.pattern.permute.xlu0 0
  %4839 = vperm.xlu0 %4838, %v3620
  %v4840 = vpop.permute.xlu0 %4839
  %4843 = vset.pattern.permute.xlu0 0
  %4844 = vperm.xlu0 %4843, %v3622
  %v4845 = vpop.permute.xlu0 %4844
  %4848 = vset.pattern.permute.xlu0 0
  %4849 = vperm.xlu0 %4848, %v3624
  %v4850 = vpop.permute.xlu0 %4849
  %4853 = vset.pattern.permute.xlu0 0
  %4854 = vperm.xlu0 %4853, %v3626
  %v4855 = vpop.permute.xlu0 %4854
  %4858 = vset.pattern.permute.xlu0 0
  %4859 = vperm.xlu0 %4858, %v3628
  %v4860 = vpop.permute.xlu0 %4859
  %4863 = vset.pattern.permute.xlu0 0
  %4864 = vperm.xlu0 %4863, %v3630
  %v4865 = vpop.permute.xlu0 %4864
  %4868 = vset.pattern.permute.xlu0 0
  %4869 = vperm.xlu0 %4868, %v3632
  %v4870 = vpop.permute.xlu0 %4869
  %4873 = vset.pattern.permute.xlu0 0
  %4874 = vperm.xlu0 %4873, %v3634
  %v4875 = vpop.permute.xlu0 %4874
  %4878 = vset.pattern.permute.xlu0 0
  %4879 = vperm.xlu0 %4878, %v3636
  %v4880 = vpop.permute.xlu0 %4879
  %4883 = vset.pattern.permute.xlu0 0
  %4884 = vperm.xlu0 %4883, %v3638
  %v4885 = vpop.permute.xlu0 %4884
  %4888 = vset.pattern.permute.xlu0 0
  %4889 = vperm.xlu0 %4888, %v3640
  %v4890 = vpop.permute.xlu0 %4889
  %4893 = vset.pattern.permute.xlu0 0
  %4894 = vperm.xlu0 %4893, %v3642
  %v4895 = vpop.permute.xlu0 %4894
  %4898 = vset.pattern.permute.xlu0 0
  %4899 = vperm.xlu0 %4898, %v3644
  %v4900 = vpop.permute.xlu0 %4899
  %4903 = vset.pattern.permute.xlu0 0
  %4904 = vperm.xlu0 %4903, %v3646
  %v4905 = vpop.permute.xlu0 %4904
  %4908 = vset.pattern.permute.xlu0 0
  %4909 = vperm.xlu0 %4908, %v3648
  %v4910 = vpop.permute.xlu0 %4909
  %4913 = vset.pattern.permute.xlu0 0
  %4914 = vperm.xlu0 %4913, %v3650
  %v4915 = vpop.permute.xlu0 %4914
  %4918 = vset.pattern.permute.xlu0 0
  %4919 = vperm.xlu0 %4918, %v3652
  %v4920 = vpop.permute.xlu0 %4919
  %4923 = vset.pattern.permute.xlu0 0
  %4924 = vperm.xlu0 %4923, %v3654
  %v4925 = vpop.permute.xlu0 %4924
  %4928 = vset.pattern.permute.xlu0 0
  %4929 = vperm.xlu0 %4928, %v3656
  %v4930 = vpop.permute.xlu0 %4929
  %4933 = vset.pattern.permute.xlu0 0
  %4934 = vperm.xlu0 %4933, %v3658
  %v4935 = vpop.permute.xlu0 %4934
  %4938 = vset.pattern.permute.xlu0 0
  %4939 = vperm.xlu0 %4938, %v3660
  %v4940 = vpop.permute.xlu0 %4939
  %4943 = vset.pattern.permute.xlu0 0
  %4944 = vperm.xlu0 %4943, %v3662
  %v4945 = vpop.permute.xlu0 %4944
  %4948 = vset.pattern.permute.xlu0 0
  %4949 = vperm.xlu0 %4948, %v3664
  %v4950 = vpop.permute.xlu0 %4949
  %4953 = vset.pattern.permute.xlu0 0
  %4954 = vperm.xlu0 %4953, %v3666
  %v4955 = vpop.permute.xlu0 %4954
  %4958 = vset.pattern.permute.xlu0 0
  %4959 = vperm.xlu0 %4958, %v3668
  %v4960 = vpop.permute.xlu0 %4959
  %4963 = vset.pattern.permute.xlu0 0
  %4964 = vperm.xlu0 %4963, %v3670
  %v4965 = vpop.permute.xlu0 %4964
  %4968 = vset.pattern.permute.xlu0 0
  %4969 = vperm.xlu0 %4968, %v3672
  %v4970 = vpop.permute.xlu0 %4969
  %4973 = vset.pattern.permute.xlu0 0
  %4974 = vperm.xlu0 %4973, %v3674
  %v4975 = vpop.permute.xlu0 %4974
  %4978 = vset.pattern.permute.xlu0 0
  %4979 = vperm.xlu0 %4978, %v3676
  %v4980 = vpop.permute.xlu0 %4979
  %4983 = vset.pattern.permute.xlu0 0
  %4984 = vperm.xlu0 %4983, %v3678
  %v4985 = vpop.permute.xlu0 %4984
  %4988 = vset.pattern.permute.xlu0 0
  %4989 = vperm.xlu0 %4988, %v3680
  %v4990 = vpop.permute.xlu0 %4989
  %4993 = vset.pattern.permute.xlu0 0
  %4994 = vperm.xlu0 %4993, %v3682
  %v4995 = vpop.permute.xlu0 %4994
  %4998 = vset.pattern.permute.xlu0 0
  %4999 = vperm.xlu0 %4998, %v3684
  %v5000 = vpop.permute.xlu0 %4999
  %5003 = vset.pattern.permute.xlu0 0
  %5004 = vperm.xlu0 %5003, %v3686
  %v5005 = vpop.permute.xlu0 %5004
  %5008 = vset.pattern.permute.xlu0 0
  %5009 = vperm.xlu0 %5008, %v3688
  %v5010 = vpop.permute.xlu0 %5009
  %5013 = vset.pattern.permute.xlu0 0
  %5014 = vperm.xlu0 %5013, %v3690
  %v5015 = vpop.permute.xlu0 %5014
  %5018 = vset.pattern.permute.xlu0 0
  %5019 = vperm.xlu0 %5018, %v3692
  %v5020 = vpop.permute.xlu0 %5019
  %5023 = vset.pattern.permute.xlu0 0
  %5024 = vperm.xlu0 %5023, %v3694
  %v5025 = vpop.permute.xlu0 %5024
  %5028 = vset.pattern.permute.xlu0 0
  %5029 = vperm.xlu0 %5028, %v3696
  %v5030 = vpop.permute.xlu0 %5029
  %5033 = vset.pattern.permute.xlu0 0
  %5034 = vperm.xlu0 %5033, %v3698
  %v5035 = vpop.permute.xlu0 %5034
  %5038 = vset.pattern.permute.xlu0 0
  %5039 = vperm.xlu0 %5038, %v3700
  %v5040 = vpop.permute.xlu0 %5039
  %5043 = vset.pattern.permute.xlu0 0
  %5044 = vperm.xlu0 %5043, %v3702
  %v5045 = vpop.permute.xlu0 %5044
  %5048 = vset.pattern.permute.xlu0 0
  %5049 = vperm.xlu0 %5048, %v3704
  %v5050 = vpop.permute.xlu0 %5049
  %5053 = vset.pattern.permute.xlu0 0
  %5054 = vperm.xlu0 %5053, %v3706
  %v5055 = vpop.permute.xlu0 %5054
  %5058 = vset.pattern.permute.xlu0 0
  %5059 = vperm.xlu0 %5058, %v3708
  %v5060 = vpop.permute.xlu0 %5059
  %5063 = vset.pattern.permute.xlu0 0
  %5064 = vperm.xlu0 %5063, %v3710
  %v5065 = vpop.permute.xlu0 %5064
  %5068 = vset.pattern.permute.xlu0 0
  %5069 = vperm.xlu0 %5068, %v3712
  %v5070 = vpop.permute.xlu0 %5069
  %5073 = vset.pattern.permute.xlu0 0
  %5074 = vperm.xlu0 %5073, %v3714
  %v5075 = vpop.permute.xlu0 %5074
  %5078 = vset.pattern.permute.xlu0 0
  %5079 = vperm.xlu0 %5078, %v3716
  %v5080 = vpop.permute.xlu0 %5079
  %5083 = vset.pattern.permute.xlu0 0
  %5084 = vperm.xlu0 %5083, %v3718
  %v5085 = vpop.permute.xlu0 %5084
  %v5087 = vmul.f32 %v3719, %v3950
  %v5088 = vmul.f32 %v3720, %v3955
  %v5089 = vmul.f32 %v3721, %v3960
  %v5090 = vmul.f32 %v3722, %v3965
  %v5091 = vmul.f32 %v3723, %v3970
  %v5092 = vmul.f32 %v3724, %v3975
  %v5093 = vmul.f32 %v3725, %v3980
  %v5094 = vmul.f32 %v3726, %v3985
  %v5095 = vmul.f32 %v3727, %v3990
  %v5096 = vmul.f32 %v3728, %v3995
  %v5097 = vmul.f32 %v3729, %v4000
  %v5098 = vmul.f32 %v3730, %v4005
  %v5099 = vmul.f32 %v3731, %v4010
  %v5100 = vmul.f32 %v3732, %v4015
  %v5101 = vmul.f32 %v3733, %v4020
  %v5102 = vmul.f32 %v3734, %v4025
  %v5103 = vmul.f32 %v3735, %v4030
  %v5104 = vmul.f32 %v3736, %v4035
  %v5105 = vmul.f32 %v3737, %v4040
  %v5106 = vmul.f32 %v3738, %v4045
  %v5107 = vmul.f32 %v3739, %v4050
  %v5108 = vmul.f32 %v3740, %v4055
  %v5109 = vmul.f32 %v3741, %v4060
  %v5110 = vmul.f32 %v3742, %v4065
  %v5111 = vmul.f32 %v3743, %v4070
  %v5112 = vmul.f32 %v3744, %v4075
  %v5113 = vmul.f32 %v3745, %v4080
  %v5114 = vmul.f32 %v3746, %v4085
  %v5115 = vmul.f32 %v3747, %v4090
  %v5116 = vmul.f32 %v3748, %v4095
  %v5117 = vmul.f32 %v3749, %v4100
  %v5118 = vmul.f32 %v3750, %v4105
  %v5119 = vmul.f32 %v3751, %v4110
  %v5120 = vmul.f32 %v3752, %v4115
  %v5121 = vmul.f32 %v3753, %v4120
  %v5122 = vmul.f32 %v3754, %v4125
  %v5123 = vmul.f32 %v3755, %v4130
  %v5124 = vmul.f32 %v3756, %v4135
  %v5125 = vmul.f32 %v3757, %v4140
  %v5126 = vmul.f32 %v3758, %v4145
  %v5127 = vmul.f32 %v3759, %v4150
  %v5128 = vmul.f32 %v3760, %v4155
  %v5129 = vmul.f32 %v3761, %v4160
  %v5130 = vmul.f32 %v3762, %v4165
  %v5131 = vmul.f32 %v3763, %v4170
  %v5132 = vmul.f32 %v3764, %v4175
  %v5133 = vmul.f32 %v3765, %v4180
  %v5134 = vmul.f32 %v3766, %v4185
  %v5135 = vmul.f32 %v3767, %v4190
  %v5136 = vmul.f32 %v3768, %v4195
  %v5137 = vmul.f32 %v3769, %v4200
  %v5138 = vmul.f32 %v3770, %v4205
  %v5139 = vmul.f32 %v3771, %v4210
  %v5140 = vmul.f32 %v3772, %v4215
  %v5141 = vmul.f32 %v3773, %v4220
  %v5142 = vmul.f32 %v3774, %v4225
  %v5143 = vmul.f32 %v3775, %v4230
  %v5144 = vmul.f32 %v3776, %v4235
  %v5145 = vmul.f32 %v3777, %v4240
  %v5146 = vmul.f32 %v3778, %v4245
  %v5147 = vmul.f32 %v3779, %v4250
  %v5148 = vmul.f32 %v3780, %v4255
  %v5149 = vmul.f32 %v3781, %v4260
  %v5150 = vmul.f32 %v3782, %v4265
  %v5151 = vmul.f32 %v3783, %v4270
  %v5152 = vmul.f32 %v3784, %v4275
  %v5153 = vmul.f32 %v3785, %v4280
  %v5154 = vmul.f32 %v3786, %v4285
  %v5155 = vmul.f32 %v3787, %v4290
  %v5156 = vmul.f32 %v3788, %v4295
  %v5157 = vmul.f32 %v3789, %v4300
  %v5158 = vmul.f32 %v3790, %v4305
  %v5159 = vmul.f32 %v3791, %v4310
  %v5160 = vmul.f32 %v3792, %v4315
  %v5161 = vmul.f32 %v3793, %v4320
  %v5162 = vmul.f32 %v3794, %v4325
  %v5163 = vmul.f32 %v3795, %v4330
  %v5164 = vmul.f32 %v3796, %v4335
  %v5165 = vmul.f32 %v3797, %v4340
  %v5166 = vmul.f32 %v3798, %v4345
  %v5167 = vmul.f32 %v3799, %v4350
  %v5168 = vmul.f32 %v3800, %v4355
  %v5169 = vmul.f32 %v3801, %v4360
  %v5170 = vmul.f32 %v3802, %v4365
  %v5171 = vmul.f32 %v3803, %v4370
  %v5172 = vmul.f32 %v3804, %v4375
  %v5173 = vmul.f32 %v3805, %v4380
  %v5174 = vmul.f32 %v3806, %v4385
  %v5175 = vmul.f32 %v3807, %v4390
  %v5176 = vmul.f32 %v3808, %v4395
  %v5177 = vmul.f32 %v3809, %v4400
  %v5178 = vmul.f32 %v3810, %v4405
  %v5179 = vmul.f32 %v3811, %v4410
  %v5180 = vmul.f32 %v3812, %v4415
  %v5181 = vmul.f32 %v3813, %v4420
  %v5182 = vmul.f32 %v3814, %v4425
  %v5183 = vmul.f32 %v3815, %v4430
  %v5184 = vmul.f32 %v3816, %v4435
  %v5185 = vmul.f32 %v3817, %v4440
  %v5186 = vmul.f32 %v3818, %v4445
  %v5187 = vmul.f32 %v3819, %v4450
  %v5188 = vmul.f32 %v3820, %v4455
  %v5189 = vmul.f32 %v3821, %v4460
  %v5190 = vmul.f32 %v3822, %v4465
  %v5191 = vmul.f32 %v3823, %v4470
  %v5192 = vmul.f32 %v3824, %v4475
  %v5193 = vmul.f32 %v3825, %v4480
  %v5194 = vmul.f32 %v3826, %v4485
  %v5195 = vmul.f32 %v3827, %v4490
  %v5196 = vmul.f32 %v3828, %v4495
  %v5197 = vmul.f32 %v3829, %v4500
  %v5198 = vmul.f32 %v3830, %v4505
  %v5199 = vmul.f32 %v3831, %v4510
  %v5200 = vmul.f32 %v3832, %v4515
  %v5201 = vmul.f32 %v3833, %v4520
  %v5202 = vmul.f32 %v3834, %v4525
  %v5203 = vmul.f32 %v3835, %v4530
  %v5204 = vmul.f32 %v3836, %v4535
  %v5205 = vmul.f32 %v3837, %v4540
  %v5206 = vmul.f32 %v3838, %v4545
  %v5207 = vmul.f32 %v3839, %v4550
  %v5208 = vmul.f32 %v3840, %v4555
  %v5209 = vmul.f32 %v3841, %v4560
  %v5210 = vmul.f32 %v3842, %v4565
  %v5211 = vmul.f32 %v3843, %v4570
  %v5212 = vmul.f32 %v3844, %v4575
  %v5213 = vmul.f32 %v3845, %v4580
  %v5214 = vmul.f32 %v3846, %v4585
  %v5215 = vmul.f32 %v3847, %v4590
  %v5216 = vmul.f32 %v3848, %v4595
  %v5217 = vmul.f32 %v3849, %v4600
  %v5218 = vmul.f32 %v3850, %v4605
  %v5219 = vmul.f32 %v3851, %v4610
  %v5220 = vmul.f32 %v3852, %v4615
  %v5221 = vmul.f32 %v3853, %v4620
  %v5222 = vmul.f32 %v3854, %v4625
  %v5223 = vmul.f32 %v3855, %v4630
  %v5224 = vmul.f32 %v3856, %v4635
  %v5225 = vmul.f32 %v3857, %v4640
  %v5226 = vmul.f32 %v3858, %v4645
  %v5227 = vmul.f32 %v3859, %v4650
  %v5228 = vmul.f32 %v3860, %v4655
  %v5229 = vmul.f32 %v3861, %v4660
  %v5230 = vmul.f32 %v3862, %v4665
  %v5231 = vmul.f32 %v3863, %v4670
  %v5232 = vmul.f32 %v3864, %v4675
  %v5233 = vmul.f32 %v3865, %v4680
  %v5234 = vmul.f32 %v3866, %v4685
  %v5235 = vmul.f32 %v3867, %v4690
  %v5236 = vmul.f32 %v3868, %v4695
  %v5237 = vmul.f32 %v3869, %v4700
  %v5238 = vmul.f32 %v3870, %v4705
  %v5239 = vmul.f32 %v3871, %v4710
  %v5240 = vmul.f32 %v3872, %v4715
  %v5241 = vmul.f32 %v3873, %v4720
  %v5242 = vmul.f32 %v3874, %v4725
  %v5243 = vmul.f32 %v3875, %v4730
  %v5244 = vmul.f32 %v3876, %v4735
  %v5245 = vmul.f32 %v3877, %v4740
  %v5246 = vmul.f32 %v3878, %v4745
  %v5247 = vmul.f32 %v3879, %v4750
  %v5248 = vmul.f32 %v3880, %v4755
  %v5249 = vmul.f32 %v3881, %v4760
  %v5250 = vmul.f32 %v3882, %v4765
  %v5251 = vmul.f32 %v3883, %v4770
  %v5252 = vmul.f32 %v3884, %v4775
  %v5253 = vmul.f32 %v3885, %v4780
  %v5254 = vmul.f32 %v3886, %v4785
  %v5255 = vmul.f32 %v3887, %v4790
  %v5256 = vmul.f32 %v3888, %v4795
  %v5257 = vmul.f32 %v3889, %v4800
  %v5258 = vmul.f32 %v3890, %v4805
  %v5259 = vmul.f32 %v3891, %v4810
  %v5260 = vmul.f32 %v3892, %v4815
  %v5261 = vmul.f32 %v3893, %v4820
  %v5262 = vmul.f32 %v3894, %v4825
  %v5263 = vmul.f32 %v3895, %v4830
  %v5264 = vmul.f32 %v3896, %v4835
  %v5265 = vmul.f32 %v3897, %v4840
  %v5266 = vmul.f32 %v3898, %v4845
  %v5267 = vmul.f32 %v3899, %v4850
  %v5268 = vmul.f32 %v3900, %v4855
  %v5269 = vmul.f32 %v3901, %v4860
  %v5270 = vmul.f32 %v3902, %v4865
  %v5271 = vmul.f32 %v3903, %v4870
  %v5272 = vmul.f32 %v3904, %v4875
  %v5273 = vmul.f32 %v3905, %v4880
  %v5274 = vmul.f32 %v3906, %v4885
  %v5275 = vmul.f32 %v3907, %v4890
  %v5276 = vmul.f32 %v3908, %v4895
  %v5277 = vmul.f32 %v3909, %v4900
  %v5278 = vmul.f32 %v3910, %v4905
  %v5279 = vmul.f32 %v3911, %v4910
  %v5280 = vmul.f32 %v3912, %v4915
  %v5281 = vmul.f32 %v3913, %v4920
  %v5282 = vmul.f32 %v3914, %v4925
  %v5283 = vmul.f32 %v3915, %v4930
  %v5284 = vmul.f32 %v3916, %v4935
  %v5285 = vmul.f32 %v3917, %v4940
  %v5286 = vmul.f32 %v3918, %v4945
  %v5287 = vmul.f32 %v3919, %v4950
  %v5288 = vmul.f32 %v3920, %v4955
  %v5289 = vmul.f32 %v3921, %v4960
  %v5290 = vmul.f32 %v3922, %v4965
  %v5291 = vmul.f32 %v3923, %v4970
  %v5292 = vmul.f32 %v3924, %v4975
  %v5293 = vmul.f32 %v3925, %v4980
  %v5294 = vmul.f32 %v3926, %v4985
  %v5295 = vmul.f32 %v3927, %v4990
  %v5296 = vmul.f32 %v3928, %v4995
  %v5297 = vmul.f32 %v3929, %v5000
  %v5298 = vmul.f32 %v3930, %v5005
  %v5299 = vmul.f32 %v3931, %v5010
  %v5300 = vmul.f32 %v3932, %v5015
  %v5301 = vmul.f32 %v3933, %v5020
  %v5302 = vmul.f32 %v3934, %v5025
  %v5303 = vmul.f32 %v3935, %v5030
  %v5304 = vmul.f32 %v3936, %v5035
  %v5305 = vmul.f32 %v3937, %v5040
  %v5306 = vmul.f32 %v3938, %v5045
  %v5307 = vmul.f32 %v3939, %v5050
  %v5308 = vmul.f32 %v3940, %v5055
  %v5309 = vmul.f32 %v3941, %v5060
  %v5310 = vmul.f32 %v3942, %v5065
  %v5311 = vmul.f32 %v3943, %v5070
  %v5312 = vmul.f32 %v3944, %v5075
  %v5313 = vmul.f32 %v3945, %v5080
  %v5314 = vmul.f32 %v3946, %v5085
  %vm5315 = vcmask 400384
  %5316 = vst.msk [vmem:[%s4] sm:$0xff] %vm5315, %v5087
  %5317 = vst.msk [vmem:[%s4 + $0x8] sm:$0xff] %vm5315, %v5088
  %5318 = vst.msk [vmem:[%s4 + $0x10] sm:$0xff] %vm5315, %v5089
  %5319 = vst.msk [vmem:[%s4 + $0x18] sm:$0xff] %vm5315, %v5090
  %5320 = vst.msk [vmem:[%s4 + $0x20] sm:$0xff] %vm5315, %v5091
  %5321 = vst.msk [vmem:[%s4 + $0x28] sm:$0xff] %vm5315, %v5092
  %5322 = vst.msk [vmem:[%s4 + $0x30] sm:$0xff] %vm5315, %v5093
  %5323 = vst.msk [vmem:[%s4 + $0x38] sm:$0xff] %vm5315, %v5094
  %5324 = vst.msk [vmem:[%s4 + $0x40] sm:$0xff] %vm5315, %v5095
  %5325 = vst.msk [vmem:[%s4 + $0x48] sm:$0xff] %vm5315, %v5096
  %5326 = vst.msk [vmem:[%s4 + $0x50] sm:$0xff] %vm5315, %v5097
  %5327 = vst.msk [vmem:[%s4 + $0x58] sm:$0xff] %vm5315, %v5098
  %5328 = vst.msk [vmem:[%s4 + $0x60] sm:$0xff] %vm5315, %v5099
  %5329 = vst.msk [vmem:[%s4 + $0x68] sm:$0xff] %vm5315, %v5100
  %5330 = vst.msk [vmem:[%s4 + $0x70] sm:$0xff] %vm5315, %v5101
  %5331 = vst.msk [vmem:[%s4 + $0x78] sm:$0xff] %vm5315, %v5102
  %5332 = vst.msk [vmem:[%s4 + $0x80] sm:$0xff] %vm5315, %v5103
  %5333 = vst.msk [vmem:[%s4 + $0x88] sm:$0xff] %vm5315, %v5104
  %5334 = vst.msk [vmem:[%s4 + $0x90] sm:$0xff] %vm5315, %v5105
  %5335 = vst.msk [vmem:[%s4 + $0x98] sm:$0xff] %vm5315, %v5106
  %5336 = vst.msk [vmem:[%s4 + $0xa0] sm:$0xff] %vm5315, %v5107
  %5337 = vst.msk [vmem:[%s4 + $0xa8] sm:$0xff] %vm5315, %v5108
  %5338 = vst.msk [vmem:[%s4 + $0xb0] sm:$0xff] %vm5315, %v5109
  %5339 = vst.msk [vmem:[%s4 + $0xb8] sm:$0xff] %vm5315, %v5110
  %5340 = vst.msk [vmem:[%s4 + $0xc0] sm:$0xff] %vm5315, %v5111
  %5341 = vst.msk [vmem:[%s4 + $0xc8] sm:$0xff] %vm5315, %v5112
  %5342 = vst.msk [vmem:[%s4 + $0xd0] sm:$0xff] %vm5315, %v5113
  %5343 = vst.msk [vmem:[%s4 + $0xd8] sm:$0xff] %vm5315, %v5114
  %5344 = vst.msk [vmem:[%s4 + $0xe0] sm:$0xff] %vm5315, %v5115
  %5345 = vst.msk [vmem:[%s4 + $0xe8] sm:$0xff] %vm5315, %v5116
  %5346 = vst.msk [vmem:[%s4 + $0xf0] sm:$0xff] %vm5315, %v5117
  %5347 = vst.msk [vmem:[%s4 + $0xf8] sm:$0xff] %vm5315, %v5118
  %5348 = vst.msk [vmem:[%s4 + $0x100] sm:$0xff] %vm5315, %v5119
  %5349 = vst.msk [vmem:[%s4 + $0x108] sm:$0xff] %vm5315, %v5120
  %5350 = vst.msk [vmem:[%s4 + $0x110] sm:$0xff] %vm5315, %v5121
  %5351 = vst.msk [vmem:[%s4 + $0x118] sm:$0xff] %vm5315, %v5122
  %5352 = vst.msk [vmem:[%s4 + $0x120] sm:$0xff] %vm5315, %v5123
  %5353 = vst.msk [vmem:[%s4 + $0x128] sm:$0xff] %vm5315, %v5124
  %5354 = vst.msk [vmem:[%s4 + $0x130] sm:$0xff] %vm5315, %v5125
  %5355 = vst.msk [vmem:[%s4 + $0x138] sm:$0xff] %vm5315, %v5126
  %5356 = vst.msk [vmem:[%s4 + $0x140] sm:$0xff] %vm5315, %v5127
  %5357 = vst.msk [vmem:[%s4 + $0x148] sm:$0xff] %vm5315, %v5128
  %5358 = vst.msk [vmem:[%s4 + $0x150] sm:$0xff] %vm5315, %v5129
  %5359 = vst.msk [vmem:[%s4 + $0x158] sm:$0xff] %vm5315, %v5130
  %5360 = vst.msk [vmem:[%s4 + $0x160] sm:$0xff] %vm5315, %v5131
  %5361 = vst.msk [vmem:[%s4 + $0x168] sm:$0xff] %vm5315, %v5132
  %5362 = vst.msk [vmem:[%s4 + $0x170] sm:$0xff] %vm5315, %v5133
  %5363 = vst.msk [vmem:[%s4 + $0x178] sm:$0xff] %vm5315, %v5134
  %5364 = vst.msk [vmem:[%s4 + $0x180] sm:$0xff] %vm5315, %v5135
  %5365 = vst.msk [vmem:[%s4 + $0x188] sm:$0xff] %vm5315, %v5136
  %5366 = vst.msk [vmem:[%s4 + $0x190] sm:$0xff] %vm5315, %v5137
  %5367 = vst.msk [vmem:[%s4 + $0x198] sm:$0xff] %vm5315, %v5138
  %5368 = vst.msk [vmem:[%s4 + $0x1a0] sm:$0xff] %vm5315, %v5139
  %5369 = vst.msk [vmem:[%s4 + $0x1a8] sm:$0xff] %vm5315, %v5140
  %5370 = vst.msk [vmem:[%s4 + $0x1b0] sm:$0xff] %vm5315, %v5141
  %5371 = vst.msk [vmem:[%s4 + $0x1b8] sm:$0xff] %vm5315, %v5142
  %5372 = vst.msk [vmem:[%s4 + $0x1c0] sm:$0xff] %vm5315, %v5143
  %5373 = vst.msk [vmem:[%s4 + $0x1c8] sm:$0xff] %vm5315, %v5144
  %5374 = vst.msk [vmem:[%s4 + $0x1d0] sm:$0xff] %vm5315, %v5145
  %5375 = vst.msk [vmem:[%s4 + $0x1d8] sm:$0xff] %vm5315, %v5146
  %5376 = vst.msk [vmem:[%s4 + $0x1e0] sm:$0xff] %vm5315, %v5147
  %5377 = vst.msk [vmem:[%s4 + $0x1e8] sm:$0xff] %vm5315, %v5148
  %5378 = vst.msk [vmem:[%s4 + $0x1f0] sm:$0xff] %vm5315, %v5149
  %5379 = vst.msk [vmem:[%s4 + $0x1f8] sm:$0xff] %vm5315, %v5150
  %5380 = vst.msk [vmem:[%s4 + $0x200] sm:$0xff] %vm5315, %v5151
  %5381 = vst.msk [vmem:[%s4 + $0x208] sm:$0xff] %vm5315, %v5152
  %5382 = vst.msk [vmem:[%s4 + $0x210] sm:$0xff] %vm5315, %v5153
  %5383 = vst.msk [vmem:[%s4 + $0x218] sm:$0xff] %vm5315, %v5154
  %5384 = vst.msk [vmem:[%s4 + $0x220] sm:$0xff] %vm5315, %v5155
  %5385 = vst.msk [vmem:[%s4 + $0x228] sm:$0xff] %vm5315, %v5156
  %5386 = vst.msk [vmem:[%s4 + $0x230] sm:$0xff] %vm5315, %v5157
  %5387 = vst.msk [vmem:[%s4 + $0x238] sm:$0xff] %vm5315, %v5158
  %5388 = vst.msk [vmem:[%s4 + $0x240] sm:$0xff] %vm5315, %v5159
  %5389 = vst.msk [vmem:[%s4 + $0x248] sm:$0xff] %vm5315, %v5160
  %5390 = vst.msk [vmem:[%s4 + $0x250] sm:$0xff] %vm5315, %v5161
  %5391 = vst.msk [vmem:[%s4 + $0x258] sm:$0xff] %vm5315, %v5162
  %5392 = vst.msk [vmem:[%s4 + $0x260] sm:$0xff] %vm5315, %v5163
  %5393 = vst.msk [vmem:[%s4 + $0x268] sm:$0xff] %vm5315, %v5164
  %5394 = vst.msk [vmem:[%s4 + $0x270] sm:$0xff] %vm5315, %v5165
  %5395 = vst.msk [vmem:[%s4 + $0x278] sm:$0xff] %vm5315, %v5166
  %5396 = vst.msk [vmem:[%s4 + $0x280] sm:$0xff] %vm5315, %v5167
  %5397 = vst.msk [vmem:[%s4 + $0x288] sm:$0xff] %vm5315, %v5168
  %5398 = vst.msk [vmem:[%s4 + $0x290] sm:$0xff] %vm5315, %v5169
  %5399 = vst.msk [vmem:[%s4 + $0x298] sm:$0xff] %vm5315, %v5170
  %5400 = vst.msk [vmem:[%s4 + $0x2a0] sm:$0xff] %vm5315, %v5171
  %5401 = vst.msk [vmem:[%s4 + $0x2a8] sm:$0xff] %vm5315, %v5172
  %5402 = vst.msk [vmem:[%s4 + $0x2b0] sm:$0xff] %vm5315, %v5173
  %5403 = vst.msk [vmem:[%s4 + $0x2b8] sm:$0xff] %vm5315, %v5174
  %5404 = vst.msk [vmem:[%s4 + $0x2c0] sm:$0xff] %vm5315, %v5175
  %5405 = vst.msk [vmem:[%s4 + $0x2c8] sm:$0xff] %vm5315, %v5176
  %5406 = vst.msk [vmem:[%s4 + $0x2d0] sm:$0xff] %vm5315, %v5177
  %5407 = vst.msk [vmem:[%s4 + $0x2d8] sm:$0xff] %vm5315, %v5178
  %5408 = vst.msk [vmem:[%s4 + $0x2e0] sm:$0xff] %vm5315, %v5179
  %5409 = vst.msk [vmem:[%s4 + $0x2e8] sm:$0xff] %vm5315, %v5180
  %5410 = vst.msk [vmem:[%s4 + $0x2f0] sm:$0xff] %vm5315, %v5181
  %5411 = vst.msk [vmem:[%s4 + $0x2f8] sm:$0xff] %vm5315, %v5182
  %5412 = vst.msk [vmem:[%s4 + $0x300] sm:$0xff] %vm5315, %v5183
  %5413 = vst.msk [vmem:[%s4 + $0x308] sm:$0xff] %vm5315, %v5184
  %5414 = vst.msk [vmem:[%s4 + $0x310] sm:$0xff] %vm5315, %v5185
  %5415 = vst.msk [vmem:[%s4 + $0x318] sm:$0xff] %vm5315, %v5186
  %5416 = vst.msk [vmem:[%s4 + $0x320] sm:$0xff] %vm5315, %v5187
  %5417 = vst.msk [vmem:[%s4 + $0x328] sm:$0xff] %vm5315, %v5188
  %5418 = vst.msk [vmem:[%s4 + $0x330] sm:$0xff] %vm5315, %v5189
  %5419 = vst.msk [vmem:[%s4 + $0x338] sm:$0xff] %vm5315, %v5190
  %5420 = vst.msk [vmem:[%s4 + $0x340] sm:$0xff] %vm5315, %v5191
  %5421 = vst.msk [vmem:[%s4 + $0x348] sm:$0xff] %vm5315, %v5192
  %5422 = vst.msk [vmem:[%s4 + $0x350] sm:$0xff] %vm5315, %v5193
  %5423 = vst.msk [vmem:[%s4 + $0x358] sm:$0xff] %vm5315, %v5194
  %5424 = vst.msk [vmem:[%s4 + $0x360] sm:$0xff] %vm5315, %v5195
  %5425 = vst.msk [vmem:[%s4 + $0x368] sm:$0xff] %vm5315, %v5196
  %5426 = vst.msk [vmem:[%s4 + $0x370] sm:$0xff] %vm5315, %v5197
  %5427 = vst.msk [vmem:[%s4 + $0x378] sm:$0xff] %vm5315, %v5198
  %5428 = vst.msk [vmem:[%s4 + $0x380] sm:$0xff] %vm5315, %v5199
  %5429 = vst.msk [vmem:[%s4 + $0x388] sm:$0xff] %vm5315, %v5200
  %5430 = vst.msk [vmem:[%s4 + $0x390] sm:$0xff] %vm5315, %v5201
  %5431 = vst.msk [vmem:[%s4 + $0x398] sm:$0xff] %vm5315, %v5202
  %5432 = vst.msk [vmem:[%s4 + $0x3a0] sm:$0xff] %vm5315, %v5203
  %5433 = vst.msk [vmem:[%s4 + $0x3a8] sm:$0xff] %vm5315, %v5204
  %5434 = vst.msk [vmem:[%s4 + $0x3b0] sm:$0xff] %vm5315, %v5205
  %5435 = vst.msk [vmem:[%s4 + $0x3b8] sm:$0xff] %vm5315, %v5206
  %5436 = vst.msk [vmem:[%s4 + $0x3c0] sm:$0xff] %vm5315, %v5207
  %5437 = vst.msk [vmem:[%s4 + $0x3c8] sm:$0xff] %vm5315, %v5208
  %5438 = vst.msk [vmem:[%s4 + $0x3d0] sm:$0xff] %vm5315, %v5209
  %5439 = vst.msk [vmem:[%s4 + $0x3d8] sm:$0xff] %vm5315, %v5210
  %5440 = vst.msk [vmem:[%s4 + $0x3e0] sm:$0xff] %vm5315, %v5211
  %5441 = vst.msk [vmem:[%s4 + $0x3e8] sm:$0xff] %vm5315, %v5212
  %5442 = vst.msk [vmem:[%s4 + $0x3f0] sm:$0xff] %vm5315, %v5213
  %5443 = vst.msk [vmem:[%s4 + $0x3f8] sm:$0xff] %vm5315, %v5214
  %5444 = vst.msk [vmem:[%s4 + $0x400] sm:$0xff] %vm5315, %v5215
  %5445 = vst.msk [vmem:[%s4 + $0x408] sm:$0xff] %vm5315, %v5216
  %5446 = vst.msk [vmem:[%s4 + $0x410] sm:$0xff] %vm5315, %v5217
  %5447 = vst.msk [vmem:[%s4 + $0x418] sm:$0xff] %vm5315, %v5218
  %5448 = vst.msk [vmem:[%s4 + $0x420] sm:$0xff] %vm5315, %v5219
  %5449 = vst.msk [vmem:[%s4 + $0x428] sm:$0xff] %vm5315, %v5220
  %5450 = vst.msk [vmem:[%s4 + $0x430] sm:$0xff] %vm5315, %v5221
  %5451 = vst.msk [vmem:[%s4 + $0x438] sm:$0xff] %vm5315, %v5222
  %5452 = vst.msk [vmem:[%s4 + $0x440] sm:$0xff] %vm5315, %v5223
  %5453 = vst.msk [vmem:[%s4 + $0x448] sm:$0xff] %vm5315, %v5224
  %5454 = vst.msk [vmem:[%s4 + $0x450] sm:$0xff] %vm5315, %v5225
  %5455 = vst.msk [vmem:[%s4 + $0x458] sm:$0xff] %vm5315, %v5226
  %5456 = vst.msk [vmem:[%s4 + $0x460] sm:$0xff] %vm5315, %v5227
  %5457 = vst.msk [vmem:[%s4 + $0x468] sm:$0xff] %vm5315, %v5228
  %5458 = vst.msk [vmem:[%s4 + $0x470] sm:$0xff] %vm5315, %v5229
  %5459 = vst.msk [vmem:[%s4 + $0x478] sm:$0xff] %vm5315, %v5230
  %5460 = vst.msk [vmem:[%s4 + $0x480] sm:$0xff] %vm5315, %v5231
  %5461 = vst.msk [vmem:[%s4 + $0x488] sm:$0xff] %vm5315, %v5232
  %5462 = vst.msk [vmem:[%s4 + $0x490] sm:$0xff] %vm5315, %v5233
  %5463 = vst.msk [vmem:[%s4 + $0x498] sm:$0xff] %vm5315, %v5234
  %5464 = vst.msk [vmem:[%s4 + $0x4a0] sm:$0xff] %vm5315, %v5235
  %5465 = vst.msk [vmem:[%s4 + $0x4a8] sm:$0xff] %vm5315, %v5236
  %5466 = vst.msk [vmem:[%s4 + $0x4b0] sm:$0xff] %vm5315, %v5237
  %5467 = vst.msk [vmem:[%s4 + $0x4b8] sm:$0xff] %vm5315, %v5238
  %5468 = vst.msk [vmem:[%s4 + $0x4c0] sm:$0xff] %vm5315, %v5239
  %5469 = vst.msk [vmem:[%s4 + $0x4c8] sm:$0xff] %vm5315, %v5240
  %5470 = vst.msk [vmem:[%s4 + $0x4d0] sm:$0xff] %vm5315, %v5241
  %5471 = vst.msk [vmem:[%s4 + $0x4d8] sm:$0xff] %vm5315, %v5242
  %5472 = vst.msk [vmem:[%s4 + $0x4e0] sm:$0xff] %vm5315, %v5243
  %5473 = vst.msk [vmem:[%s4 + $0x4e8] sm:$0xff] %vm5315, %v5244
  %5474 = vst.msk [vmem:[%s4 + $0x4f0] sm:$0xff] %vm5315, %v5245
  %5475 = vst.msk [vmem:[%s4 + $0x4f8] sm:$0xff] %vm5315, %v5246
  %5476 = vst.msk [vmem:[%s4 + $0x500] sm:$0xff] %vm5315, %v5247
  %5477 = vst.msk [vmem:[%s4 + $0x508] sm:$0xff] %vm5315, %v5248
  %5478 = vst.msk [vmem:[%s4 + $0x510] sm:$0xff] %vm5315, %v5249
  %5479 = vst.msk [vmem:[%s4 + $0x518] sm:$0xff] %vm5315, %v5250
  %5480 = vst.msk [vmem:[%s4 + $0x520] sm:$0xff] %vm5315, %v5251
  %5481 = vst.msk [vmem:[%s4 + $0x528] sm:$0xff] %vm5315, %v5252
  %5482 = vst.msk [vmem:[%s4 + $0x530] sm:$0xff] %vm5315, %v5253
  %5483 = vst.msk [vmem:[%s4 + $0x538] sm:$0xff] %vm5315, %v5254
  %5484 = vst.msk [vmem:[%s4 + $0x540] sm:$0xff] %vm5315, %v5255
  %5485 = vst.msk [vmem:[%s4 + $0x548] sm:$0xff] %vm5315, %v5256
  %5486 = vst.msk [vmem:[%s4 + $0x550] sm:$0xff] %vm5315, %v5257
  %5487 = vst.msk [vmem:[%s4 + $0x558] sm:$0xff] %vm5315, %v5258
  %5488 = vst.msk [vmem:[%s4 + $0x560] sm:$0xff] %vm5315, %v5259
  %5489 = vst.msk [vmem:[%s4 + $0x568] sm:$0xff] %vm5315, %v5260
  %5490 = vst.msk [vmem:[%s4 + $0x570] sm:$0xff] %vm5315, %v5261
  %5491 = vst.msk [vmem:[%s4 + $0x578] sm:$0xff] %vm5315, %v5262
  %5492 = vst.msk [vmem:[%s4 + $0x580] sm:$0xff] %vm5315, %v5263
  %5493 = vst.msk [vmem:[%s4 + $0x588] sm:$0xff] %vm5315, %v5264
  %5494 = vst.msk [vmem:[%s4 + $0x590] sm:$0xff] %vm5315, %v5265
  %5495 = vst.msk [vmem:[%s4 + $0x598] sm:$0xff] %vm5315, %v5266
  %5496 = vst.msk [vmem:[%s4 + $0x5a0] sm:$0xff] %vm5315, %v5267
  %5497 = vst.msk [vmem:[%s4 + $0x5a8] sm:$0xff] %vm5315, %v5268
  %5498 = vst.msk [vmem:[%s4 + $0x5b0] sm:$0xff] %vm5315, %v5269
  %5499 = vst.msk [vmem:[%s4 + $0x5b8] sm:$0xff] %vm5315, %v5270
  %5500 = vst.msk [vmem:[%s4 + $0x5c0] sm:$0xff] %vm5315, %v5271
  %5501 = vst.msk [vmem:[%s4 + $0x5c8] sm:$0xff] %vm5315, %v5272
  %5502 = vst.msk [vmem:[%s4 + $0x5d0] sm:$0xff] %vm5315, %v5273
  %5503 = vst.msk [vmem:[%s4 + $0x5d8] sm:$0xff] %vm5315, %v5274
  %5504 = vst.msk [vmem:[%s4 + $0x5e0] sm:$0xff] %vm5315, %v5275
  %5505 = vst.msk [vmem:[%s4 + $0x5e8] sm:$0xff] %vm5315, %v5276
  %5506 = vst.msk [vmem:[%s4 + $0x5f0] sm:$0xff] %vm5315, %v5277
  %5507 = vst.msk [vmem:[%s4 + $0x5f8] sm:$0xff] %vm5315, %v5278
  %5508 = vst.msk [vmem:[%s4 + $0x600] sm:$0xff] %vm5315, %v5279
  %5509 = vst.msk [vmem:[%s4 + $0x608] sm:$0xff] %vm5315, %v5280
  %5510 = vst.msk [vmem:[%s4 + $0x610] sm:$0xff] %vm5315, %v5281
  %5511 = vst.msk [vmem:[%s4 + $0x618] sm:$0xff] %vm5315, %v5282
  %5512 = vst.msk [vmem:[%s4 + $0x620] sm:$0xff] %vm5315, %v5283
  %5513 = vst.msk [vmem:[%s4 + $0x628] sm:$0xff] %vm5315, %v5284
  %5514 = vst.msk [vmem:[%s4 + $0x630] sm:$0xff] %vm5315, %v5285
  %5515 = vst.msk [vmem:[%s4 + $0x638] sm:$0xff] %vm5315, %v5286
  %5516 = vst.msk [vmem:[%s4 + $0x640] sm:$0xff] %vm5315, %v5287
  %5517 = vst.msk [vmem:[%s4 + $0x648] sm:$0xff] %vm5315, %v5288
  %5518 = vst.msk [vmem:[%s4 + $0x650] sm:$0xff] %vm5315, %v5289
  %5519 = vst.msk [vmem:[%s4 + $0x658] sm:$0xff] %vm5315, %v5290
  %5520 = vst.msk [vmem:[%s4 + $0x660] sm:$0xff] %vm5315, %v5291
  %5521 = vst.msk [vmem:[%s4 + $0x668] sm:$0xff] %vm5315, %v5292
  %5522 = vst.msk [vmem:[%s4 + $0x670] sm:$0xff] %vm5315, %v5293
  %5523 = vst.msk [vmem:[%s4 + $0x678] sm:$0xff] %vm5315, %v5294
  %5524 = vst.msk [vmem:[%s4 + $0x680] sm:$0xff] %vm5315, %v5295
  %5525 = vst.msk [vmem:[%s4 + $0x688] sm:$0xff] %vm5315, %v5296
  %5526 = vst.msk [vmem:[%s4 + $0x690] sm:$0xff] %vm5315, %v5297
  %5527 = vst.msk [vmem:[%s4 + $0x698] sm:$0xff] %vm5315, %v5298
  %5528 = vst.msk [vmem:[%s4 + $0x6a0] sm:$0xff] %vm5315, %v5299
  %5529 = vst.msk [vmem:[%s4 + $0x6a8] sm:$0xff] %vm5315, %v5300
  %5530 = vst.msk [vmem:[%s4 + $0x6b0] sm:$0xff] %vm5315, %v5301
  %5531 = vst.msk [vmem:[%s4 + $0x6b8] sm:$0xff] %vm5315, %v5302
  %5532 = vst.msk [vmem:[%s4 + $0x6c0] sm:$0xff] %vm5315, %v5303
  %5533 = vst.msk [vmem:[%s4 + $0x6c8] sm:$0xff] %vm5315, %v5304
  %5534 = vst.msk [vmem:[%s4 + $0x6d0] sm:$0xff] %vm5315, %v5305
  %5535 = vst.msk [vmem:[%s4 + $0x6d8] sm:$0xff] %vm5315, %v5306
  %5536 = vst.msk [vmem:[%s4 + $0x6e0] sm:$0xff] %vm5315, %v5307
  %5537 = vst.msk [vmem:[%s4 + $0x6e8] sm:$0xff] %vm5315, %v5308
  %5538 = vst.msk [vmem:[%s4 + $0x6f0] sm:$0xff] %vm5315, %v5309
  %5539 = vst.msk [vmem:[%s4 + $0x6f8] sm:$0xff] %vm5315, %v5310
  %5540 = vst.msk [vmem:[%s4 + $0x700] sm:$0xff] %vm5315, %v5311
  %5541 = vst.msk [vmem:[%s4 + $0x708] sm:$0xff] %vm5315, %v5312
  %5542 = vst.msk [vmem:[%s4 + $0x710] sm:$0xff] %vm5315, %v5313
  %5543 = vst.msk [vmem:[%s4 + $0x718] sm:$0xff] %vm5315, %v5314
  // Predicated region
  $region18: #{tpu_custom_call.1} parent=0 // pred_check
    _
  $region19: #{tpu_custom_call.1} parent=0 // pred_check_branch
    %5545 = sbr.rel (0) target = $region21
  $region20: #{tpu_custom_call.1} parent=0 // pred_region
    _
  $region21: #{tpu_custom_call.1} parent=0 // pred_fallthru
    _
  // Predicated region
  $region22: #{tpu_custom_call.1} parent=0 // pred_check
    _
  $region23: #{tpu_custom_call.1} parent=0 // pred_check_branch
    %5547 = sbr.rel (0) target = $region25
  $region24: #{tpu_custom_call.1} parent=0 // pred_region
    _
  $region25: #{tpu_custom_call.1} parent=0 // pred_fallthru
    _

</llo_original>
